<compile_context>
chip_gen: v6e
topology: v6e:2x2x1
jax: 0.10.0
libtpu: 0.0.40
codegen_flags: <defaults>
</compile_context>

<pallas_src>
import functools

import numpy as np

import jax
import jax.numpy as jnp
from jax import lax
from jax.experimental import pallas as pl
from jax.experimental.pallas import tpu as pltpu


def _round_up(x, m):
    return ((x + m - 1) // m) * m


def _pick_tile(B):
    """Batch tile: multiple of 8, capped at 128, >=2 grid blocks when B > 16."""
    if B <= 16:
        return _round_up(B, 8)
    return min(128, _round_up(B, 16) // 2)


# ----------------------------------------------------------------------------
# Fused kernel
# ----------------------------------------------------------------------------
def _lenet_fused_kernel(xcol_ref, w1_ref, b1_ref, w2_ref, b2_ref,
                        wf1_ref, bf1_ref, wf2_ref, bf2_ref,
                        out_ref, s1_ref, *, tb):
    f32 = jnp.float32
    bf16 = jnp.bfloat16

    # ---- conv1 (one K=140 matmul) + parity(W-pool) + bias + ReLU + H-pool ---
    # xcol rows are (output_row oh, batch b); N=512 packs even/odd parity into
    # the two 256-lane halves (lane = parity*256 + j*20 + c_out, 240 used).
    xk = xcol_ref[:, :, :].reshape(24 * tb, 140)                       # bf16
    c1 = jnp.dot(xk, w1_ref[...], preferred_element_type=f32)          # [24*tb, 512]
    a1 = jnp.maximum(jnp.maximum(c1[:, :256], c1[:, 256:]) + b1_ref[...], 0.0)
    a1 = a1.reshape(12, 2, tb, 256)                                    # (oh_pair, oh%2, b, feat)
    s1_ref[...] = jnp.maximum(a1[:, 0], a1[:, 1]).astype(bf16)         # pooled1 [12, tb, 256]

    # ---- conv2 (one K=1280 matmul) + parity(W-pool) + bias + ReLU + H-pool --
    # LHS = lane-aligned concat of the 5 shifted pooled1 row-windows.
    lhs2 = jnp.concatenate([s1_ref[kh:kh + 8, :, :] for kh in range(5)],
                           axis=-1)                                    # [8, tb, 1280] bf16
    c2 = jnp.dot(lhs2.reshape(8 * tb, 1280), w2_ref[...],
                 preferred_element_type=f32)                           # [8*tb, 512]
    a2 = jnp.maximum(jnp.maximum(c2[:, :256], c2[:, 256:]) + b2_ref[...], 0.0)
    a2 = a2.reshape(4, 2, tb, 256)
    h2 = jnp.maximum(a2[:, 0], a2[:, 1])                               # pooled2 [4, tb, 256]

    # ---- flatten + fc1 + ReLU (single K=1024 matmul) ------------------------
    hin = jnp.concatenate([h2[0], h2[1], h2[2], h2[3]], axis=-1).astype(bf16)   # [tb, 1024]
    h = jnp.maximum(jnp.dot(hin, wf1_ref[...], preferred_element_type=f32)
                    + bf1_ref[...], 0.0)                               # [tb, 512] f32

    # ---- fc2 + log_softmax (padded lanes carry -1e30 bias -> exp()==0) ------
    logits = jnp.dot(h.astype(bf16), wf2_ref[...],
                     preferred_element_type=f32) + bf2_ref[...]        # [tb, 128]
    m = jnp.max(logits, axis=-1, keepdims=True)
    s = logits - m
    lse = jnp.log(jnp.sum(jnp.exp(s), axis=-1, keepdims=True))
    out_ref[...] = s - lse


def _build_call(tb, n_blocks, bp):
    kernel = functools.partial(_lenet_fused_kernel, tb=tb)
    return pl.pallas_call(
        kernel,
        out_shape=jax.ShapeDtypeStruct((bp, 128), jnp.float32),
        grid=(n_blocks,),
        in_specs=[
            pl.BlockSpec((24, tb, 140), lambda i: (0, i, 0)),   # conv1 im2col input (bf16)
            pl.BlockSpec((140, 512), lambda i: (0, 0)),         # conv1 packed weights (bf16)
            pl.BlockSpec((1, 256), lambda i: (0, 0)),           # conv1 bias (f32, tiled/padded)
            pl.BlockSpec((1280, 512), lambda i: (0, 0)),        # conv2 packed weights (bf16)
            pl.BlockSpec((1, 256), lambda i: (0, 0)),           # conv2 bias (f32)
            pl.BlockSpec((1024, 512), lambda i: (0, 0)),        # fc1 (bf16, permuted+padded)
            pl.BlockSpec((1, 512), lambda i: (0, 0)),           # fc1 bias (f32)
            pl.BlockSpec((512, 128), lambda i: (0, 0)),         # fc2 (bf16, padded)
            pl.BlockSpec((1, 128), lambda i: (0, 0)),           # fc2 bias (f32, -1e30 pad)
        ],
        out_specs=pl.BlockSpec((tb, 128), lambda i: (i, 0)),
        scratch_shapes=[
            pltpu.VMEM((12, tb, 256), jnp.bfloat16),            # pooled conv1 activations
        ],
        compiler_params=pltpu.CompilerParams(
            dimension_semantics=("parallel",),
            vmem_limit_bytes=48 * 1024 * 1024,
        ),
    )


# ----------------------------------------------------------------------------
# Parameter preparation (all permutations / band packing hoisted here)
# ----------------------------------------------------------------------------
def prepare_params(p):
    w1 = np.asarray(p["conv1_w"], np.float32)   # [20, 1, 5, 5]
    b1 = np.asarray(p["conv1_b"], np.float32)   # [20]
    w2 = np.asarray(p["conv2_w"], np.float32)   # [50, 20, 5, 5]
    b2 = np.asarray(p["conv2_b"], np.float32)   # [50]
    f1w = np.asarray(p["fc1_w"], np.float32)    # [500, 800]  (in features: c*16 + h*4 + w)
    f1b = np.asarray(p["fc1_b"], np.float32)    # [500]
    f2w = np.asarray(p["fc2_w"], np.float32)    # [10, 500]
    f2b = np.asarray(p["fc2_b"], np.float32)    # [10]

    # conv1: K = kh*28 + iw (140);  N = parity*256 + j*20 + c_out (512, 240 used per half).
    w1c = np.zeros((140, 512), np.float32)
    for kh in range(5):
        for par in range(2):
            for j in range(12):
                for kw in range(5):
                    iw = 2 * j + par + kw
                    w1c[kh * 28 + iw,
                        par * 256 + j * 20: par * 256 + (j + 1) * 20] = w1[:, 0, kh, kw]
    b1t = np.zeros((1, 256), np.float32)
    b1t[0, :240] = np.tile(b1, 12)

    # conv2: K = kh*256 + j*20 + c_in (1280);  N = parity*256 + jp*50 + c_out (512).
    w2c = np.zeros((1280, 512), np.float32)
    for kh in range(5):
        for par in range(2):
            for jp in range(4):
                for kw in range(5):
                    j = 2 * jp + par + kw
                    w2c[kh * 256 + j * 20: kh * 256 + (j + 1) * 20,
                        par * 256 + jp * 50: par * 256 + (jp + 1) * 50] = w2[:, :, kh, kw].T
    b2t = np.zeros((1, 256), np.float32)
    b2t[0, :200] = np.tile(b2, 4)

    # fc1: kernel lane i*256 + jp*50 + d  ==  PyTorch flat feature d*16 + i*4 + jp.
    wf1 = np.zeros((1024, 512), np.float32)
    for i in range(4):
        for jp in range(4):
            for d in range(50):
                wf1[i * 256 + jp * 50 + d, :500] = f1w[:, d * 16 + i * 4 + jp]
    bf1 = np.zeros((1, 512), np.float32)
    bf1[0, :500] = f1b

    # fc2: pad K 500 -> 512 (zero rows) and N 10 -> 128; padded logit lanes get
    # bias -1e30 so they vanish under log_softmax.
    wf2 = np.zeros((512, 128), np.float32)
    wf2[:500, :10] = f2w.T
    bf2 = np.full((1, 128), -1e30, np.float32)
    bf2[0, :10] = f2b

    return {
        "w1c": jnp.asarray(w1c, jnp.bfloat16), "b1t": jnp.asarray(b1t),
        "w2c": jnp.asarray(w2c, jnp.bfloat16), "b2t": jnp.asarray(b2t),
        "wf1": jnp.asarray(wf1, jnp.bfloat16), "bf1": jnp.asarray(bf1),
        "wf2": jnp.asarray(wf2, jnp.bfloat16), "bf2": jnp.asarray(bf2),
    }


def init_params(key):
    ks = jax.random.split(key, 8)
    scale = 0.05
    return {
        "conv1_w": scale * jax.random.normal(ks[0], (20, 1, 5, 5), jnp.float32),
        "conv1_b": scale * jax.random.normal(ks[1], (20,), jnp.float32),
        "conv2_w": scale * jax.random.normal(ks[2], (50, 20, 5, 5), jnp.float32),
        "conv2_b": scale * jax.random.normal(ks[3], (50,), jnp.float32),
        "fc1_w": scale * jax.random.normal(ks[4], (500, 800), jnp.float32),
        "fc1_b": scale * jax.random.normal(ks[5], (500,), jnp.float32),
        "fc2_w": scale * jax.random.normal(ks[6], (10, 500), jnp.float32),
        "fc2_b": scale * jax.random.normal(ks[7], (10,), jnp.float32),
    }


# ----------------------------------------------------------------------------
# Forward pass
# ----------------------------------------------------------------------------
@jax.jit
def net_forward(kparams, x):
    # x: [B, 1, 28, 28] float32 (NCHW, like PyTorch MNIST)
    B = x.shape[0]
    tb = _pick_tile(B)
    bp = _round_up(B, tb)
    x3 = x.reshape(B, 28, 28).astype(jnp.float32)
    if bp != B:
        x3 = jnp.pad(x3, ((0, bp - B), (0, 0), (0, 0)))
    # H-only im2col for conv1: output row oh sees input rows oh..oh+4 (K=140).
    # Tiny HBM cost; lets the kernel run conv1 as one dense K=140 MXU matmul.
    xcol = jnp.concatenate([x3[:, kh:kh + 24, :] for kh in range(5)], axis=-1)  # [bp, 24, 140]
    xcol = jnp.transpose(xcol, (1, 0, 2)).astype(jnp.bfloat16)                  # [24, bp, 140]
    call = _build_call(tb, bp // tb, bp)
    out = call(xcol, kparams["w1c"], kparams["b1t"], kparams["w2c"], kparams["b2t"],
               kparams["wf1"], kparams["bf1"], kparams["wf2"], kparams["bf2"])
    return out[:B, :10]


# Plain-JAX reference (for correctness checking only)
def reference_forward(params, x):
    dn = ("NCHW", "OIHW", "NCHW")
    y = lax.conv_general_dilated(x, params["conv1_w"], (1, 1), "VALID",
                                 dimension_numbers=dn)
    y = jnp.maximum(y + params["conv1_b"][None, :, None, None], 0.0)
    y = lax.reduce_window(y, -jnp.inf, lax.max, (1, 1, 2, 2), (1, 1, 2, 2), "VALID")
    y = lax.conv_general_dilated(y, params["conv2_w"], (1, 1), "VALID",
                                 dimension_numbers=dn)
    y = jnp.maximum(y + params["conv2_b"][None, :, None, None], 0.0)
    y = lax.reduce_window(y, -jnp.inf, lax.max, (1, 1, 2, 2), (1, 1, 2, 2), "VALID")
    y = y.reshape(y.shape[0], -1)
    y = jnp.maximum(y @ params["fc1_w"].T + params["fc1_b"], 0.0)
    y = y @ params["fc2_w"].T + params["fc2_b"]
    return jax.nn.log_softmax(y, axis=-1)


if __name__ == "__main__":
    key = jax.random.PRNGKey(0)
    pkey, xkey = jax.random.split(key)
    params = init_params(pkey)
    kparams = prepare_params(params)

    # Small MNIST-shaped input (single grid block).
    x = jax.random.normal(xkey, (2, 1, 28, 28), jnp.float32)
    out = jax.block_until_ready(net_forward(kparams, x))
    assert out.shape == (2, 10)
    assert jnp.allclose(jnp.sum(jnp.exp(out), axis=1), 1.0, atol=1e-3)
    ref = jax.block_until_ready(reference_forward(params, x))
    max_diff = float(jnp.max(jnp.abs(out - ref)))
    assert max_diff < 5e-2, f"kernel/reference mismatch, max abs diff = {max_diff}"

    # Larger batch to exercise the multi-block (tiled, parallel) grid path.
    xb = jax.random.normal(jax.random.PRNGKey(1), (64, 1, 28, 28), jnp.float32)
    outb = jax.block_until_ready(net_forward(kparams, xb))
    refb = jax.block_until_ready(reference_forward(params, xb))
    max_diff_b = float(jnp.max(jnp.abs(outb - refb)))
    assert outb.shape == (64, 10)
    assert max_diff_b < 5e-2, f"kernel/reference mismatch (B=64), max abs diff = {max_diff_b}"

    print("KERNEL_OK")
</pallas_src>

<mosaic_0001>
module attributes {stable_mosaic.version = 11 : i64} {
  func.func @_lenet_fused_kernel(%arg0: i32, %arg1: memref<24x8x140xbf16, #tpu.memory_space<vmem>>, %arg2: memref<140x512xbf16, #tpu.memory_space<vmem>>, %arg3: memref<1x256xf32, #tpu.memory_space<vmem>>, %arg4: memref<1280x512xbf16, #tpu.memory_space<vmem>>, %arg5: memref<1x256xf32, #tpu.memory_space<vmem>>, %arg6: memref<1024x512xbf16, #tpu.memory_space<vmem>>, %arg7: memref<1x512xf32, #tpu.memory_space<vmem>>, %arg8: memref<512x128xbf16, #tpu.memory_space<vmem>>, %arg9: memref<1x128xf32, #tpu.memory_space<vmem>>, %arg10: memref<8x128xf32, #tpu.memory_space<vmem>>, %arg11: memref<12x8x256xbf16, #tpu.memory_space<vmem>>) attributes {dimension_semantics = [#tpu.dimension_semantics<parallel>], iteration_bounds = array<i64: 1>, scalar_prefetch = 0 : i64, scratch_operands = 1 : i64, tpu.core_type = #tpu.core_type<tc>, window_params = [{transform_indices = @transform_0, window_bounds = array<i64: 24, 8, 140>}, {pipeline_mode = #tpu.pipeline_mode<synchronous>, transform_indices = @transform_1, window_bounds = array<i64: 140, 512>}, {pipeline_mode = #tpu.pipeline_mode<synchronous>, transform_indices = @transform_2, window_bounds = array<i64: 1, 256>}, {pipeline_mode = #tpu.pipeline_mode<synchronous>, transform_indices = @transform_3, window_bounds = array<i64: 1280, 512>}, {pipeline_mode = #tpu.pipeline_mode<synchronous>, transform_indices = @transform_4, window_bounds = array<i64: 1, 256>}, {pipeline_mode = #tpu.pipeline_mode<synchronous>, transform_indices = @transform_5, window_bounds = array<i64: 1024, 512>}, {pipeline_mode = #tpu.pipeline_mode<synchronous>, transform_indices = @transform_6, window_bounds = array<i64: 1, 512>}, {pipeline_mode = #tpu.pipeline_mode<synchronous>, transform_indices = @transform_7, window_bounds = array<i64: 512, 128>}, {pipeline_mode = #tpu.pipeline_mode<synchronous>, transform_indices = @transform_8, window_bounds = array<i64: 1, 128>}, {transform_indices = @transform_9, window_bounds = array<i64: 8, 128>}]} {
    %c0 = arith.constant 0 : index
    %c0_0 = arith.constant 0 : index
    %c0_1 = arith.constant 0 : index
    %0 = vector.load %arg1[%c0, %c0_0, %c0_1] : memref<24x8x140xbf16, #tpu.memory_space<vmem>>, vector<24x8x140xbf16>
    %1 = vector.shape_cast %0 : vector<24x8x140xbf16> to vector<192x140xbf16>
    %c0_2 = arith.constant 0 : index
    %c0_3 = arith.constant 0 : index
    %2 = vector.load %arg2[%c0_2, %c0_3] : memref<140x512xbf16, #tpu.memory_space<vmem>>, vector<140x512xbf16>
    %cst = arith.constant dense<0.000000e+00> : vector<192x512xf32>
    %3 = tpu.matmul %1, %2, %cst {dimension_numbers = #tpu.dot_dimension_numbers<[1], [0], [0], [1], [0, 0, 1, 1], [], []>} : vector<192x140xbf16>, vector<140x512xbf16>, vector<192x512xf32> -> vector<192x512xf32>
    %4 = vector.extract_strided_slice %3 {offsets = [0, 0], sizes = [192, 256], strides = [1, 1]} : vector<192x512xf32> to vector<192x256xf32>
    %5 = vector.extract_strided_slice %3 {offsets = [0, 256], sizes = [192, 256], strides = [1, 1]} : vector<192x512xf32> to vector<192x256xf32>
    %6 = arith.maximumf %4, %5 : vector<192x256xf32>
    %c0_4 = arith.constant 0 : index
    %c0_5 = arith.constant 0 : index
    %7 = vector.load %arg3[%c0_4, %c0_5] : memref<1x256xf32, #tpu.memory_space<vmem>>, vector<1x256xf32>
    %8 = vector.broadcast %7 : vector<1x256xf32> to vector<192x256xf32>
    %9 = arith.addf %6, %8 : vector<192x256xf32>
    %cst_6 = arith.constant 0.000000e+00 : f32
    %10 = vector.broadcast %cst_6 : f32 to vector<192x256xf32>
    %11 = arith.maximumf %9, %10 : vector<192x256xf32>
    %12 = vector.shape_cast %11 : vector<192x256xf32> to vector<12x2x8x256xf32>
    %13 = vector.extract_strided_slice %12 {offsets = [0, 0, 0, 0], sizes = [12, 1, 8, 256], strides = [1, 1, 1, 1]} : vector<12x2x8x256xf32> to vector<12x1x8x256xf32>
    %14 = vector.shape_cast %13 : vector<12x1x8x256xf32> to vector<12x8x256xf32>
    %15 = vector.extract_strided_slice %12 {offsets = [0, 1, 0, 0], sizes = [12, 1, 8, 256], strides = [1, 1, 1, 1]} : vector<12x2x8x256xf32> to vector<12x1x8x256xf32>
    %16 = vector.shape_cast %15 : vector<12x1x8x256xf32> to vector<12x8x256xf32>
    %17 = arith.maximumf %14, %16 : vector<12x8x256xf32>
    %18 = arith.truncf %17 : vector<12x8x256xf32> to vector<12x8x256xbf16>
    %c0_7 = arith.constant 0 : index
    %c0_8 = arith.constant 0 : index
    %c0_9 = arith.constant 0 : index
    %19 = vector.load %arg11[%c0_7, %c0_8, %c0_9] : memref<12x8x256xbf16, #tpu.memory_space<vmem>>, vector<12x8x256xbf16>
    tpu.vector_store %arg11[%c0_7, %c0_8, %c0_9], %18 {strides = array<i32>} : memref<12x8x256xbf16, #tpu.memory_space<vmem>>, vector<12x8x256xbf16>,
    %c0_10 = arith.constant 0 : index
    %c0_11 = arith.constant 0 : index
    %c0_12 = arith.constant 0 : index
    %20 = vector.load %arg11[%c0_10, %c0_11, %c0_12] : memref<12x8x256xbf16, #tpu.memory_space<vmem>>, vector<8x8x256xbf16>
    %c1 = arith.constant 1 : index
    %c0_13 = arith.constant 0 : index
    %c0_14 = arith.constant 0 : index
    %21 = vector.load %arg11[%c1, %c0_13, %c0_14] : memref<12x8x256xbf16, #tpu.memory_space<vmem>>, vector<8x8x256xbf16>
    %c2 = arith.constant 2 : index
    %c0_15 = arith.constant 0 : index
    %c0_16 = arith.constant 0 : index
    %22 = vector.load %arg11[%c2, %c0_15, %c0_16] : memref<12x8x256xbf16, #tpu.memory_space<vmem>>, vector<8x8x256xbf16>
    %c3 = arith.constant 3 : index
    %c0_17 = arith.constant 0 : index
    %c0_18 = arith.constant 0 : index
    %23 = vector.load %arg11[%c3, %c0_17, %c0_18] : memref<12x8x256xbf16, #tpu.memory_space<vmem>>, vector<8x8x256xbf16>
    %c4 = arith.constant 4 : index
    %c0_19 = arith.constant 0 : index
    %c0_20 = arith.constant 0 : index
    %24 = vector.load %arg11[%c4, %c0_19, %c0_20] : memref<12x8x256xbf16, #tpu.memory_space<vmem>>, vector<8x8x256xbf16>
    %25 = tpu.concatenate %20, %21, %22, %23, %24 in 2 : vector<8x8x256xbf16>, vector<8x8x256xbf16>, vector<8x8x256xbf16>, vector<8x8x256xbf16>, vector<8x8x256xbf16> -> vector<8x8x1280xbf16>
    %26 = vector.shape_cast %25 : vector<8x8x1280xbf16> to vector<64x1280xbf16>
    %c0_21 = arith.constant 0 : index
    %c0_22 = arith.constant 0 : index
    %27 = vector.load %arg4[%c0_21, %c0_22] : memref<1280x512xbf16, #tpu.memory_space<vmem>>, vector<1280x512xbf16>
    %cst_23 = arith.constant dense<0.000000e+00> : vector<64x512xf32>
    %28 = tpu.matmul %26, %27, %cst_23 {dimension_numbers = #tpu.dot_dimension_numbers<[1], [0], [0], [1], [0, 0, 1, 1], [], []>} : vector<64x1280xbf16>, vector<1280x512xbf16>, vector<64x512xf32> -> vector<64x512xf32>
    %29 = vector.extract_strided_slice %28 {offsets = [0, 0], sizes = [64, 256], strides = [1, 1]} : vector<64x512xf32> to vector<64x256xf32>
    %30 = vector.extract_strided_slice %28 {offsets = [0, 256], sizes = [64, 256], strides = [1, 1]} : vector<64x512xf32> to vector<64x256xf32>
    %31 = arith.maximumf %29, %30 : vector<64x256xf32>
    %c0_24 = arith.constant 0 : index
    %c0_25 = arith.constant 0 : index
    %32 = vector.load %arg5[%c0_24, %c0_25] : memref<1x256xf32, #tpu.memory_space<vmem>>, vector<1x256xf32>
    %33 = vector.broadcast %32 : vector<1x256xf32> to vector<64x256xf32>
    %34 = arith.addf %31, %33 : vector<64x256xf32>
    %cst_26 = arith.constant 0.000000e+00 : f32
    %35 = vector.broadcast %cst_26 : f32 to vector<64x256xf32>
    %36 = arith.maximumf %34, %35 : vector<64x256xf32>
    %37 = vector.shape_cast %36 : vector<64x256xf32> to vector<4x2x8x256xf32>
    %38 = vector.extract_strided_slice %37 {offsets = [0, 0, 0, 0], sizes = [4, 1, 8, 256], strides = [1, 1, 1, 1]} : vector<4x2x8x256xf32> to vector<4x1x8x256xf32>
    %39 = vector.shape_cast %38 : vector<4x1x8x256xf32> to vector<4x8x256xf32>
    %40 = vector.extract_strided_slice %37 {offsets = [0, 1, 0, 0], sizes = [4, 1, 8, 256], strides = [1, 1, 1, 1]} : vector<4x2x8x256xf32> to vector<4x1x8x256xf32>
    %41 = vector.shape_cast %40 : vector<4x1x8x256xf32> to vector<4x8x256xf32>
    %42 = arith.maximumf %39, %41 : vector<4x8x256xf32>
    %43 = vector.extract_strided_slice %42 {offsets = [0, 0, 0], sizes = [1, 8, 256], strides = [1, 1, 1]} : vector<4x8x256xf32> to vector<1x8x256xf32>
    %44 = vector.shape_cast %43 : vector<1x8x256xf32> to vector<8x256xf32>
    %45 = vector.extract_strided_slice %42 {offsets = [1, 0, 0], sizes = [1, 8, 256], strides = [1, 1, 1]} : vector<4x8x256xf32> to vector<1x8x256xf32>
    %46 = vector.shape_cast %45 : vector<1x8x256xf32> to vector<8x256xf32>
    %47 = vector.extract_strided_slice %42 {offsets = [2, 0, 0], sizes = [1, 8, 256], strides = [1, 1, 1]} : vector<4x8x256xf32> to vector<1x8x256xf32>
    %48 = vector.shape_cast %47 : vector<1x8x256xf32> to vector<8x256xf32>
    %49 = vector.extract_strided_slice %42 {offsets = [3, 0, 0], sizes = [1, 8, 256], strides = [1, 1, 1]} : vector<4x8x256xf32> to vector<1x8x256xf32>
    %50 = vector.shape_cast %49 : vector<1x8x256xf32> to vector<8x256xf32>
    %51 = tpu.concatenate %44, %46, %48, %50 in 1 : vector<8x256xf32>, vector<8x256xf32>, vector<8x256xf32>, vector<8x256xf32> -> vector<8x1024xf32>
    %52 = arith.truncf %51 : vector<8x1024xf32> to vector<8x1024xbf16>
    %c0_27 = arith.constant 0 : index
    %c0_28 = arith.constant 0 : index
    %53 = vector.load %arg6[%c0_27, %c0_28] : memref<1024x512xbf16, #tpu.memory_space<vmem>>, vector<1024x512xbf16>
    %cst_29 = arith.constant dense<0.000000e+00> : vector<8x512xf32>
    %54 = tpu.matmul %52, %53, %cst_29 {dimension_numbers = #tpu.dot_dimension_numbers<[1], [0], [0], [1], [0, 0, 1, 1], [], []>} : vector<8x1024xbf16>, vector<1024x512xbf16>, vector<8x512xf32> -> vector<8x512xf32>
    %c0_30 = arith.constant 0 : index
    %c0_31 = arith.constant 0 : index
    %55 = vector.load %arg7[%c0_30, %c0_31] : memref<1x512xf32, #tpu.memory_space<vmem>>, vector<1x512xf32>
    %56 = vector.broadcast %55 : vector<1x512xf32> to vector<8x512xf32>
    %57 = arith.addf %54, %56 : vector<8x512xf32>
    %cst_32 = arith.constant 0.000000e+00 : f32
    %58 = vector.broadcast %cst_32 : f32 to vector<8x512xf32>
    %59 = arith.maximumf %57, %58 : vector<8x512xf32>
    %60 = arith.truncf %59 : vector<8x512xf32> to vector<8x512xbf16>
    %c0_33 = arith.constant 0 : index
    %c0_34 = arith.constant 0 : index
    %61 = vector.load %arg8[%c0_33, %c0_34] : memref<512x128xbf16, #tpu.memory_space<vmem>>, vector<512x128xbf16>
    %cst_35 = arith.constant dense<0.000000e+00> : vector<8x128xf32>
    %62 = tpu.matmul %60, %61, %cst_35 {dimension_numbers = #tpu.dot_dimension_numbers<[1], [0], [0], [1], [0, 0, 1, 1], [], []>} : vector<8x512xbf16>, vector<512x128xbf16>, vector<8x128xf32> -> vector<8x128xf32>
    %c0_36 = arith.constant 0 : index
    %c0_37 = arith.constant 0 : index
    %63 = vector.load %arg9[%c0_36, %c0_37] : memref<1x128xf32, #tpu.memory_space<vmem>>, vector<1x128xf32>
    %64 = vector.broadcast %63 : vector<1x128xf32> to vector<8x128xf32>
    %65 = arith.addf %62, %64 : vector<8x128xf32>
    %cst_38 = arith.constant dense<0xFF800000> : vector<8xf32>
    %66 = vector.multi_reduction <maximumf>, %65, %cst_38 [1] : vector<8x128xf32> to vector<8xf32>
    %67 = vector.shape_cast %66 : vector<8xf32> to vector<8x1xf32>
    %68 = vector.broadcast %67 : vector<8x1xf32> to vector<8x128xf32>
    %69 = arith.subf %65, %68 : vector<8x128xf32>
    %70 = math.exp %69 : vector<8x128xf32>
    %cst_39 = arith.constant dense<0.000000e+00> : vector<8xf32>
    %71 = vector.multi_reduction <add>, %70, %cst_39 [1] : vector<8x128xf32> to vector<8xf32>
    %72 = vector.shape_cast %71 : vector<8xf32> to vector<8x1xf32>
    %73 = math.log %72 : vector<8x1xf32>
    %74 = vector.broadcast %73 : vector<8x1xf32> to vector<8x128xf32>
    %75 = arith.subf %69, %74 : vector<8x128xf32>
    %c0_40 = arith.constant 0 : index
    %c0_41 = arith.constant 0 : index
    %76 = vector.load %arg10[%c0_40, %c0_41] : memref<8x128xf32, #tpu.memory_space<vmem>>, vector<8x128xf32>
    tpu.vector_store %arg10[%c0_40, %c0_41], %75 {strides = array<i32>} : memref<8x128xf32, #tpu.memory_space<vmem>>, vector<8x128xf32>,
    return
  }
  func.func @transform_0(%arg0: i32) -> (i32, i32, i32) {
    %c0_i32 = arith.constant 0 : i32
    %c0_i32_0 = arith.constant 0 : i32
    %c0_i32_1 = arith.constant 0 : i32
    return %c0_i32, %arg0, %c0_i32_0 : i32, i32, i32
  }
  func.func @transform_1(%arg0: i32) -> (i32, i32) {
    %c0_i32 = arith.constant 0 : i32
    %c0_i32_0 = arith.constant 0 : i32
    %c0_i32_1 = arith.constant 0 : i32
    return %c0_i32, %c0_i32_0 : i32, i32
  }
  func.func @transform_2(%arg0: i32) -> (i32, i32) {
    %c0_i32 = arith.constant 0 : i32
    %c0_i32_0 = arith.constant 0 : i32
    %c0_i32_1 = arith.constant 0 : i32
    return %c0_i32, %c0_i32_0 : i32, i32
  }
  func.func @transform_3(%arg0: i32) -> (i32, i32) {
    %c0_i32 = arith.constant 0 : i32
    %c0_i32_0 = arith.constant 0 : i32
    %c0_i32_1 = arith.constant 0 : i32
    return %c0_i32, %c0_i32_0 : i32, i32
  }
  func.func @transform_4(%arg0: i32) -> (i32, i32) {
    %c0_i32 = arith.constant 0 : i32
    %c0_i32_0 = arith.constant 0 : i32
    %c0_i32_1 = arith.constant 0 : i32
    return %c0_i32, %c0_i32_0 : i32, i32
  }
  func.func @transform_5(%arg0: i32) -> (i32, i32) {
    %c0_i32 = arith.constant 0 : i32
    %c0_i32_0 = arith.constant 0 : i32
    %c0_i32_1 = arith.constant 0 : i32
    return %c0_i32, %c0_i32_0 : i32, i32
  }
  func.func @transform_6(%arg0: i32) -> (i32, i32) {
    %c0_i32 = arith.constant 0 : i32
    %c0_i32_0 = arith.constant 0 : i32
    %c0_i32_1 = arith.constant 0 : i32
    return %c0_i32, %c0_i32_0 : i32, i32
  }
  func.func @transform_7(%arg0: i32) -> (i32, i32) {
    %c0_i32 = arith.constant 0 : i32
    %c0_i32_0 = arith.constant 0 : i32
    %c0_i32_1 = arith.constant 0 : i32
    return %c0_i32, %c0_i32_0 : i32, i32
  }
  func.func @transform_8(%arg0: i32) -> (i32, i32) {
    %c0_i32 = arith.constant 0 : i32
    %c0_i32_0 = arith.constant 0 : i32
    %c0_i32_1 = arith.constant 0 : i32
    return %c0_i32, %c0_i32_0 : i32, i32
  }
  func.func @transform_9(%arg0: i32) -> (i32, i32) {
    %c0_i32 = arith.constant 0 : i32
    %c0_i32_0 = arith.constant 0 : i32
    return %arg0, %c0_i32 : i32, i32
  }
}

</mosaic_0001>

<llo_original>
// kernel: net_forward.1
$region0: #{net_forward.1}
  #allocation0 [shape = 'u32[]', space=smem, size = 0x4, offset = 0x4, fixed_abs, tag = 'smem constant byte address 0x4 - core index']
  #allocation1 [shape = 'u32[144,128]{1,0:T(1,128)}', space=vmem, size = 0x12000, scoped, tag = 'internal scratch']
  #allocation2 [shape = 'bf16[12,8,256]{2,1,0:T(8,128)(2,1)}', space=vmem, size = 0xc000, scoped, tag = 'scratch operand']
  %s0 = inlined_call_operand.vmem [shape: bf16[24,8,140], index: 0, kind: input, shape index: {}]
  %s1 = inlined_call_operand.hbm [shape: bf16[140,512], index: 1, kind: input, shape index: {}]
  %s2 = inlined_call_operand.hbm [shape: f32[1,256], index: 2, kind: input, shape index: {}]
  %s3 = inlined_call_operand.hbm [shape: bf16[1280,512], index: 3, kind: input, shape index: {}]
  %s4 = inlined_call_operand.hbm [shape: f32[1,256], index: 4, kind: input, shape index: {}]
  %s5 = inlined_call_operand.hbm [shape: bf16[1024,512], index: 5, kind: input, shape index: {}]
  %s6 = inlined_call_operand.hbm [shape: f32[1,512], index: 6, kind: input, shape index: {}]
  %s7 = inlined_call_operand.hbm [shape: bf16[512,128], index: 7, kind: input, shape index: {}]
  %s8 = inlined_call_operand.hbm [shape: f32[1,128], index: 8, kind: input, shape index: {}]
  %s9 = inlined_call_operand.vmem [shape: f32[8,128], index: 9, kind: output, shape index: {}]
  %s10 = sld [smem:[#allocation0]]
  $region78: #{net_forward.1} parent=0
    _
  %s12 = ssub.s32 1, %s10
  %s13 = scalar_select 0, %s12, %s10
  $region1: #{net_forward.1} parent=0
    #allocation3 [shape = 'u8[147456]{0}', space=vmem, size = 0x24000, scoped, tag = 'input window, operand 1, single buffered']
    #allocation4 [shape = 's32[1]{0}', space=sflag, size = 0x4, scoped, tag = 'scoped memory for net_forward.1']
    #allocation5 [shape = 'u8[1024]{0}', space=vmem, size = 0x400, scoped, tag = 'input window, operand 2, single buffered']
    #allocation6 [shape = 's32[1]{0}', space=sflag, size = 0x4, scoped, tag = 'scoped memory for net_forward.1']
    #allocation7 [shape = 'u8[1310720]{0}', space=vmem, size = 0x140000, scoped, tag = 'input window, operand 3, single buffered']
    #allocation8 [shape = 'u8[1024]{0}', space=vmem, size = 0x400, scoped, tag = 'input window, operand 4, single buffered']
    #allocation9 [shape = 's32[1]{0}', space=sflag, size = 0x4, scoped, tag = 'scoped memory for net_forward.1']
    #allocation10 [shape = 'u8[1048576]{0}', space=vmem, size = 0x100000, scoped, tag = 'input window, operand 5, single buffered']
    #allocation11 [shape = 'u8[2048]{0}', space=vmem, size = 0x800, scoped, tag = 'input window, operand 6, single buffered']
    #allocation12 [shape = 's32[1]{0}', space=sflag, size = 0x4, scoped, tag = 'scoped memory for net_forward.1']
    #allocation13 [shape = 'u8[131072]{0}', space=vmem, size = 0x20000, scoped, tag = 'input window, operand 7, single buffered']
    #allocation14 [shape = 'u8[512]{0}', space=vmem, size = 0x400, scoped, tag = 'input window, operand 8, single buffered']
    #allocation15 [shape = 's32[1]{0}', space=sflag, size = 0x4, scoped, tag = 'scoped memory for net_forward.1']
    %14 = vsyncpa [#allocation4], 0
    %15 = vsyncpa [#allocation6], 0
    %16 = vsyncpa [#allocation9], 0
    %17 = vsyncpa [#allocation12], 0
    %18 = vsyncpa [#allocation15], 0
    // Predicated region
    $region2: #{net_forward.1} parent=1 // pred_check
      _
    $region3: #{net_forward.1} parent=1 // pred_check_branch
      %20 = sbr.rel (0) target = $region5
    $region4: #{net_forward.1} parent=1 // pred_region
      _
    $region5: #{net_forward.1} parent=1 // pred_fallthru
      _
    // Predicated region
    $region6: #{net_forward.1} parent=1 // pred_check
      _
    $region7: #{net_forward.1} parent=1 // pred_check_branch
      %22 = sbr.rel (0) target = $region9
    $region8: #{net_forward.1} parent=1 // pred_region
      %s24 = ssub.s32 4608, 4608
      %25 = vsyncadd [#allocation4], %s24
      %s26 = sshll.u32 [#allocation3], 4
      %s27 = int_to_ptr.vmem [resolvable:$true] %s26
      %32 = dma.hbm_to_vmem [thread:$0]  %s1, 4608, %s27, [#allocation4], 256, 256, 16
    $region9: #{net_forward.1} parent=1 // pred_fallthru
      _
    // Predicated region
    $region10: #{net_forward.1} parent=1 // pred_check
      _
    $region11: #{net_forward.1} parent=1 // pred_check_branch
      %34 = sbr.rel (0) target = $region13
    $region12: #{net_forward.1} parent=1 // pred_region
      %s36 = ssub.s32 32, 32
      %37 = vsyncadd [#allocation6], %s36
      %s39 = sshll.u32 [#allocation5], 4
      %s40 = int_to_ptr.vmem [resolvable:$true] %s39
      %42 = dma.hbm_to_vmem [thread:$0]  %s2, 32, %s40, [#allocation6]
    $region13: #{net_forward.1} parent=1 // pred_fallthru
      _
    // Predicated region
    $region14: #{net_forward.1} parent=1 // pred_check
      _
    $region15: #{net_forward.1} parent=1 // pred_check_branch
      %44 = sbr.rel (0) target = $region17
    $region16: #{net_forward.1} parent=1 // pred_region
      %s46 = ssub.s32 40960, 40960
      %47 = vsyncadd [#allocation6], %s46
      %s48 = sshll.u32 [#allocation7], 4
      %s49 = int_to_ptr.vmem [resolvable:$true] %s48
      %54 = dma.hbm_to_vmem [thread:$0]  %s3, 40960, %s49, [#allocation6], 256, 256, 16
    $region17: #{net_forward.1} parent=1 // pred_fallthru
      _
    // Predicated region
    $region18: #{net_forward.1} parent=1 // pred_check
      _
    $region19: #{net_forward.1} parent=1 // pred_check_branch
      %56 = sbr.rel (0) target = $region21
    $region20: #{net_forward.1} parent=1 // pred_region
      %s58 = ssub.s32 32, 32
      %59 = vsyncadd [#allocation9], %s58
      %s61 = sshll.u32 [#allocation8], 4
      %s62 = int_to_ptr.vmem [resolvable:$true] %s61
      %64 = dma.hbm_to_vmem [thread:$0]  %s4, 32, %s62, [#allocation9]
    $region21: #{net_forward.1} parent=1 // pred_fallthru
      _
    // Predicated region
    $region22: #{net_forward.1} parent=1 // pred_check
      _
    $region23: #{net_forward.1} parent=1 // pred_check_branch
      %66 = sbr.rel (0) target = $region25
    $region24: #{net_forward.1} parent=1 // pred_region
      %s68 = ssub.s32 32768, 32768
      %69 = vsyncadd [#allocation9], %s68
      %s70 = sshll.u32 [#allocation10], 4
      %s71 = int_to_ptr.vmem [resolvable:$true] %s70
      %76 = dma.hbm_to_vmem [thread:$0]  %s5, 32768, %s71, [#allocation9], 256, 256, 16
    $region25: #{net_forward.1} parent=1 // pred_fallthru
      _
    // Predicated region
    $region26: #{net_forward.1} parent=1 // pred_check
      _
    $region27: #{net_forward.1} parent=1 // pred_check_branch
      %78 = sbr.rel (0) target = $region29
    $region28: #{net_forward.1} parent=1 // pred_region
      %s80 = ssub.s32 64, 64
      %81 = vsyncadd [#allocation12], %s80
      %s83 = sshll.u32 [#allocation11], 4
      %s84 = int_to_ptr.vmem [resolvable:$true] %s83
      %86 = dma.hbm_to_vmem [thread:$0]  %s6, 64, %s84, [#allocation12]
    $region29: #{net_forward.1} parent=1 // pred_fallthru
      _
    // Predicated region
    $region30: #{net_forward.1} parent=1 // pred_check
      _
    $region31: #{net_forward.1} parent=1 // pred_check_branch
      %88 = sbr.rel (0) target = $region33
    $region32: #{net_forward.1} parent=1 // pred_region
      %s90 = ssub.s32 4096, 4096
      %91 = vsyncadd [#allocation12], %s90
      %s92 = sshll.u32 [#allocation13], 4
      %s93 = int_to_ptr.vmem [resolvable:$true] %s92
      %98 = dma.hbm_to_vmem [thread:$0]  %s7, 4096, %s93, [#allocation12], 64, 64, 4
    $region33: #{net_forward.1} parent=1 // pred_fallthru
      _
    // Predicated region
    $region34: #{net_forward.1} parent=1 // pred_check
      _
    $region35: #{net_forward.1} parent=1 // pred_check_branch
      %100 = sbr.rel (0) target = $region37
    $region36: #{net_forward.1} parent=1 // pred_region
      %s102 = ssub.s32 16, 16
      %103 = vsyncadd [#allocation15], %s102
      %s105 = sshll.u32 [#allocation14], 4
      %s106 = int_to_ptr.vmem [resolvable:$true] %s105
      %108 = dma.hbm_to_vmem [thread:$0]  %s8, 16, %s106, [#allocation15]
    $region37: #{net_forward.1} parent=1 // pred_fallthru
      _
    // Predicated region
    $region38: #{net_forward.1} parent=1 // pred_check
      _
    $region39: #{net_forward.1} parent=1 // pred_check_branch
      %110 = sbr.rel (0) target = $region41
    $region40: #{net_forward.1} parent=1 // pred_region
      %111 = dma.done [#allocation4], 4608
    $region41: #{net_forward.1} parent=1 // pred_fallthru
      _
    // Predicated region
    $region42: #{net_forward.1} parent=1 // pred_check
      _
    $region43: #{net_forward.1} parent=1 // pred_check_branch
      %113 = sbr.rel (0) target = $region45
    $region44: #{net_forward.1} parent=1 // pred_region
      %114 = dma.done [#allocation6], 32
    $region45: #{net_forward.1} parent=1 // pred_fallthru
      _
    // Predicated region
    $region46: #{net_forward.1} parent=1 // pred_check
      _
    $region47: #{net_forward.1} parent=1 // pred_check_branch
      %116 = sbr.rel (0) target = $region49
    $region48: #{net_forward.1} parent=1 // pred_region
      %117 = dma.done [#allocation6], 40960
    $region49: #{net_forward.1} parent=1 // pred_fallthru
      _
    // Predicated region
    $region50: #{net_forward.1} parent=1 // pred_check
      _
    $region51: #{net_forward.1} parent=1 // pred_check_branch
      %119 = sbr.rel (0) target = $region53
    $region52: #{net_forward.1} parent=1 // pred_region
      %120 = dma.done [#allocation9], 32
    $region53: #{net_forward.1} parent=1 // pred_fallthru
      _
    // Predicated region
    $region54: #{net_forward.1} parent=1 // pred_check
      _
    $region55: #{net_forward.1} parent=1 // pred_check_branch
      %122 = sbr.rel (0) target = $region57
    $region56: #{net_forward.1} parent=1 // pred_region
      %123 = dma.done [#allocation9], 32768
    $region57: #{net_forward.1} parent=1 // pred_fallthru
      _
    // Predicated region
    $region58: #{net_forward.1} parent=1 // pred_check
      _
    $region59: #{net_forward.1} parent=1 // pred_check_branch
      %125 = sbr.rel (0) target = $region61
    $region60: #{net_forward.1} parent=1 // pred_region
      %126 = dma.done [#allocation12], 64
    $region61: #{net_forward.1} parent=1 // pred_fallthru
      _
    // Predicated region
    $region62: #{net_forward.1} parent=1 // pred_check
      _
    $region63: #{net_forward.1} parent=1 // pred_check_branch
      %128 = sbr.rel (0) target = $region65
    $region64: #{net_forward.1} parent=1 // pred_region
      %129 = dma.done [#allocation12], 4096
    $region65: #{net_forward.1} parent=1 // pred_fallthru
      _
    // Predicated region
    $region66: #{net_forward.1} parent=1 // pred_check
      _
    $region67: #{net_forward.1} parent=1 // pred_check_branch
      %131 = sbr.rel (0) target = $region69
    $region68: #{net_forward.1} parent=1 // pred_region
      %132 = dma.done [#allocation15], 16
    $region69: #{net_forward.1} parent=1 // pred_fallthru
      _
    %v134 = vld [vmem:[%s0] sm:$0xff]
    %v135 = vld [vmem:[%s0 + $0x8] sm:$0xff]
    %v136 = vld [vmem:[%s0 + $0x10] sm:$0xff]
    %v137 = vld [vmem:[%s0 + $0x18] sm:$0xff]
    %v138 = vld [vmem:[%s0 + $0x20] sm:$0xff]
    %v139 = vld [vmem:[%s0 + $0x28] sm:$0xff]
    %v140 = vld [vmem:[%s0 + $0x30] sm:$0xff]
    %v141 = vld [vmem:[%s0 + $0x38] sm:$0xff]
    %v142 = vld [vmem:[%s0 + $0x40] sm:$0xff]
    %v143 = vld [vmem:[%s0 + $0x48] sm:$0xff]
    %v144 = vld [vmem:[%s0 + $0x50] sm:$0xff]
    %v145 = vld [vmem:[%s0 + $0x58] sm:$0xff]
    %v146 = vld [vmem:[%s0 + $0x60] sm:$0xff]
    %v147 = vld [vmem:[%s0 + $0x68] sm:$0xff]
    %v148 = vld [vmem:[%s0 + $0x70] sm:$0xff]
    %v149 = vld [vmem:[%s0 + $0x78] sm:$0xff]
    %v150 = vld [vmem:[%s0 + $0x80] sm:$0xff]
    %v151 = vld [vmem:[%s0 + $0x88] sm:$0xff]
    %v152 = vld [vmem:[%s0 + $0x90] sm:$0xff]
    %v153 = vld [vmem:[%s0 + $0x98] sm:$0xff]
    %v154 = vld [vmem:[%s0 + $0xa0] sm:$0xff]
    %v155 = vld [vmem:[%s0 + $0xa8] sm:$0xff]
    %v156 = vld [vmem:[%s0 + $0xb0] sm:$0xff]
    %v157 = vld [vmem:[%s0 + $0xb8] sm:$0xff]
    %v158 = vld [vmem:[#allocation3] sm:$0xff]
    %v159 = vld [vmem:[#allocation3 + $0x8] sm:$0xff]
    %v160 = vld [vmem:[#allocation3 + $0x10] sm:$0xff]
    %v161 = vld [vmem:[#allocation3 + $0x18] sm:$0xff]
    %v162 = vld [vmem:[#allocation3 + $0x20] sm:$0xff]
    %v163 = vld [vmem:[#allocation3 + $0x28] sm:$0xff]
    %v164 = vld [vmem:[#allocation3 + $0x30] sm:$0xff]
    %v165 = vld [vmem:[#allocation3 + $0x38] sm:$0xff]
    %v166 = vld [vmem:[#allocation3 + $0x40] sm:$0xff]
    %v167 = vld [vmem:[#allocation3 + $0x48] sm:$0xff]
    %v168 = vld [vmem:[#allocation3 + $0x50] sm:$0xff]
    %v169 = vld [vmem:[#allocation3 + $0x58] sm:$0xff]
    %v170 = vld [vmem:[#allocation3 + $0x60] sm:$0xff]
    %v171 = vld [vmem:[#allocation3 + $0x68] sm:$0xff]
    %v172 = vld [vmem:[#allocation3 + $0x70] sm:$0xff]
    %v173 = vld [vmem:[#allocation3 + $0x78] sm:$0xff]
    %v174 = vld [vmem:[#allocation3 + $0x80] sm:$0xff]
    %v175 = vld [vmem:[#allocation3 + $0x88] sm:$0xff]
    %v176 = vld [vmem:[#allocation3 + $0x90] sm:$0xff]
    %v177 = vld [vmem:[#allocation3 + $0x98] sm:$0xff]
    %v178 = vld [vmem:[#allocation3 + $0xa0] sm:$0xff]
    %v179 = vld [vmem:[#allocation3 + $0xa8] sm:$0xff]
    %v180 = vld [vmem:[#allocation3 + $0xb0] sm:$0xff]
    %v181 = vld [vmem:[#allocation3 + $0xb8] sm:$0xff]
    %v182 = vld [vmem:[#allocation3 + $0xc0] sm:$0xff]
    %v183 = vld [vmem:[#allocation3 + $0xc8] sm:$0xff]
    %v184 = vld [vmem:[#allocation3 + $0xd0] sm:$0xff]
    %v185 = vld [vmem:[#allocation3 + $0xd8] sm:$0xff]
    %v186 = vld [vmem:[#allocation3 + $0xe0] sm:$0xff]
    %v187 = vld [vmem:[#allocation3 + $0xe8] sm:$0xff]
    %v188 = vld [vmem:[#allocation3 + $0xf0] sm:$0xff]
    %v189 = vld [vmem:[#allocation3 + $0xf8] sm:$0xff]
    %v190 = vld [vmem:[#allocation3 + $0x100] sm:$0xff]
    %v191 = vld [vmem:[#allocation3 + $0x108] sm:$0xff]
    %v192 = vld [vmem:[#allocation3 + $0x110] sm:$0x33]
    %v193 = vld [vmem:[#allocation3 + $0x118] sm:$0x33]
    %v218 = vunpack.c.l.b16 %v134
    %v219 = vunpack.c.h.b16 %v134
    %v220 = vunpack.c.l.b16 %v135
    %v221 = vunpack.c.h.b16 %v135
    %v222 = vunpack.c.l.b16 %v136
    %v223 = vunpack.c.h.b16 %v136
    %v224 = vunpack.c.l.b16 %v137
    %v225 = vunpack.c.h.b16 %v137
    %v226 = vunpack.c.l.b16 %v138
    %v227 = vunpack.c.h.b16 %v138
    %v228 = vunpack.c.l.b16 %v139
    %v229 = vunpack.c.h.b16 %v139
    %v230 = vunpack.c.l.b16 %v140
    %v231 = vunpack.c.h.b16 %v140
    %v232 = vunpack.c.l.b16 %v141
    %v233 = vunpack.c.h.b16 %v141
    %v234 = vunpack.c.l.b16 %v142
    %v235 = vunpack.c.h.b16 %v142
    %v236 = vunpack.c.l.b16 %v143
    %v237 = vunpack.c.h.b16 %v143
    %v238 = vunpack.c.l.b16 %v144
    %v239 = vunpack.c.h.b16 %v144
    %v240 = vunpack.c.l.b16 %v145
    %v241 = vunpack.c.h.b16 %v145
    %v242 = vunpack.c.l.b16 %v146
    %v243 = vunpack.c.h.b16 %v146
    %v244 = vunpack.c.l.b16 %v147
    %v245 = vunpack.c.h.b16 %v147
    %v246 = vunpack.c.l.b16 %v148
    %v247 = vunpack.c.h.b16 %v148
    %v248 = vunpack.c.l.b16 %v149
    %v249 = vunpack.c.h.b16 %v149
    %v250 = vunpack.c.l.b16 %v150
    %v251 = vunpack.c.h.b16 %v150
    %v252 = vunpack.c.l.b16 %v151
    %v253 = vunpack.c.h.b16 %v151
    %v254 = vunpack.c.l.b16 %v152
    %v255 = vunpack.c.h.b16 %v152
    %v256 = vunpack.c.l.b16 %v153
    %v257 = vunpack.c.h.b16 %v153
    %v258 = vunpack.c.l.b16 %v154
    %v259 = vunpack.c.h.b16 %v154
    %v260 = vunpack.c.l.b16 %v155
    %v261 = vunpack.c.h.b16 %v155
    %v262 = vunpack.c.l.b16 %v156
    %v263 = vunpack.c.h.b16 %v156
    %v264 = vunpack.c.l.b16 %v157
    %v265 = vunpack.c.h.b16 %v157
    %v266 = vpack.c.b16 %v220, %v218
    %v267 = vpack.c.b16 %v221, %v219
    %v268 = vpack.c.b16 %v224, %v222
    %v269 = vpack.c.b16 %v225, %v223
    %v270 = vpack.c.b16 %v228, %v226
    %v271 = vpack.c.b16 %v229, %v227
    %v272 = vpack.c.b16 %v232, %v230
    %v273 = vpack.c.b16 %v233, %v231
    %v274 = vpack.c.b16 %v236, %v234
    %v275 = vpack.c.b16 %v237, %v235
    %v276 = vpack.c.b16 %v240, %v238
    %v277 = vpack.c.b16 %v241, %v239
    %v278 = vpack.c.b16 %v244, %v242
    %v279 = vpack.c.b16 %v245, %v243
    %v280 = vpack.c.b16 %v248, %v246
    %v281 = vpack.c.b16 %v249, %v247
    %v282 = vpack.c.b16 %v252, %v250
    %v283 = vpack.c.b16 %v253, %v251
    %v284 = vpack.c.b16 %v256, %v254
    %v285 = vpack.c.b16 %v257, %v255
    %v286 = vpack.c.b16 %v260, %v258
    %v287 = vpack.c.b16 %v261, %v259
    %v288 = vpack.c.b16 %v264, %v262
    %v289 = vpack.c.b16 %v265, %v263
    %v338 = vunpack.c.l.b16 %v158
    %v339 = vunpack.c.h.b16 %v158
    %v340 = vunpack.c.l.b16 %v159
    %v341 = vunpack.c.h.b16 %v159
    %v342 = vunpack.c.l.b16 %v160
    %v343 = vunpack.c.h.b16 %v160
    %v344 = vunpack.c.l.b16 %v161
    %v345 = vunpack.c.h.b16 %v161
    %v346 = vunpack.c.l.b16 %v162
    %v347 = vunpack.c.h.b16 %v162
    %v348 = vunpack.c.l.b16 %v163
    %v349 = vunpack.c.h.b16 %v163
    %v350 = vunpack.c.l.b16 %v164
    %v351 = vunpack.c.h.b16 %v164
    %v352 = vunpack.c.l.b16 %v165
    %v353 = vunpack.c.h.b16 %v165
    %v354 = vunpack.c.l.b16 %v166
    %v355 = vunpack.c.h.b16 %v166
    %v356 = vunpack.c.l.b16 %v167
    %v357 = vunpack.c.h.b16 %v167
    %v358 = vunpack.c.l.b16 %v168
    %v359 = vunpack.c.h.b16 %v168
    %v360 = vunpack.c.l.b16 %v169
    %v361 = vunpack.c.h.b16 %v169
    %v362 = vunpack.c.l.b16 %v170
    %v363 = vunpack.c.h.b16 %v170
    %v364 = vunpack.c.l.b16 %v171
    %v365 = vunpack.c.h.b16 %v171
    %v366 = vunpack.c.l.b16 %v172
    %v367 = vunpack.c.h.b16 %v172
    %v368 = vunpack.c.l.b16 %v173
    %v369 = vunpack.c.h.b16 %v173
    %v370 = vunpack.c.l.b16 %v174
    %v371 = vunpack.c.h.b16 %v174
    %v372 = vunpack.c.l.b16 %v175
    %v373 = vunpack.c.h.b16 %v175
    %v374 = vunpack.c.l.b16 %v176
    %v375 = vunpack.c.h.b16 %v176
    %v376 = vunpack.c.l.b16 %v177
    %v377 = vunpack.c.h.b16 %v177
    %v378 = vunpack.c.l.b16 %v178
    %v379 = vunpack.c.h.b16 %v178
    %v380 = vunpack.c.l.b16 %v179
    %v381 = vunpack.c.h.b16 %v179
    %v382 = vunpack.c.l.b16 %v180
    %v383 = vunpack.c.h.b16 %v180
    %v384 = vunpack.c.l.b16 %v181
    %v385 = vunpack.c.h.b16 %v181
    %v386 = vunpack.c.l.b16 %v182
    %v387 = vunpack.c.h.b16 %v182
    %v388 = vunpack.c.l.b16 %v183
    %v389 = vunpack.c.h.b16 %v183
    %v390 = vunpack.c.l.b16 %v184
    %v391 = vunpack.c.h.b16 %v184
    %v392 = vunpack.c.l.b16 %v185
    %v393 = vunpack.c.h.b16 %v185
    %v394 = vunpack.c.l.b16 %v186
    %v395 = vunpack.c.h.b16 %v186
    %v396 = vunpack.c.l.b16 %v187
    %v397 = vunpack.c.h.b16 %v187
    %v398 = vunpack.c.l.b16 %v188
    %v399 = vunpack.c.h.b16 %v188
    %v400 = vunpack.c.l.b16 %v189
    %v401 = vunpack.c.h.b16 %v189
    %v402 = vunpack.c.l.b16 %v190
    %v403 = vunpack.c.h.b16 %v190
    %v404 = vunpack.c.l.b16 %v191
    %v405 = vunpack.c.h.b16 %v191
    %v406 = vunpack.c.l.b16 %v192
    %v407 = vunpack.c.h.b16 %v192
    %v408 = vunpack.c.l.b16 %v193
    %v409 = vunpack.c.h.b16 %v193
    %v410 = vpack.c.b16 %v342, %v338
    %v411 = vpack.c.b16 %v343, %v339
    %v412 = vpack.c.b16 %v344, %v340
    %v413 = vpack.c.b16 %v345, %v341
    %v414 = vpack.c.b16 %v350, %v346
    %v415 = vpack.c.b16 %v351, %v347
    %v416 = vpack.c.b16 %v352, %v348
    %v417 = vpack.c.b16 %v353, %v349
    %v418 = vpack.c.b16 %v358, %v354
    %v419 = vpack.c.b16 %v359, %v355
    %v420 = vpack.c.b16 %v360, %v356
    %v421 = vpack.c.b16 %v361, %v357
    %v422 = vpack.c.b16 %v366, %v362
    %v423 = vpack.c.b16 %v367, %v363
    %v424 = vpack.c.b16 %v368, %v364
    %v425 = vpack.c.b16 %v369, %v365
    %v426 = vpack.c.b16 %v374, %v370
    %v427 = vpack.c.b16 %v375, %v371
    %v428 = vpack.c.b16 %v376, %v372
    %v429 = vpack.c.b16 %v377, %v373
    %v430 = vpack.c.b16 %v382, %v378
    %v431 = vpack.c.b16 %v383, %v379
    %v432 = vpack.c.b16 %v384, %v380
    %v433 = vpack.c.b16 %v385, %v381
    %v434 = vpack.c.b16 %v390, %v386
    %v435 = vpack.c.b16 %v391, %v387
    %v436 = vpack.c.b16 %v392, %v388
    %v437 = vpack.c.b16 %v393, %v389
    %v438 = vpack.c.b16 %v398, %v394
    %v439 = vpack.c.b16 %v399, %v395
    %v440 = vpack.c.b16 %v400, %v396
    %v441 = vpack.c.b16 %v401, %v397
    %v442 = vpack.c.b16 %v406, %v402
    %v443 = vpack.c.b16 %v407, %v403
    %v444 = vpack.c.b16 %v408, %v404
    %v445 = vpack.c.b16 %v409, %v405
    %vm478 = vcmask 97280
    %v480 = vsel %vm478, %v267, 0
    %v483 = vsel %vm478, %v269, 0
    %v486 = vsel %vm478, %v271, 0
    %v489 = vsel %vm478, %v273, 0
    %v492 = vsel %vm478, %v275, 0
    %v495 = vsel %vm478, %v277, 0
    %v498 = vsel %vm478, %v279, 0
    %v501 = vsel %vm478, %v281, 0
    %v504 = vsel %vm478, %v283, 0
    %v507 = vsel %vm478, %v285, 0
    %v510 = vsel %vm478, %v287, 0
    %v513 = vsel %vm478, %v289, 0
    %vm515 = vcmask 1045504
    %v517 = vsel %vm515, %v442, 0
    %v520 = vsel %vm515, %v443, 0
    %v523 = vsel %vm515, %v444, 0
    %v526 = vsel %vm515, %v445, 0
    %528 = vmatprep.subr.bf16.mxu0 %v439
    %529 = vmatpush1.bf16.msra.mxu0 %v438
    %530 = vmatprep.subr.bf16.mxu0 %v435
    %531 = vmatpush1.bf16.msra.mxu0 %v434
    %532 = vmatprep.subr.bf16.mxu0 %v431
    %533 = vmatpush1.bf16.msra.mxu0 %v430
    %534 = vmatprep.subr.bf16.mxu0 %v427
    %535 = vmatpush1.bf16.msra.mxu0 %v426
    %536 = vmatprep.subr.bf16.mxu0 %v423
    %537 = vmatpush1.bf16.msra.mxu0 %v422
    %538 = vmatprep.subr.bf16.mxu0 %v419
    %539 = vmatpush1.bf16.msra.mxu0 %v418
    %540 = vmatprep.subr.bf16.mxu0 %v415
    %541 = vmatpush1.bf16.msra.mxu0 %v414
    %542 = vmatprep.subr.bf16.mxu0 %v411
    %543 = vmatpush1.bf16.msra.mxu0 %v410
    %544 = vmatprep.subr.bf16.mxu0 0
    %545 = vmatpush2.bf16.msra.mxu0 0
    %546 = vmatprep.subr.bf16.mxu0 0
    %547 = vmatpush2.bf16.msra.mxu0 0
    %548 = vmatprep.subr.bf16.mxu0 0
    %549 = vmatpush2.bf16.msra.mxu0 0
    %550 = vmatprep.subr.bf16.mxu0 0
    %551 = vmatpush2.bf16.msra.mxu0 0
    %552 = vmatprep.subr.bf16.mxu0 0
    %553 = vmatpush2.bf16.msra.mxu0 0
    %554 = vmatprep.subr.bf16.mxu0 0
    %555 = vmatpush2.bf16.msra.mxu0 0
    %556 = vmatprep.subr.bf16.mxu0 0
    %557 = vmatpush2.bf16.msra.mxu0 0
    %558 = vmatprep.subr.bf16.mxu0 %v520
    %559 = vmatpush2.bf16.msra.mxu0 %v517
    %560 = vmatprep.mubr.bf16.mxu0 %v480
    %561 = vmatmul.mubr.bf16.gmra.mxu0 %v266
    %v562 = vpop.f32.mrf.mxu0
    %v563 = vadd.f32 0.0, %v562
    %v564 = vpop.f32.mrf.mxu0
    %v565 = vadd.f32 0.0, %v564
    %v566 = vpop.f32.mrf.mxu0
    %v567 = vadd.f32 0.0, %v566
    %v568 = vpop.f32.mrf.mxu0
    %v569 = vadd.f32 0.0, %v568
    %570 = vmatprep.mubr.bf16.mxu0 %v483
    %571 = vmatmul.mubr.bf16.gmra.mxu0 %v268
    %v572 = vpop.f32.mrf.mxu0
    %v573 = vadd.f32 0.0, %v572
    %v574 = vpop.f32.mrf.mxu0
    %v575 = vadd.f32 0.0, %v574
    %v576 = vpop.f32.mrf.mxu0
    %v577 = vadd.f32 0.0, %v576
    %v578 = vpop.f32.mrf.mxu0
    %v579 = vadd.f32 0.0, %v578
    %580 = vmatprep.mubr.bf16.mxu0 %v486
    %581 = vmatmul.mubr.bf16.gmra.mxu0 %v270
    %v582 = vpop.f32.mrf.mxu0
    %v583 = vadd.f32 0.0, %v582
    %v584 = vpop.f32.mrf.mxu0
    %v585 = vadd.f32 0.0, %v584
    %v586 = vpop.f32.mrf.mxu0
    %v587 = vadd.f32 0.0, %v586
    %v588 = vpop.f32.mrf.mxu0
    %v589 = vadd.f32 0.0, %v588
    %590 = vmatprep.mubr.bf16.mxu0 %v489
    %591 = vmatmul.mubr.bf16.gmra.mxu0 %v272
    %v592 = vpop.f32.mrf.mxu0
    %v593 = vadd.f32 0.0, %v592
    %v594 = vpop.f32.mrf.mxu0
    %v595 = vadd.f32 0.0, %v594
    %v596 = vpop.f32.mrf.mxu0
    %v597 = vadd.f32 0.0, %v596
    %v598 = vpop.f32.mrf.mxu0
    %v599 = vadd.f32 0.0, %v598
    %600 = vmatprep.mubr.bf16.mxu0 %v492
    %601 = vmatmul.mubr.bf16.gmra.mxu0 %v274
    %v602 = vpop.f32.mrf.mxu0
    %v603 = vadd.f32 0.0, %v602
    %v604 = vpop.f32.mrf.mxu0
    %v605 = vadd.f32 0.0, %v604
    %v606 = vpop.f32.mrf.mxu0
    %v607 = vadd.f32 0.0, %v606
    %v608 = vpop.f32.mrf.mxu0
    %v609 = vadd.f32 0.0, %v608
    %610 = vmatprep.mubr.bf16.mxu0 %v495
    %611 = vmatmul.mubr.bf16.gmra.mxu0 %v276
    %v612 = vpop.f32.mrf.mxu0
    %v613 = vadd.f32 0.0, %v612
    %v614 = vpop.f32.mrf.mxu0
    %v615 = vadd.f32 0.0, %v614
    %v616 = vpop.f32.mrf.mxu0
    %v617 = vadd.f32 0.0, %v616
    %v618 = vpop.f32.mrf.mxu0
    %v619 = vadd.f32 0.0, %v618
    %620 = vmatprep.mubr.bf16.mxu0 %v498
    %621 = vmatmul.mubr.bf16.gmra.mxu0 %v278
    %v622 = vpop.f32.mrf.mxu0
    %v623 = vadd.f32 0.0, %v622
    %v624 = vpop.f32.mrf.mxu0
    %v625 = vadd.f32 0.0, %v624
    %v626 = vpop.f32.mrf.mxu0
    %v627 = vadd.f32 0.0, %v626
    %v628 = vpop.f32.mrf.mxu0
    %v629 = vadd.f32 0.0, %v628
    %630 = vmatprep.mubr.bf16.mxu0 %v501
    %631 = vmatmul.mubr.bf16.gmra.mxu0 %v280
    %v632 = vpop.f32.mrf.mxu0
    %v633 = vadd.f32 0.0, %v632
    %v634 = vpop.f32.mrf.mxu0
    %v635 = vadd.f32 0.0, %v634
    %v636 = vpop.f32.mrf.mxu0
    %v637 = vadd.f32 0.0, %v636
    %v638 = vpop.f32.mrf.mxu0
    %v639 = vadd.f32 0.0, %v638
    %640 = vmatprep.mubr.bf16.mxu0 %v504
    %641 = vmatmul.mubr.bf16.gmra.mxu0 %v282
    %v642 = vpop.f32.mrf.mxu0
    %v643 = vadd.f32 0.0, %v642
    %v644 = vpop.f32.mrf.mxu0
    %v645 = vadd.f32 0.0, %v644
    %v646 = vpop.f32.mrf.mxu0
    %v647 = vadd.f32 0.0, %v646
    %v648 = vpop.f32.mrf.mxu0
    %v649 = vadd.f32 0.0, %v648
    %650 = vmatprep.mubr.bf16.mxu0 %v507
    %651 = vmatmul.mubr.bf16.gmra.mxu0 %v284
    %v652 = vpop.f32.mrf.mxu0
    %v653 = vadd.f32 0.0, %v652
    %v654 = vpop.f32.mrf.mxu0
    %v655 = vadd.f32 0.0, %v654
    %v656 = vpop.f32.mrf.mxu0
    %v657 = vadd.f32 0.0, %v656
    %v658 = vpop.f32.mrf.mxu0
    %v659 = vadd.f32 0.0, %v658
    %660 = vmatprep.mubr.bf16.mxu0 %v510
    %661 = vmatmul.mubr.bf16.gmra.mxu0 %v286
    %v662 = vpop.f32.mrf.mxu0
    %v663 = vadd.f32 0.0, %v662
    %v664 = vpop.f32.mrf.mxu0
    %v665 = vadd.f32 0.0, %v664
    %v666 = vpop.f32.mrf.mxu0
    %v667 = vadd.f32 0.0, %v666
    %v668 = vpop.f32.mrf.mxu0
    %v669 = vadd.f32 0.0, %v668
    %670 = vmatprep.mubr.bf16.mxu0 %v513
    %671 = vmatmul.mubr.bf16.gmra.mxu0 %v288
    %v672 = vpop.f32.mrf.mxu0
    %v673 = vadd.f32 0.0, %v672
    %v674 = vpop.f32.mrf.mxu0
    %v675 = vadd.f32 0.0, %v674
    %v676 = vpop.f32.mrf.mxu0
    %v677 = vadd.f32 0.0, %v676
    %v678 = vpop.f32.mrf.mxu0
    %v679 = vadd.f32 0.0, %v678
    %680 = vdwg.mxu0
    %681 = vmatprep.subr.bf16.mxu0 %v441
    %682 = vmatpush1.bf16.msra.mxu0 %v440
    %683 = vmatprep.subr.bf16.mxu0 %v437
    %684 = vmatpush1.bf16.msra.mxu0 %v436
    %685 = vmatprep.subr.bf16.mxu0 %v433
    %686 = vmatpush1.bf16.msra.mxu0 %v432
    %687 = vmatprep.subr.bf16.mxu0 %v429
    %688 = vmatpush1.bf16.msra.mxu0 %v428
    %689 = vmatprep.subr.bf16.mxu0 %v425
    %690 = vmatpush1.bf16.msra.mxu0 %v424
    %691 = vmatprep.subr.bf16.mxu0 %v421
    %692 = vmatpush1.bf16.msra.mxu0 %v420
    %693 = vmatprep.subr.bf16.mxu0 %v417
    %694 = vmatpush1.bf16.msra.mxu0 %v416
    %695 = vmatprep.subr.bf16.mxu0 %v413
    %696 = vmatpush1.bf16.msra.mxu0 %v412
    %697 = vmatprep.subr.bf16.mxu0 0
    %698 = vmatpush2.bf16.msra.mxu0 0
    %699 = vmatprep.subr.bf16.mxu0 0
    %700 = vmatpush2.bf16.msra.mxu0 0
    %701 = vmatprep.subr.bf16.mxu0 0
    %702 = vmatpush2.bf16.msra.mxu0 0
    %703 = vmatprep.subr.bf16.mxu0 0
    %704 = vmatpush2.bf16.msra.mxu0 0
    %705 = vmatprep.subr.bf16.mxu0 0
    %706 = vmatpush2.bf16.msra.mxu0 0
    %707 = vmatprep.subr.bf16.mxu0 0
    %708 = vmatpush2.bf16.msra.mxu0 0
    %709 = vmatprep.subr.bf16.mxu0 0
    %710 = vmatpush2.bf16.msra.mxu0 0
    %711 = vmatprep.subr.bf16.mxu0 %v526
    %712 = vmatpush2.bf16.msra.mxu0 %v523
    %713 = vmatprep.mubr.bf16.mxu0 %v480
    %714 = vmatmul.mubr.bf16.gmra.mxu0 %v266
    %v715 = vpop.f32.mrf.mxu0
    %v716 = vadd.f32 0.0, %v715
    %v717 = vpop.f32.mrf.mxu0
    %v718 = vadd.f32 0.0, %v717
    %v719 = vpop.f32.mrf.mxu0
    %v720 = vadd.f32 0.0, %v719
    %v721 = vpop.f32.mrf.mxu0
    %v722 = vadd.f32 0.0, %v721
    %723 = vmatprep.mubr.bf16.mxu0 %v483
    %724 = vmatmul.mubr.bf16.gmra.mxu0 %v268
    %v725 = vpop.f32.mrf.mxu0
    %v726 = vadd.f32 0.0, %v725
    %v727 = vpop.f32.mrf.mxu0
    %v728 = vadd.f32 0.0, %v727
    %v729 = vpop.f32.mrf.mxu0
    %v730 = vadd.f32 0.0, %v729
    %v731 = vpop.f32.mrf.mxu0
    %v732 = vadd.f32 0.0, %v731
    %733 = vmatprep.mubr.bf16.mxu0 %v486
    %734 = vmatmul.mubr.bf16.gmra.mxu0 %v270
    %v735 = vpop.f32.mrf.mxu0
    %v736 = vadd.f32 0.0, %v735
    %v737 = vpop.f32.mrf.mxu0
    %v738 = vadd.f32 0.0, %v737
    %v739 = vpop.f32.mrf.mxu0
    %v740 = vadd.f32 0.0, %v739
    %v741 = vpop.f32.mrf.mxu0
    %v742 = vadd.f32 0.0, %v741
    %743 = vmatprep.mubr.bf16.mxu0 %v489
    %744 = vmatmul.mubr.bf16.gmra.mxu0 %v272
    %v745 = vpop.f32.mrf.mxu0
    %v746 = vadd.f32 0.0, %v745
    %v747 = vpop.f32.mrf.mxu0
    %v748 = vadd.f32 0.0, %v747
    %v749 = vpop.f32.mrf.mxu0
    %v750 = vadd.f32 0.0, %v749
    %v751 = vpop.f32.mrf.mxu0
    %v752 = vadd.f32 0.0, %v751
    %753 = vmatprep.mubr.bf16.mxu0 %v492
    %754 = vmatmul.mubr.bf16.gmra.mxu0 %v274
    %v755 = vpop.f32.mrf.mxu0
    %v756 = vadd.f32 0.0, %v755
    %v757 = vpop.f32.mrf.mxu0
    %v758 = vadd.f32 0.0, %v757
    %v759 = vpop.f32.mrf.mxu0
    %v760 = vadd.f32 0.0, %v759
    %v761 = vpop.f32.mrf.mxu0
    %v762 = vadd.f32 0.0, %v761
    %763 = vmatprep.mubr.bf16.mxu0 %v495
    %764 = vmatmul.mubr.bf16.gmra.mxu0 %v276
    %v765 = vpop.f32.mrf.mxu0
    %v766 = vadd.f32 0.0, %v765
    %v767 = vpop.f32.mrf.mxu0
    %v768 = vadd.f32 0.0, %v767
    %v769 = vpop.f32.mrf.mxu0
    %v770 = vadd.f32 0.0, %v769
    %v771 = vpop.f32.mrf.mxu0
    %v772 = vadd.f32 0.0, %v771
    %773 = vmatprep.mubr.bf16.mxu0 %v498
    %774 = vmatmul.mubr.bf16.gmra.mxu0 %v278
    %v775 = vpop.f32.mrf.mxu0
    %v776 = vadd.f32 0.0, %v775
    %v777 = vpop.f32.mrf.mxu0
    %v778 = vadd.f32 0.0, %v777
    %v779 = vpop.f32.mrf.mxu0
    %v780 = vadd.f32 0.0, %v779
    %v781 = vpop.f32.mrf.mxu0
    %v782 = vadd.f32 0.0, %v781
    %783 = vmatprep.mubr.bf16.mxu0 %v501
    %784 = vmatmul.mubr.bf16.gmra.mxu0 %v280
    %v785 = vpop.f32.mrf.mxu0
    %v786 = vadd.f32 0.0, %v785
    %v787 = vpop.f32.mrf.mxu0
    %v788 = vadd.f32 0.0, %v787
    %v789 = vpop.f32.mrf.mxu0
    %v790 = vadd.f32 0.0, %v789
    %v791 = vpop.f32.mrf.mxu0
    %v792 = vadd.f32 0.0, %v791
    %793 = vmatprep.mubr.bf16.mxu0 %v504
    %794 = vmatmul.mubr.bf16.gmra.mxu0 %v282
    %v795 = vpop.f32.mrf.mxu0
    %v796 = vadd.f32 0.0, %v795
    %v797 = vpop.f32.mrf.mxu0
    %v798 = vadd.f32 0.0, %v797
    %v799 = vpop.f32.mrf.mxu0
    %v800 = vadd.f32 0.0, %v799
    %v801 = vpop.f32.mrf.mxu0
    %v802 = vadd.f32 0.0, %v801
    %803 = vmatprep.mubr.bf16.mxu0 %v507
    %804 = vmatmul.mubr.bf16.gmra.mxu0 %v284
    %v805 = vpop.f32.mrf.mxu0
    %v806 = vadd.f32 0.0, %v805
    %v807 = vpop.f32.mrf.mxu0
    %v808 = vadd.f32 0.0, %v807
    %v809 = vpop.f32.mrf.mxu0
    %v810 = vadd.f32 0.0, %v809
    %v811 = vpop.f32.mrf.mxu0
    %v812 = vadd.f32 0.0, %v811
    %813 = vmatprep.mubr.bf16.mxu0 %v510
    %814 = vmatmul.mubr.bf16.gmra.mxu0 %v286
    %v815 = vpop.f32.mrf.mxu0
    %v816 = vadd.f32 0.0, %v815
    %v817 = vpop.f32.mrf.mxu0
    %v818 = vadd.f32 0.0, %v817
    %v819 = vpop.f32.mrf.mxu0
    %v820 = vadd.f32 0.0, %v819
    %v821 = vpop.f32.mrf.mxu0
    %v822 = vadd.f32 0.0, %v821
    %823 = vmatprep.mubr.bf16.mxu0 %v513
    %824 = vmatmul.mubr.bf16.gmra.mxu0 %v288
    %v825 = vpop.f32.mrf.mxu0
    %v826 = vadd.f32 0.0, %v825
    %v827 = vpop.f32.mrf.mxu0
    %v828 = vadd.f32 0.0, %v827
    %v829 = vpop.f32.mrf.mxu0
    %v830 = vadd.f32 0.0, %v829
    %v831 = vpop.f32.mrf.mxu0
    %v832 = vadd.f32 0.0, %v831
    %833 = vdwg.mxu0
    %v834 = vmax.f32 %v563, %v716
    %v835 = vmax.f32 %v565, %v718
    %v836 = vmax.f32 %v567, %v720
    %v837 = vmax.f32 %v569, %v722
    %v838 = vmax.f32 %v573, %v726
    %v839 = vmax.f32 %v575, %v728
    %v840 = vmax.f32 %v577, %v730
    %v841 = vmax.f32 %v579, %v732
    %v842 = vmax.f32 %v583, %v736
    %v843 = vmax.f32 %v585, %v738
    %v844 = vmax.f32 %v587, %v740
    %v845 = vmax.f32 %v589, %v742
    %v846 = vmax.f32 %v593, %v746
    %v847 = vmax.f32 %v595, %v748
    %v848 = vmax.f32 %v597, %v750
    %v849 = vmax.f32 %v599, %v752
    %v850 = vmax.f32 %v603, %v756
    %v851 = vmax.f32 %v605, %v758
    %v852 = vmax.f32 %v607, %v760
    %v853 = vmax.f32 %v609, %v762
    %v854 = vmax.f32 %v613, %v766
    %v855 = vmax.f32 %v615, %v768
    %v856 = vmax.f32 %v617, %v770
    %v857 = vmax.f32 %v619, %v772
    %v858 = vmax.f32 %v623, %v776
    %v859 = vmax.f32 %v625, %v778
    %v860 = vmax.f32 %v627, %v780
    %v861 = vmax.f32 %v629, %v782
    %v862 = vmax.f32 %v633, %v786
    %v863 = vmax.f32 %v635, %v788
    %v864 = vmax.f32 %v637, %v790
    %v865 = vmax.f32 %v639, %v792
    %v866 = vmax.f32 %v643, %v796
    %v867 = vmax.f32 %v645, %v798
    %v868 = vmax.f32 %v647, %v800
    %v869 = vmax.f32 %v649, %v802
    %v870 = vmax.f32 %v653, %v806
    %v871 = vmax.f32 %v655, %v808
    %v872 = vmax.f32 %v657, %v810
    %v873 = vmax.f32 %v659, %v812
    %v874 = vmax.f32 %v663, %v816
    %v875 = vmax.f32 %v665, %v818
    %v876 = vmax.f32 %v667, %v820
    %v877 = vmax.f32 %v669, %v822
    %v878 = vmax.f32 %v673, %v826
    %v879 = vmax.f32 %v675, %v828
    %v880 = vmax.f32 %v677, %v830
    %v881 = vmax.f32 %v679, %v832
    %v882 = vld [vmem:[#allocation5] sm:$0x3]
    %v884 = vlaneseq
    %v885 = vshrl.u32 %v884, 7
    %v886 = vsub.s32 0, %v885
    %v887 = vrot.slane %v882, %v886
    %v888 = vlaneseq
    %v889 = vshrl.u32 %v888, 7
    %v890 = vsub.s32 1, %v889
    %v891 = vrot.slane %v882, %v890
    %v894 = vadd.f32 %v834, %v887
    %v895 = vadd.f32 %v835, %v891
    %v896 = vadd.f32 %v836, %v887
    %v897 = vadd.f32 %v837, %v891
    %v898 = vadd.f32 %v838, %v887
    %v899 = vadd.f32 %v839, %v891
    %v900 = vadd.f32 %v840, %v887
    %v901 = vadd.f32 %v841, %v891
    %v902 = vadd.f32 %v842, %v887
    %v903 = vadd.f32 %v843, %v891
    %v904 = vadd.f32 %v844, %v887
    %v905 = vadd.f32 %v845, %v891
    %v906 = vadd.f32 %v846, %v887
    %v907 = vadd.f32 %v847, %v891
    %v908 = vadd.f32 %v848, %v887
    %v909 = vadd.f32 %v849, %v891
    %v910 = vadd.f32 %v850, %v887
    %v911 = vadd.f32 %v851, %v891
    %v912 = vadd.f32 %v852, %v887
    %v913 = vadd.f32 %v853, %v891
    %v914 = vadd.f32 %v854, %v887
    %v915 = vadd.f32 %v855, %v891
    %v916 = vadd.f32 %v856, %v887
    %v917 = vadd.f32 %v857, %v891
    %v918 = vadd.f32 %v858, %v887
    %v919 = vadd.f32 %v859, %v891
    %v920 = vadd.f32 %v860, %v887
    %v921 = vadd.f32 %v861, %v891
    %v922 = vadd.f32 %v862, %v887
    %v923 = vadd.f32 %v863, %v891
    %v924 = vadd.f32 %v864, %v887
    %v925 = vadd.f32 %v865, %v891
    %v926 = vadd.f32 %v866, %v887
    %v927 = vadd.f32 %v867, %v891
    %v928 = vadd.f32 %v868, %v887
    %v929 = vadd.f32 %v869, %v891
    %v930 = vadd.f32 %v870, %v887
    %v931 = vadd.f32 %v871, %v891
    %v932 = vadd.f32 %v872, %v887
    %v933 = vadd.f32 %v873, %v891
    %v934 = vadd.f32 %v874, %v887
    %v935 = vadd.f32 %v875, %v891
    %v936 = vadd.f32 %v876, %v887
    %v937 = vadd.f32 %v877, %v891
    %v938 = vadd.f32 %v878, %v887
    %v939 = vadd.f32 %v879, %v891
    %v940 = vadd.f32 %v880, %v887
    %v941 = vadd.f32 %v881, %v891
    %v942 = vmax.f32 %v894, 0.0
    %v943 = vmax.f32 %v895, 0.0
    %v944 = vmax.f32 %v896, 0.0
    %v945 = vmax.f32 %v897, 0.0
    %v946 = vmax.f32 %v898, 0.0
    %v947 = vmax.f32 %v899, 0.0
    %v948 = vmax.f32 %v900, 0.0
    %v949 = vmax.f32 %v901, 0.0
    %v950 = vmax.f32 %v902, 0.0
    %v951 = vmax.f32 %v903, 0.0
    %v952 = vmax.f32 %v904, 0.0
    %v953 = vmax.f32 %v905, 0.0
    %v954 = vmax.f32 %v906, 0.0
    %v955 = vmax.f32 %v907, 0.0
    %v956 = vmax.f32 %v908, 0.0
    %v957 = vmax.f32 %v909, 0.0
    %v958 = vmax.f32 %v910, 0.0
    %v959 = vmax.f32 %v911, 0.0
    %v960 = vmax.f32 %v912, 0.0
    %v961 = vmax.f32 %v913, 0.0
    %v962 = vmax.f32 %v914, 0.0
    %v963 = vmax.f32 %v915, 0.0
    %v964 = vmax.f32 %v916, 0.0
    %v965 = vmax.f32 %v917, 0.0
    %v966 = vmax.f32 %v918, 0.0
    %v967 = vmax.f32 %v919, 0.0
    %v968 = vmax.f32 %v920, 0.0
    %v969 = vmax.f32 %v921, 0.0
    %v970 = vmax.f32 %v922, 0.0
    %v971 = vmax.f32 %v923, 0.0
    %v972 = vmax.f32 %v924, 0.0
    %v973 = vmax.f32 %v925, 0.0
    %v974 = vmax.f32 %v926, 0.0
    %v975 = vmax.f32 %v927, 0.0
    %v976 = vmax.f32 %v928, 0.0
    %v977 = vmax.f32 %v929, 0.0
    %v978 = vmax.f32 %v930, 0.0
    %v979 = vmax.f32 %v931, 0.0
    %v980 = vmax.f32 %v932, 0.0
    %v981 = vmax.f32 %v933, 0.0
    %v982 = vmax.f32 %v934, 0.0
    %v983 = vmax.f32 %v935, 0.0
    %v984 = vmax.f32 %v936, 0.0
    %v985 = vmax.f32 %v937, 0.0
    %v986 = vmax.f32 %v938, 0.0
    %v987 = vmax.f32 %v939, 0.0
    %v988 = vmax.f32 %v940, 0.0
    %v989 = vmax.f32 %v941, 0.0
    %v990 = vmax.f32 %v942, %v944
    %v991 = vmax.f32 %v943, %v945
    %v992 = vmax.f32 %v946, %v948
    %v993 = vmax.f32 %v947, %v949
    %v994 = vmax.f32 %v950, %v952
    %v995 = vmax.f32 %v951, %v953
    %v996 = vmax.f32 %v954, %v956
    %v997 = vmax.f32 %v955, %v957
    %v998 = vmax.f32 %v958, %v960
    %v999 = vmax.f32 %v959, %v961
    %v1000 = vmax.f32 %v962, %v964
    %v1001 = vmax.f32 %v963, %v965
    %v1002 = vmax.f32 %v966, %v968
    %v1003 = vmax.f32 %v967, %v969
    %v1004 = vmax.f32 %v970, %v972
    %v1005 = vmax.f32 %v971, %v973
    %v1006 = vmax.f32 %v974, %v976
    %v1007 = vmax.f32 %v975, %v977
    %v1008 = vmax.f32 %v978, %v980
    %v1009 = vmax.f32 %v979, %v981
    %v1010 = vmax.f32 %v982, %v984
    %v1011 = vmax.f32 %v983, %v985
    %v1012 = vmax.f32 %v986, %v988
    %v1013 = vmax.f32 %v987, %v989
    %v1014 = vpack.c.bf16 %v990, %v990
    %v1015 = vpack.c.bf16 %v991, %v991
    %v1016 = vpack.c.bf16 %v992, %v992
    %v1017 = vpack.c.bf16 %v993, %v993
    %v1018 = vpack.c.bf16 %v994, %v994
    %v1019 = vpack.c.bf16 %v995, %v995
    %v1020 = vpack.c.bf16 %v996, %v996
    %v1021 = vpack.c.bf16 %v997, %v997
    %v1022 = vpack.c.bf16 %v998, %v998
    %v1023 = vpack.c.bf16 %v999, %v999
    %v1024 = vpack.c.bf16 %v1000, %v1000
    %v1025 = vpack.c.bf16 %v1001, %v1001
    %v1026 = vpack.c.bf16 %v1002, %v1002
    %v1027 = vpack.c.bf16 %v1003, %v1003
    %v1028 = vpack.c.bf16 %v1004, %v1004
    %v1029 = vpack.c.bf16 %v1005, %v1005
    %v1030 = vpack.c.bf16 %v1006, %v1006
    %v1031 = vpack.c.bf16 %v1007, %v1007
    %v1032 = vpack.c.bf16 %v1008, %v1008
    %v1033 = vpack.c.bf16 %v1009, %v1009
    %v1034 = vpack.c.bf16 %v1010, %v1010
    %v1035 = vpack.c.bf16 %v1011, %v1011
    %v1036 = vpack.c.bf16 %v1012, %v1012
    %v1037 = vpack.c.bf16 %v1013, %v1013
    %v1062 = vunpack.c.l.b16 %v1014
    %v1063 = vunpack.c.l.b16 %v1015
    %v1064 = vunpack.c.l.b16 %v1016
    %v1065 = vunpack.c.l.b16 %v1017
    %v1066 = vunpack.c.l.b16 %v1018
    %v1067 = vunpack.c.l.b16 %v1019
    %v1068 = vunpack.c.l.b16 %v1020
    %v1069 = vunpack.c.l.b16 %v1021
    %v1070 = vunpack.c.l.b16 %v1022
    %v1071 = vunpack.c.l.b16 %v1023
    %v1072 = vunpack.c.l.b16 %v1024
    %v1073 = vunpack.c.l.b16 %v1025
    %v1074 = vunpack.c.l.b16 %v1026
    %v1075 = vunpack.c.l.b16 %v1027
    %v1076 = vunpack.c.l.b16 %v1028
    %v1077 = vunpack.c.l.b16 %v1029
    %v1078 = vunpack.c.l.b16 %v1030
    %v1079 = vunpack.c.l.b16 %v1031
    %v1080 = vunpack.c.l.b16 %v1032
    %v1081 = vunpack.c.l.b16 %v1033
    %v1082 = vunpack.c.l.b16 %v1034
    %v1083 = vunpack.c.l.b16 %v1035
    %v1084 = vunpack.c.l.b16 %v1036
    %v1085 = vunpack.c.l.b16 %v1037
    %v1086 = vpack.c.b16 %v1063, %v1062
    %v1087 = vpack.c.b16 %v1065, %v1064
    %v1088 = vpack.c.b16 %v1067, %v1066
    %v1089 = vpack.c.b16 %v1069, %v1068
    %v1090 = vpack.c.b16 %v1071, %v1070
    %v1091 = vpack.c.b16 %v1073, %v1072
    %v1092 = vpack.c.b16 %v1075, %v1074
    %v1093 = vpack.c.b16 %v1077, %v1076
    %v1094 = vpack.c.b16 %v1079, %v1078
    %v1095 = vpack.c.b16 %v1081, %v1080
    %v1096 = vpack.c.b16 %v1083, %v1082
    %v1097 = vpack.c.b16 %v1085, %v1084
    %1110 = vst [vmem:[#allocation2] sm:$0xff] %v1086
    %1111 = vst [vmem:[#allocation2 + $0x8] sm:$0xff] %v1087
    %1112 = vst [vmem:[#allocation2 + $0x10] sm:$0xff] %v1088
    %1113 = vst [vmem:[#allocation2 + $0x18] sm:$0xff] %v1089
    %1114 = vst [vmem:[#allocation2 + $0x20] sm:$0xff] %v1090
    %1115 = vst [vmem:[#allocation2 + $0x28] sm:$0xff] %v1091
    %1116 = vst [vmem:[#allocation2 + $0x30] sm:$0xff] %v1092
    %1117 = vst [vmem:[#allocation2 + $0x38] sm:$0xff] %v1093
    %1118 = vst [vmem:[#allocation2 + $0x40] sm:$0xff] %v1094
    %1119 = vst [vmem:[#allocation2 + $0x48] sm:$0xff] %v1095
    %1120 = vst [vmem:[#allocation2 + $0x50] sm:$0xff] %v1096
    %1121 = vst [vmem:[#allocation2 + $0x58] sm:$0xff] %v1097
    %v1122 = vld [vmem:[#allocation2] sm:$0xff]
    %v1123 = vld [vmem:[#allocation2 + $0x8] sm:$0xff]
    %v1124 = vld [vmem:[#allocation2 + $0x10] sm:$0xff]
    %v1125 = vld [vmem:[#allocation2 + $0x18] sm:$0xff]
    %v1126 = vld [vmem:[#allocation2 + $0x20] sm:$0xff]
    %v1127 = vld [vmem:[#allocation2 + $0x28] sm:$0xff]
    %v1128 = vld [vmem:[#allocation2 + $0x30] sm:$0xff]
    %v1129 = vld [vmem:[#allocation2 + $0x38] sm:$0xff]
    %s1130 = scalar_lea.vmem [#allocation2], 8
    %v1131 = vld [vmem:[%s1130] sm:$0xff]
    %v1132 = vld [vmem:[%s1130 + $0x8] sm:$0xff]
    %v1133 = vld [vmem:[%s1130 + $0x10] sm:$0xff]
    %v1134 = vld [vmem:[%s1130 + $0x18] sm:$0xff]
    %v1135 = vld [vmem:[%s1130 + $0x20] sm:$0xff]
    %v1136 = vld [vmem:[%s1130 + $0x28] sm:$0xff]
    %v1137 = vld [vmem:[%s1130 + $0x30] sm:$0xff]
    %v1138 = vld [vmem:[%s1130 + $0x38] sm:$0xff]
    %s1139 = scalar_lea.vmem [#allocation2], 16
    %v1140 = vld [vmem:[%s1139] sm:$0xff]
    %v1141 = vld [vmem:[%s1139 + $0x8] sm:$0xff]
    %v1142 = vld [vmem:[%s1139 + $0x10] sm:$0xff]
    %v1143 = vld [vmem:[%s1139 + $0x18] sm:$0xff]
    %v1144 = vld [vmem:[%s1139 + $0x20] sm:$0xff]
    %v1145 = vld [vmem:[%s1139 + $0x28] sm:$0xff]
    %v1146 = vld [vmem:[%s1139 + $0x30] sm:$0xff]
    %v1147 = vld [vmem:[%s1139 + $0x38] sm:$0xff]
    %s1148 = scalar_lea.vmem [#allocation2], 24
    %v1149 = vld [vmem:[%s1148] sm:$0xff]
    %v1150 = vld [vmem:[%s1148 + $0x8] sm:$0xff]
    %v1151 = vld [vmem:[%s1148 + $0x10] sm:$0xff]
    %v1152 = vld [vmem:[%s1148 + $0x18] sm:$0xff]
    %v1153 = vld [vmem:[%s1148 + $0x20] sm:$0xff]
    %v1154 = vld [vmem:[%s1148 + $0x28] sm:$0xff]
    %v1155 = vld [vmem:[%s1148 + $0x30] sm:$0xff]
    %v1156 = vld [vmem:[%s1148 + $0x38] sm:$0xff]
    %s1157 = scalar_lea.vmem [#allocation2], 32
    %v1158 = vld [vmem:[%s1157] sm:$0xff]
    %v1159 = vld [vmem:[%s1157 + $0x8] sm:$0xff]
    %v1160 = vld [vmem:[%s1157 + $0x10] sm:$0xff]
    %v1161 = vld [vmem:[%s1157 + $0x18] sm:$0xff]
    %v1162 = vld [vmem:[%s1157 + $0x20] sm:$0xff]
    %v1163 = vld [vmem:[%s1157 + $0x28] sm:$0xff]
    %v1164 = vld [vmem:[%s1157 + $0x30] sm:$0xff]
    %v1165 = vld [vmem:[%s1157 + $0x38] sm:$0xff]
    %v1174 = vunpack.c.l.b16 %v1122
    %v1175 = vunpack.c.h.b16 %v1122
    %v1176 = vunpack.c.l.b16 %v1123
    %v1177 = vunpack.c.h.b16 %v1123
    %v1178 = vunpack.c.l.b16 %v1124
    %v1179 = vunpack.c.h.b16 %v1124
    %v1180 = vunpack.c.l.b16 %v1125
    %v1181 = vunpack.c.h.b16 %v1125
    %v1182 = vunpack.c.l.b16 %v1126
    %v1183 = vunpack.c.h.b16 %v1126
    %v1184 = vunpack.c.l.b16 %v1127
    %v1185 = vunpack.c.h.b16 %v1127
    %v1186 = vunpack.c.l.b16 %v1128
    %v1187 = vunpack.c.h.b16 %v1128
    %v1188 = vunpack.c.l.b16 %v1129
    %v1189 = vunpack.c.h.b16 %v1129
    %v1198 = vunpack.c.l.b16 %v1131
    %v1199 = vunpack.c.h.b16 %v1131
    %v1200 = vunpack.c.l.b16 %v1132
    %v1201 = vunpack.c.h.b16 %v1132
    %v1202 = vunpack.c.l.b16 %v1133
    %v1203 = vunpack.c.h.b16 %v1133
    %v1204 = vunpack.c.l.b16 %v1134
    %v1205 = vunpack.c.h.b16 %v1134
    %v1206 = vunpack.c.l.b16 %v1135
    %v1207 = vunpack.c.h.b16 %v1135
    %v1208 = vunpack.c.l.b16 %v1136
    %v1209 = vunpack.c.h.b16 %v1136
    %v1210 = vunpack.c.l.b16 %v1137
    %v1211 = vunpack.c.h.b16 %v1137
    %v1212 = vunpack.c.l.b16 %v1138
    %v1213 = vunpack.c.h.b16 %v1138
    %v1222 = vunpack.c.l.b16 %v1140
    %v1223 = vunpack.c.h.b16 %v1140
    %v1224 = vunpack.c.l.b16 %v1141
    %v1225 = vunpack.c.h.b16 %v1141
    %v1226 = vunpack.c.l.b16 %v1142
    %v1227 = vunpack.c.h.b16 %v1142
    %v1228 = vunpack.c.l.b16 %v1143
    %v1229 = vunpack.c.h.b16 %v1143
    %v1230 = vunpack.c.l.b16 %v1144
    %v1231 = vunpack.c.h.b16 %v1144
    %v1232 = vunpack.c.l.b16 %v1145
    %v1233 = vunpack.c.h.b16 %v1145
    %v1234 = vunpack.c.l.b16 %v1146
    %v1235 = vunpack.c.h.b16 %v1146
    %v1236 = vunpack.c.l.b16 %v1147
    %v1237 = vunpack.c.h.b16 %v1147
    %v1246 = vunpack.c.l.b16 %v1149
    %v1247 = vunpack.c.h.b16 %v1149
    %v1248 = vunpack.c.l.b16 %v1150
    %v1249 = vunpack.c.h.b16 %v1150
    %v1250 = vunpack.c.l.b16 %v1151
    %v1251 = vunpack.c.h.b16 %v1151
    %v1252 = vunpack.c.l.b16 %v1152
    %v1253 = vunpack.c.h.b16 %v1152
    %v1254 = vunpack.c.l.b16 %v1153
    %v1255 = vunpack.c.h.b16 %v1153
    %v1256 = vunpack.c.l.b16 %v1154
    %v1257 = vunpack.c.h.b16 %v1154
    %v1258 = vunpack.c.l.b16 %v1155
    %v1259 = vunpack.c.h.b16 %v1155
    %v1260 = vunpack.c.l.b16 %v1156
    %v1261 = vunpack.c.h.b16 %v1156
    %v1270 = vunpack.c.l.b16 %v1158
    %v1271 = vunpack.c.h.b16 %v1158
    %v1272 = vunpack.c.l.b16 %v1159
    %v1273 = vunpack.c.h.b16 %v1159
    %v1274 = vunpack.c.l.b16 %v1160
    %v1275 = vunpack.c.h.b16 %v1160
    %v1276 = vunpack.c.l.b16 %v1161
    %v1277 = vunpack.c.h.b16 %v1161
    %v1278 = vunpack.c.l.b16 %v1162
    %v1279 = vunpack.c.h.b16 %v1162
    %v1280 = vunpack.c.l.b16 %v1163
    %v1281 = vunpack.c.h.b16 %v1163
    %v1282 = vunpack.c.l.b16 %v1164
    %v1283 = vunpack.c.h.b16 %v1164
    %v1284 = vunpack.c.l.b16 %v1165
    %v1285 = vunpack.c.h.b16 %v1165
    %v1286 = vld [vmem:[#allocation7] sm:$0xff]
    %v1287 = vld [vmem:[#allocation7 + $0x8] sm:$0xff]
    %v1288 = vld [vmem:[#allocation7 + $0x10] sm:$0xff]
    %v1289 = vld [vmem:[#allocation7 + $0x18] sm:$0xff]
    %v1290 = vld [vmem:[#allocation7 + $0x20] sm:$0xff]
    %v1291 = vld [vmem:[#allocation7 + $0x28] sm:$0xff]
    %v1292 = vld [vmem:[#allocation7 + $0x30] sm:$0xff]
    %v1293 = vld [vmem:[#allocation7 + $0x38] sm:$0xff]
    %v1294 = vld [vmem:[#allocation7 + $0x40] sm:$0xff]
    %v1295 = vld [vmem:[#allocation7 + $0x48] sm:$0xff]
    %v1296 = vld [vmem:[#allocation7 + $0x50] sm:$0xff]
    %v1297 = vld [vmem:[#allocation7 + $0x58] sm:$0xff]
    %v1298 = vld [vmem:[#allocation7 + $0x60] sm:$0xff]
    %v1299 = vld [vmem:[#allocation7 + $0x68] sm:$0xff]
    %v1300 = vld [vmem:[#allocation7 + $0x70] sm:$0xff]
    %v1301 = vld [vmem:[#allocation7 + $0x78] sm:$0xff]
    %v1302 = vld [vmem:[#allocation7 + $0x80] sm:$0xff]
    %v1303 = vld [vmem:[#allocation7 + $0x88] sm:$0xff]
    %v1304 = vld [vmem:[#allocation7 + $0x90] sm:$0xff]
    %v1305 = vld [vmem:[#allocation7 + $0x98] sm:$0xff]
    %v1306 = vld [vmem:[#allocation7 + $0xa0] sm:$0xff]
    %v1307 = vld [vmem:[#allocation7 + $0xa8] sm:$0xff]
    %v1308 = vld [vmem:[#allocation7 + $0xb0] sm:$0xff]
    %v1309 = vld [vmem:[#allocation7 + $0xb8] sm:$0xff]
    %v1310 = vld [vmem:[#allocation7 + $0xc0] sm:$0xff]
    %v1311 = vld [vmem:[#allocation7 + $0xc8] sm:$0xff]
    %v1312 = vld [vmem:[#allocation7 + $0xd0] sm:$0xff]
    %v1313 = vld [vmem:[#allocation7 + $0xd8] sm:$0xff]
    %v1314 = vld [vmem:[#allocation7 + $0xe0] sm:$0xff]
    %v1315 = vld [vmem:[#allocation7 + $0xe8] sm:$0xff]
    %v1316 = vld [vmem:[#allocation7 + $0xf0] sm:$0xff]
    %v1317 = vld [vmem:[#allocation7 + $0xf8] sm:$0xff]
    %v1318 = vld [vmem:[#allocation7 + $0x100] sm:$0xff]
    %v1319 = vld [vmem:[#allocation7 + $0x108] sm:$0xff]
    %v1320 = vld [vmem:[#allocation7 + $0x110] sm:$0xff]
    %v1321 = vld [vmem:[#allocation7 + $0x118] sm:$0xff]
    %v1322 = vld [vmem:[#allocation7 + $0x120] sm:$0xff]
    %v1323 = vld [vmem:[#allocation7 + $0x128] sm:$0xff]
    %v1324 = vld [vmem:[#allocation7 + $0x130] sm:$0xff]
    %v1325 = vld [vmem:[#allocation7 + $0x138] sm:$0xff]
    %v1326 = vld [vmem:[#allocation7 + $0x140] sm:$0xff]
    %v1327 = vld [vmem:[#allocation7 + $0x148] sm:$0xff]
    %v1328 = vld [vmem:[#allocation7 + $0x150] sm:$0xff]
    %v1329 = vld [vmem:[#allocation7 + $0x158] sm:$0xff]
    %v1330 = vld [vmem:[#allocation7 + $0x160] sm:$0xff]
    %v1331 = vld [vmem:[#allocation7 + $0x168] sm:$0xff]
    %v1332 = vld [vmem:[#allocation7 + $0x170] sm:$0xff]
    %v1333 = vld [vmem:[#allocation7 + $0x178] sm:$0xff]
    %v1334 = vld [vmem:[#allocation7 + $0x180] sm:$0xff]
    %v1335 = vld [vmem:[#allocation7 + $0x188] sm:$0xff]
    %v1336 = vld [vmem:[#allocation7 + $0x190] sm:$0xff]
    %v1337 = vld [vmem:[#allocation7 + $0x198] sm:$0xff]
    %v1338 = vld [vmem:[#allocation7 + $0x1a0] sm:$0xff]
    %v1339 = vld [vmem:[#allocation7 + $0x1a8] sm:$0xff]
    %v1340 = vld [vmem:[#allocation7 + $0x1b0] sm:$0xff]
    %v1341 = vld [vmem:[#allocation7 + $0x1b8] sm:$0xff]
    %v1342 = vld [vmem:[#allocation7 + $0x1c0] sm:$0xff]
    %v1343 = vld [vmem:[#allocation7 + $0x1c8] sm:$0xff]
    %v1344 = vld [vmem:[#allocation7 + $0x1d0] sm:$0xff]
    %v1345 = vld [vmem:[#allocation7 + $0x1d8] sm:$0xff]
    %v1346 = vld [vmem:[#allocation7 + $0x1e0] sm:$0xff]
    %v1347 = vld [vmem:[#allocation7 + $0x1e8] sm:$0xff]
    %v1348 = vld [vmem:[#allocation7 + $0x1f0] sm:$0xff]
    %v1349 = vld [vmem:[#allocation7 + $0x1f8] sm:$0xff]
    %v1350 = vld [vmem:[#allocation7 + $0x200] sm:$0xff]
    %v1351 = vld [vmem:[#allocation7 + $0x208] sm:$0xff]
    %v1352 = vld [vmem:[#allocation7 + $0x210] sm:$0xff]
    %v1353 = vld [vmem:[#allocation7 + $0x218] sm:$0xff]
    %v1354 = vld [vmem:[#allocation7 + $0x220] sm:$0xff]
    %v1355 = vld [vmem:[#allocation7 + $0x228] sm:$0xff]
    %v1356 = vld [vmem:[#allocation7 + $0x230] sm:$0xff]
    %v1357 = vld [vmem:[#allocation7 + $0x238] sm:$0xff]
    %v1358 = vld [vmem:[#allocation7 + $0x240] sm:$0xff]
    %v1359 = vld [vmem:[#allocation7 + $0x248] sm:$0xff]
    %v1360 = vld [vmem:[#allocation7 + $0x250] sm:$0xff]
    %v1361 = vld [vmem:[#allocation7 + $0x258] sm:$0xff]
    %v1362 = vld [vmem:[#allocation7 + $0x260] sm:$0xff]
    %v1363 = vld [vmem:[#allocation7 + $0x268] sm:$0xff]
    %v1364 = vld [vmem:[#allocation7 + $0x270] sm:$0xff]
    %v1365 = vld [vmem:[#allocation7 + $0x278] sm:$0xff]
    %v1366 = vld [vmem:[#allocation7 + $0x280] sm:$0xff]
    %v1367 = vld [vmem:[#allocation7 + $0x288] sm:$0xff]
    %v1368 = vld [vmem:[#allocation7 + $0x290] sm:$0xff]
    %v1369 = vld [vmem:[#allocation7 + $0x298] sm:$0xff]
    %v1370 = vld [vmem:[#allocation7 + $0x2a0] sm:$0xff]
    %v1371 = vld [vmem:[#allocation7 + $0x2a8] sm:$0xff]
    %v1372 = vld [vmem:[#allocation7 + $0x2b0] sm:$0xff]
    %v1373 = vld [vmem:[#allocation7 + $0x2b8] sm:$0xff]
    %v1374 = vld [vmem:[#allocation7 + $0x2c0] sm:$0xff]
    %v1375 = vld [vmem:[#allocation7 + $0x2c8] sm:$0xff]
    %v1376 = vld [vmem:[#allocation7 + $0x2d0] sm:$0xff]
    %v1377 = vld [vmem:[#allocation7 + $0x2d8] sm:$0xff]
    %v1378 = vld [vmem:[#allocation7 + $0x2e0] sm:$0xff]
    %v1379 = vld [vmem:[#allocation7 + $0x2e8] sm:$0xff]
    %v1380 = vld [vmem:[#allocation7 + $0x2f0] sm:$0xff]
    %v1381 = vld [vmem:[#allocation7 + $0x2f8] sm:$0xff]
    %v1382 = vld [vmem:[#allocation7 + $0x300] sm:$0xff]
    %v1383 = vld [vmem:[#allocation7 + $0x308] sm:$0xff]
    %v1384 = vld [vmem:[#allocation7 + $0x310] sm:$0xff]
    %v1385 = vld [vmem:[#allocation7 + $0x318] sm:$0xff]
    %v1386 = vld [vmem:[#allocation7 + $0x320] sm:$0xff]
    %v1387 = vld [vmem:[#allocation7 + $0x328] sm:$0xff]
    %v1388 = vld [vmem:[#allocation7 + $0x330] sm:$0xff]
    %v1389 = vld [vmem:[#allocation7 + $0x338] sm:$0xff]
    %v1390 = vld [vmem:[#allocation7 + $0x340] sm:$0xff]
    %v1391 = vld [vmem:[#allocation7 + $0x348] sm:$0xff]
    %v1392 = vld [vmem:[#allocation7 + $0x350] sm:$0xff]
    %v1393 = vld [vmem:[#allocation7 + $0x358] sm:$0xff]
    %v1394 = vld [vmem:[#allocation7 + $0x360] sm:$0xff]
    %v1395 = vld [vmem:[#allocation7 + $0x368] sm:$0xff]
    %v1396 = vld [vmem:[#allocation7 + $0x370] sm:$0xff]
    %v1397 = vld [vmem:[#allocation7 + $0x378] sm:$0xff]
    %v1398 = vld [vmem:[#allocation7 + $0x380] sm:$0xff]
    %v1399 = vld [vmem:[#allocation7 + $0x388] sm:$0xff]
    %v1400 = vld [vmem:[#allocation7 + $0x390] sm:$0xff]
    %v1401 = vld [vmem:[#allocation7 + $0x398] sm:$0xff]
    %v1402 = vld [vmem:[#allocation7 + $0x3a0] sm:$0xff]
    %v1403 = vld [vmem:[#allocation7 + $0x3a8] sm:$0xff]
    %v1404 = vld [vmem:[#allocation7 + $0x3b0] sm:$0xff]
    %v1405 = vld [vmem:[#allocation7 + $0x3b8] sm:$0xff]
    %v1406 = vld [vmem:[#allocation7 + $0x3c0] sm:$0xff]
    %v1407 = vld [vmem:[#allocation7 + $0x3c8] sm:$0xff]
    %v1408 = vld [vmem:[#allocation7 + $0x3d0] sm:$0xff]
    %v1409 = vld [vmem:[#allocation7 + $0x3d8] sm:$0xff]
    %v1410 = vld [vmem:[#allocation7 + $0x3e0] sm:$0xff]
    %v1411 = vld [vmem:[#allocation7 + $0x3e8] sm:$0xff]
    %v1412 = vld [vmem:[#allocation7 + $0x3f0] sm:$0xff]
    %v1413 = vld [vmem:[#allocation7 + $0x3f8] sm:$0xff]
    %v1414 = vld [vmem:[#allocation7 + $0x400] sm:$0xff]
    %v1415 = vld [vmem:[#allocation7 + $0x408] sm:$0xff]
    %v1416 = vld [vmem:[#allocation7 + $0x410] sm:$0xff]
    %v1417 = vld [vmem:[#allocation7 + $0x418] sm:$0xff]
    %v1418 = vld [vmem:[#allocation7 + $0x420] sm:$0xff]
    %v1419 = vld [vmem:[#allocation7 + $0x428] sm:$0xff]
    %v1420 = vld [vmem:[#allocation7 + $0x430] sm:$0xff]
    %v1421 = vld [vmem:[#allocation7 + $0x438] sm:$0xff]
    %v1422 = vld [vmem:[#allocation7 + $0x440] sm:$0xff]
    %v1423 = vld [vmem:[#allocation7 + $0x448] sm:$0xff]
    %v1424 = vld [vmem:[#allocation7 + $0x450] sm:$0xff]
    %v1425 = vld [vmem:[#allocation7 + $0x458] sm:$0xff]
    %v1426 = vld [vmem:[#allocation7 + $0x460] sm:$0xff]
    %v1427 = vld [vmem:[#allocation7 + $0x468] sm:$0xff]
    %v1428 = vld [vmem:[#allocation7 + $0x470] sm:$0xff]
    %v1429 = vld [vmem:[#allocation7 + $0x478] sm:$0xff]
    %v1430 = vld [vmem:[#allocation7 + $0x480] sm:$0xff]
    %v1431 = vld [vmem:[#allocation7 + $0x488] sm:$0xff]
    %v1432 = vld [vmem:[#allocation7 + $0x490] sm:$0xff]
    %v1433 = vld [vmem:[#allocation7 + $0x498] sm:$0xff]
    %v1434 = vld [vmem:[#allocation7 + $0x4a0] sm:$0xff]
    %v1435 = vld [vmem:[#allocation7 + $0x4a8] sm:$0xff]
    %v1436 = vld [vmem:[#allocation7 + $0x4b0] sm:$0xff]
    %v1437 = vld [vmem:[#allocation7 + $0x4b8] sm:$0xff]
    %v1438 = vld [vmem:[#allocation7 + $0x4c0] sm:$0xff]
    %v1439 = vld [vmem:[#allocation7 + $0x4c8] sm:$0xff]
    %v1440 = vld [vmem:[#allocation7 + $0x4d0] sm:$0xff]
    %v1441 = vld [vmem:[#allocation7 + $0x4d8] sm:$0xff]
    %v1442 = vld [vmem:[#allocation7 + $0x4e0] sm:$0xff]
    %v1443 = vld [vmem:[#allocation7 + $0x4e8] sm:$0xff]
    %v1444 = vld [vmem:[#allocation7 + $0x4f0] sm:$0xff]
    %v1445 = vld [vmem:[#allocation7 + $0x4f8] sm:$0xff]
    %v1446 = vld [vmem:[#allocation7 + $0x500] sm:$0xff]
    %v1447 = vld [vmem:[#allocation7 + $0x508] sm:$0xff]
    %v1448 = vld [vmem:[#allocation7 + $0x510] sm:$0xff]
    %v1449 = vld [vmem:[#allocation7 + $0x518] sm:$0xff]
    %v1450 = vld [vmem:[#allocation7 + $0x520] sm:$0xff]
    %v1451 = vld [vmem:[#allocation7 + $0x528] sm:$0xff]
    %v1452 = vld [vmem:[#allocation7 + $0x530] sm:$0xff]
    %v1453 = vld [vmem:[#allocation7 + $0x538] sm:$0xff]
    %v1454 = vld [vmem:[#allocation7 + $0x540] sm:$0xff]
    %v1455 = vld [vmem:[#allocation7 + $0x548] sm:$0xff]
    %v1456 = vld [vmem:[#allocation7 + $0x550] sm:$0xff]
    %v1457 = vld [vmem:[#allocation7 + $0x558] sm:$0xff]
    %v1458 = vld [vmem:[#allocation7 + $0x560] sm:$0xff]
    %v1459 = vld [vmem:[#allocation7 + $0x568] sm:$0xff]
    %v1460 = vld [vmem:[#allocation7 + $0x570] sm:$0xff]
    %v1461 = vld [vmem:[#allocation7 + $0x578] sm:$0xff]
    %v1462 = vld [vmem:[#allocation7 + $0x580] sm:$0xff]
    %v1463 = vld [vmem:[#allocation7 + $0x588] sm:$0xff]
    %v1464 = vld [vmem:[#allocation7 + $0x590] sm:$0xff]
    %v1465 = vld [vmem:[#allocation7 + $0x598] sm:$0xff]
    %v1466 = vld [vmem:[#allocation7 + $0x5a0] sm:$0xff]
    %v1467 = vld [vmem:[#allocation7 + $0x5a8] sm:$0xff]
    %v1468 = vld [vmem:[#allocation7 + $0x5b0] sm:$0xff]
    %v1469 = vld [vmem:[#allocation7 + $0x5b8] sm:$0xff]
    %v1470 = vld [vmem:[#allocation7 + $0x5c0] sm:$0xff]
    %v1471 = vld [vmem:[#allocation7 + $0x5c8] sm:$0xff]
    %v1472 = vld [vmem:[#allocation7 + $0x5d0] sm:$0xff]
    %v1473 = vld [vmem:[#allocation7 + $0x5d8] sm:$0xff]
    %v1474 = vld [vmem:[#allocation7 + $0x5e0] sm:$0xff]
    %v1475 = vld [vmem:[#allocation7 + $0x5e8] sm:$0xff]
    %v1476 = vld [vmem:[#allocation7 + $0x5f0] sm:$0xff]
    %v1477 = vld [vmem:[#allocation7 + $0x5f8] sm:$0xff]
    %v1478 = vld [vmem:[#allocation7 + $0x600] sm:$0xff]
    %v1479 = vld [vmem:[#allocation7 + $0x608] sm:$0xff]
    %v1480 = vld [vmem:[#allocation7 + $0x610] sm:$0xff]
    %v1481 = vld [vmem:[#allocation7 + $0x618] sm:$0xff]
    %v1482 = vld [vmem:[#allocation7 + $0x620] sm:$0xff]
    %v1483 = vld [vmem:[#allocation7 + $0x628] sm:$0xff]
    %v1484 = vld [vmem:[#allocation7 + $0x630] sm:$0xff]
    %v1485 = vld [vmem:[#allocation7 + $0x638] sm:$0xff]
    %v1486 = vld [vmem:[#allocation7 + $0x640] sm:$0xff]
    %v1487 = vld [vmem:[#allocation7 + $0x648] sm:$0xff]
    %v1488 = vld [vmem:[#allocation7 + $0x650] sm:$0xff]
    %v1489 = vld [vmem:[#allocation7 + $0x658] sm:$0xff]
    %v1490 = vld [vmem:[#allocation7 + $0x660] sm:$0xff]
    %v1491 = vld [vmem:[#allocation7 + $0x668] sm:$0xff]
    %v1492 = vld [vmem:[#allocation7 + $0x670] sm:$0xff]
    %v1493 = vld [vmem:[#allocation7 + $0x678] sm:$0xff]
    %v1494 = vld [vmem:[#allocation7 + $0x680] sm:$0xff]
    %v1495 = vld [vmem:[#allocation7 + $0x688] sm:$0xff]
    %v1496 = vld [vmem:[#allocation7 + $0x690] sm:$0xff]
    %v1497 = vld [vmem:[#allocation7 + $0x698] sm:$0xff]
    %v1498 = vld [vmem:[#allocation7 + $0x6a0] sm:$0xff]
    %v1499 = vld [vmem:[#allocation7 + $0x6a8] sm:$0xff]
    %v1500 = vld [vmem:[#allocation7 + $0x6b0] sm:$0xff]
    %v1501 = vld [vmem:[#allocation7 + $0x6b8] sm:$0xff]
    %v1502 = vld [vmem:[#allocation7 + $0x6c0] sm:$0xff]
    %v1503 = vld [vmem:[#allocation7 + $0x6c8] sm:$0xff]
    %v1504 = vld [vmem:[#allocation7 + $0x6d0] sm:$0xff]
    %v1505 = vld [vmem:[#allocation7 + $0x6d8] sm:$0xff]
    %v1506 = vld [vmem:[#allocation7 + $0x6e0] sm:$0xff]
    %v1507 = vld [vmem:[#allocation7 + $0x6e8] sm:$0xff]
    %v1508 = vld [vmem:[#allocation7 + $0x6f0] sm:$0xff]
    %v1509 = vld [vmem:[#allocation7 + $0x6f8] sm:$0xff]
    %v1510 = vld [vmem:[#allocation7 + $0x700] sm:$0xff]
    %v1511 = vld [vmem:[#allocation7 + $0x708] sm:$0xff]
    %v1512 = vld [vmem:[#allocation7 + $0x710] sm:$0xff]
    %v1513 = vld [vmem:[#allocation7 + $0x718] sm:$0xff]
    %v1514 = vld [vmem:[#allocation7 + $0x720] sm:$0xff]
    %v1515 = vld [vmem:[#allocation7 + $0x728] sm:$0xff]
    %v1516 = vld [vmem:[#allocation7 + $0x730] sm:$0xff]
    %v1517 = vld [vmem:[#allocation7 + $0x738] sm:$0xff]
    %v1518 = vld [vmem:[#allocation7 + $0x740] sm:$0xff]
    %v1519 = vld [vmem:[#allocation7 + $0x748] sm:$0xff]
    %v1520 = vld [vmem:[#allocation7 + $0x750] sm:$0xff]
    %v1521 = vld [vmem:[#allocation7 + $0x758] sm:$0xff]
    %v1522 = vld [vmem:[#allocation7 + $0x760] sm:$0xff]
    %v1523 = vld [vmem:[#allocation7 + $0x768] sm:$0xff]
    %v1524 = vld [vmem:[#allocation7 + $0x770] sm:$0xff]
    %v1525 = vld [vmem:[#allocation7 + $0x778] sm:$0xff]
    %v1526 = vld [vmem:[#allocation7 + $0x780] sm:$0xff]
    %v1527 = vld [vmem:[#allocation7 + $0x788] sm:$0xff]
    %v1528 = vld [vmem:[#allocation7 + $0x790] sm:$0xff]
    %v1529 = vld [vmem:[#allocation7 + $0x798] sm:$0xff]
    %v1530 = vld [vmem:[#allocation7 + $0x7a0] sm:$0xff]
    %v1531 = vld [vmem:[#allocation7 + $0x7a8] sm:$0xff]
    %v1532 = vld [vmem:[#allocation7 + $0x7b0] sm:$0xff]
    %v1533 = vld [vmem:[#allocation7 + $0x7b8] sm:$0xff]
    %v1534 = vld [vmem:[#allocation7 + $0x7c0] sm:$0xff]
    %v1535 = vld [vmem:[#allocation7 + $0x7c8] sm:$0xff]
    %v1536 = vld [vmem:[#allocation7 + $0x7d0] sm:$0xff]
    %v1537 = vld [vmem:[#allocation7 + $0x7d8] sm:$0xff]
    %v1538 = vld [vmem:[#allocation7 + $0x7e0] sm:$0xff]
    %v1539 = vld [vmem:[#allocation7 + $0x7e8] sm:$0xff]
    %v1540 = vld [vmem:[#allocation7 + $0x7f0] sm:$0xff]
    %v1541 = vld [vmem:[#allocation7 + $0x7f8] sm:$0xff]
    %v1542 = vld [vmem:[#allocation7 + $0x800] sm:$0xff]
    %v1543 = vld [vmem:[#allocation7 + $0x808] sm:$0xff]
    %v1544 = vld [vmem:[#allocation7 + $0x810] sm:$0xff]
    %v1545 = vld [vmem:[#allocation7 + $0x818] sm:$0xff]
    %v1546 = vld [vmem:[#allocation7 + $0x820] sm:$0xff]
    %v1547 = vld [vmem:[#allocation7 + $0x828] sm:$0xff]
    %v1548 = vld [vmem:[#allocation7 + $0x830] sm:$0xff]
    %v1549 = vld [vmem:[#allocation7 + $0x838] sm:$0xff]
    %v1550 = vld [vmem:[#allocation7 + $0x840] sm:$0xff]
    %v1551 = vld [vmem:[#allocation7 + $0x848] sm:$0xff]
    %v1552 = vld [vmem:[#allocation7 + $0x850] sm:$0xff]
    %v1553 = vld [vmem:[#allocation7 + $0x858] sm:$0xff]
    %v1554 = vld [vmem:[#allocation7 + $0x860] sm:$0xff]
    %v1555 = vld [vmem:[#allocation7 + $0x868] sm:$0xff]
    %v1556 = vld [vmem:[#allocation7 + $0x870] sm:$0xff]
    %v1557 = vld [vmem:[#allocation7 + $0x878] sm:$0xff]
    %v1558 = vld [vmem:[#allocation7 + $0x880] sm:$0xff]
    %v1559 = vld [vmem:[#allocation7 + $0x888] sm:$0xff]
    %v1560 = vld [vmem:[#allocation7 + $0x890] sm:$0xff]
    %v1561 = vld [vmem:[#allocation7 + $0x898] sm:$0xff]
    %v1562 = vld [vmem:[#allocation7 + $0x8a0] sm:$0xff]
    %v1563 = vld [vmem:[#allocation7 + $0x8a8] sm:$0xff]
    %v1564 = vld [vmem:[#allocation7 + $0x8b0] sm:$0xff]
    %v1565 = vld [vmem:[#allocation7 + $0x8b8] sm:$0xff]
    %v1566 = vld [vmem:[#allocation7 + $0x8c0] sm:$0xff]
    %v1567 = vld [vmem:[#allocation7 + $0x8c8] sm:$0xff]
    %v1568 = vld [vmem:[#allocation7 + $0x8d0] sm:$0xff]
    %v1569 = vld [vmem:[#allocation7 + $0x8d8] sm:$0xff]
    %v1570 = vld [vmem:[#allocation7 + $0x8e0] sm:$0xff]
    %v1571 = vld [vmem:[#allocation7 + $0x8e8] sm:$0xff]
    %v1572 = vld [vmem:[#allocation7 + $0x8f0] sm:$0xff]
    %v1573 = vld [vmem:[#allocation7 + $0x8f8] sm:$0xff]
    %v1574 = vld [vmem:[#allocation7 + $0x900] sm:$0xff]
    %v1575 = vld [vmem:[#allocation7 + $0x908] sm:$0xff]
    %v1576 = vld [vmem:[#allocation7 + $0x910] sm:$0xff]
    %v1577 = vld [vmem:[#allocation7 + $0x918] sm:$0xff]
    %v1578 = vld [vmem:[#allocation7 + $0x920] sm:$0xff]
    %v1579 = vld [vmem:[#allocation7 + $0x928] sm:$0xff]
    %v1580 = vld [vmem:[#allocation7 + $0x930] sm:$0xff]
    %v1581 = vld [vmem:[#allocation7 + $0x938] sm:$0xff]
    %v1582 = vld [vmem:[#allocation7 + $0x940] sm:$0xff]
    %v1583 = vld [vmem:[#allocation7 + $0x948] sm:$0xff]
    %v1584 = vld [vmem:[#allocation7 + $0x950] sm:$0xff]
    %v1585 = vld [vmem:[#allocation7 + $0x958] sm:$0xff]
    %v1586 = vld [vmem:[#allocation7 + $0x960] sm:$0xff]
    %v1587 = vld [vmem:[#allocation7 + $0x968] sm:$0xff]
    %v1588 = vld [vmem:[#allocation7 + $0x970] sm:$0xff]
    %v1589 = vld [vmem:[#allocation7 + $0x978] sm:$0xff]
    %v1590 = vld [vmem:[#allocation7 + $0x980] sm:$0xff]
    %v1591 = vld [vmem:[#allocation7 + $0x988] sm:$0xff]
    %v1592 = vld [vmem:[#allocation7 + $0x990] sm:$0xff]
    %v1593 = vld [vmem:[#allocation7 + $0x998] sm:$0xff]
    %v1594 = vld [vmem:[#allocation7 + $0x9a0] sm:$0xff]
    %v1595 = vld [vmem:[#allocation7 + $0x9a8] sm:$0xff]
    %v1596 = vld [vmem:[#allocation7 + $0x9b0] sm:$0xff]
    %v1597 = vld [vmem:[#allocation7 + $0x9b8] sm:$0xff]
    %v1598 = vld [vmem:[#allocation7 + $0x9c0] sm:$0xff]
    %v1599 = vld [vmem:[#allocation7 + $0x9c8] sm:$0xff]
    %v1600 = vld [vmem:[#allocation7 + $0x9d0] sm:$0xff]
    %v1601 = vld [vmem:[#allocation7 + $0x9d8] sm:$0xff]
    %v1602 = vld [vmem:[#allocation7 + $0x9e0] sm:$0xff]
    %v1603 = vld [vmem:[#allocation7 + $0x9e8] sm:$0xff]
    %v1604 = vld [vmem:[#allocation7 + $0x9f0] sm:$0xff]
    %v1605 = vld [vmem:[#allocation7 + $0x9f8] sm:$0xff]
    %v1606 = vpack.c.b16 %v1176, %v1174
    %v1607 = vpack.c.b16 %v1177, %v1175
    %v1608 = vpack.c.b16 %v1200, %v1198
    %v1609 = vpack.c.b16 %v1201, %v1199
    %v1610 = vpack.c.b16 %v1224, %v1222
    %v1611 = vpack.c.b16 %v1225, %v1223
    %v1612 = vpack.c.b16 %v1248, %v1246
    %v1613 = vpack.c.b16 %v1249, %v1247
    %v1614 = vpack.c.b16 %v1272, %v1270
    %v1615 = vpack.c.b16 %v1273, %v1271
    %v1616 = vpack.c.b16 %v1180, %v1178
    %v1617 = vpack.c.b16 %v1181, %v1179
    %v1618 = vpack.c.b16 %v1204, %v1202
    %v1619 = vpack.c.b16 %v1205, %v1203
    %v1620 = vpack.c.b16 %v1228, %v1226
    %v1621 = vpack.c.b16 %v1229, %v1227
    %v1622 = vpack.c.b16 %v1252, %v1250
    %v1623 = vpack.c.b16 %v1253, %v1251
    %v1624 = vpack.c.b16 %v1276, %v1274
    %v1625 = vpack.c.b16 %v1277, %v1275
    %v1626 = vpack.c.b16 %v1184, %v1182
    %v1627 = vpack.c.b16 %v1185, %v1183
    %v1628 = vpack.c.b16 %v1208, %v1206
    %v1629 = vpack.c.b16 %v1209, %v1207
    %v1630 = vpack.c.b16 %v1232, %v1230
    %v1631 = vpack.c.b16 %v1233, %v1231
    %v1632 = vpack.c.b16 %v1256, %v1254
    %v1633 = vpack.c.b16 %v1257, %v1255
    %v1634 = vpack.c.b16 %v1280, %v1278
    %v1635 = vpack.c.b16 %v1281, %v1279
    %v1636 = vpack.c.b16 %v1188, %v1186
    %v1637 = vpack.c.b16 %v1189, %v1187
    %v1638 = vpack.c.b16 %v1212, %v1210
    %v1639 = vpack.c.b16 %v1213, %v1211
    %v1640 = vpack.c.b16 %v1236, %v1234
    %v1641 = vpack.c.b16 %v1237, %v1235
    %v1642 = vpack.c.b16 %v1260, %v1258
    %v1643 = vpack.c.b16 %v1261, %v1259
    %v1644 = vpack.c.b16 %v1284, %v1282
    %v1645 = vpack.c.b16 %v1285, %v1283
    %v2006 = vunpack.c.l.b16 %v1286
    %v2007 = vunpack.c.h.b16 %v1286
    %v2008 = vunpack.c.l.b16 %v1287
    %v2009 = vunpack.c.h.b16 %v1287
    %v2010 = vunpack.c.l.b16 %v1288
    %v2011 = vunpack.c.h.b16 %v1288
    %v2012 = vunpack.c.l.b16 %v1289
    %v2013 = vunpack.c.h.b16 %v1289
    %v2014 = vunpack.c.l.b16 %v1290
    %v2015 = vunpack.c.h.b16 %v1290
    %v2016 = vunpack.c.l.b16 %v1291
    %v2017 = vunpack.c.h.b16 %v1291
    %v2018 = vunpack.c.l.b16 %v1292
    %v2019 = vunpack.c.h.b16 %v1292
    %v2020 = vunpack.c.l.b16 %v1293
    %v2021 = vunpack.c.h.b16 %v1293
    %v2022 = vunpack.c.l.b16 %v1294
    %v2023 = vunpack.c.h.b16 %v1294
    %v2024 = vunpack.c.l.b16 %v1295
    %v2025 = vunpack.c.h.b16 %v1295
    %v2026 = vunpack.c.l.b16 %v1296
    %v2027 = vunpack.c.h.b16 %v1296
    %v2028 = vunpack.c.l.b16 %v1297
    %v2029 = vunpack.c.h.b16 %v1297
    %v2030 = vunpack.c.l.b16 %v1298
    %v2031 = vunpack.c.h.b16 %v1298
    %v2032 = vunpack.c.l.b16 %v1299
    %v2033 = vunpack.c.h.b16 %v1299
    %v2034 = vunpack.c.l.b16 %v1300
    %v2035 = vunpack.c.h.b16 %v1300
    %v2036 = vunpack.c.l.b16 %v1301
    %v2037 = vunpack.c.h.b16 %v1301
    %v2038 = vunpack.c.l.b16 %v1302
    %v2039 = vunpack.c.h.b16 %v1302
    %v2040 = vunpack.c.l.b16 %v1303
    %v2041 = vunpack.c.h.b16 %v1303
    %v2042 = vunpack.c.l.b16 %v1304
    %v2043 = vunpack.c.h.b16 %v1304
    %v2044 = vunpack.c.l.b16 %v1305
    %v2045 = vunpack.c.h.b16 %v1305
    %v2046 = vunpack.c.l.b16 %v1306
    %v2047 = vunpack.c.h.b16 %v1306
    %v2048 = vunpack.c.l.b16 %v1307
    %v2049 = vunpack.c.h.b16 %v1307
    %v2050 = vunpack.c.l.b16 %v1308
    %v2051 = vunpack.c.h.b16 %v1308
    %v2052 = vunpack.c.l.b16 %v1309
    %v2053 = vunpack.c.h.b16 %v1309
    %v2054 = vunpack.c.l.b16 %v1310
    %v2055 = vunpack.c.h.b16 %v1310
    %v2056 = vunpack.c.l.b16 %v1311
    %v2057 = vunpack.c.h.b16 %v1311
    %v2058 = vunpack.c.l.b16 %v1312
    %v2059 = vunpack.c.h.b16 %v1312
    %v2060 = vunpack.c.l.b16 %v1313
    %v2061 = vunpack.c.h.b16 %v1313
    %v2062 = vunpack.c.l.b16 %v1314
    %v2063 = vunpack.c.h.b16 %v1314
    %v2064 = vunpack.c.l.b16 %v1315
    %v2065 = vunpack.c.h.b16 %v1315
    %v2066 = vunpack.c.l.b16 %v1316
    %v2067 = vunpack.c.h.b16 %v1316
    %v2068 = vunpack.c.l.b16 %v1317
    %v2069 = vunpack.c.h.b16 %v1317
    %v2070 = vunpack.c.l.b16 %v1318
    %v2071 = vunpack.c.h.b16 %v1318
    %v2072 = vunpack.c.l.b16 %v1319
    %v2073 = vunpack.c.h.b16 %v1319
    %v2074 = vunpack.c.l.b16 %v1320
    %v2075 = vunpack.c.h.b16 %v1320
    %v2076 = vunpack.c.l.b16 %v1321
    %v2077 = vunpack.c.h.b16 %v1321
    %v2078 = vunpack.c.l.b16 %v1322
    %v2079 = vunpack.c.h.b16 %v1322
    %v2080 = vunpack.c.l.b16 %v1323
    %v2081 = vunpack.c.h.b16 %v1323
    %v2082 = vunpack.c.l.b16 %v1324
    %v2083 = vunpack.c.h.b16 %v1324
    %v2084 = vunpack.c.l.b16 %v1325
    %v2085 = vunpack.c.h.b16 %v1325
    %v2086 = vunpack.c.l.b16 %v1326
    %v2087 = vunpack.c.h.b16 %v1326
    %v2088 = vunpack.c.l.b16 %v1327
    %v2089 = vunpack.c.h.b16 %v1327
    %v2090 = vunpack.c.l.b16 %v1328
    %v2091 = vunpack.c.h.b16 %v1328
    %v2092 = vunpack.c.l.b16 %v1329
    %v2093 = vunpack.c.h.b16 %v1329
    %v2094 = vunpack.c.l.b16 %v1330
    %v2095 = vunpack.c.h.b16 %v1330
    %v2096 = vunpack.c.l.b16 %v1331
    %v2097 = vunpack.c.h.b16 %v1331
    %v2098 = vunpack.c.l.b16 %v1332
    %v2099 = vunpack.c.h.b16 %v1332
    %v2100 = vunpack.c.l.b16 %v1333
    %v2101 = vunpack.c.h.b16 %v1333
    %v2102 = vunpack.c.l.b16 %v1334
    %v2103 = vunpack.c.h.b16 %v1334
    %v2104 = vunpack.c.l.b16 %v1335
    %v2105 = vunpack.c.h.b16 %v1335
    %v2106 = vunpack.c.l.b16 %v1336
    %v2107 = vunpack.c.h.b16 %v1336
    %v2108 = vunpack.c.l.b16 %v1337
    %v2109 = vunpack.c.h.b16 %v1337
    %v2110 = vunpack.c.l.b16 %v1338
    %v2111 = vunpack.c.h.b16 %v1338
    %v2112 = vunpack.c.l.b16 %v1339
    %v2113 = vunpack.c.h.b16 %v1339
    %v2114 = vunpack.c.l.b16 %v1340
    %v2115 = vunpack.c.h.b16 %v1340
    %v2116 = vunpack.c.l.b16 %v1341
    %v2117 = vunpack.c.h.b16 %v1341
    %v2118 = vunpack.c.l.b16 %v1342
    %v2119 = vunpack.c.h.b16 %v1342
    %v2120 = vunpack.c.l.b16 %v1343
    %v2121 = vunpack.c.h.b16 %v1343
    %v2122 = vunpack.c.l.b16 %v1344
    %v2123 = vunpack.c.h.b16 %v1344
    %v2124 = vunpack.c.l.b16 %v1345
    %v2125 = vunpack.c.h.b16 %v1345
    %v2126 = vunpack.c.l.b16 %v1346
    %v2127 = vunpack.c.h.b16 %v1346
    %v2128 = vunpack.c.l.b16 %v1347
    %v2129 = vunpack.c.h.b16 %v1347
    %v2130 = vunpack.c.l.b16 %v1348
    %v2131 = vunpack.c.h.b16 %v1348
    %v2132 = vunpack.c.l.b16 %v1349
    %v2133 = vunpack.c.h.b16 %v1349
    %v2134 = vunpack.c.l.b16 %v1350
    %v2135 = vunpack.c.h.b16 %v1350
    %v2136 = vunpack.c.l.b16 %v1351
    %v2137 = vunpack.c.h.b16 %v1351
    %v2138 = vunpack.c.l.b16 %v1352
    %v2139 = vunpack.c.h.b16 %v1352
    %v2140 = vunpack.c.l.b16 %v1353
    %v2141 = vunpack.c.h.b16 %v1353
    %v2142 = vunpack.c.l.b16 %v1354
    %v2143 = vunpack.c.h.b16 %v1354
    %v2144 = vunpack.c.l.b16 %v1355
    %v2145 = vunpack.c.h.b16 %v1355
    %v2146 = vunpack.c.l.b16 %v1356
    %v2147 = vunpack.c.h.b16 %v1356
    %v2148 = vunpack.c.l.b16 %v1357
    %v2149 = vunpack.c.h.b16 %v1357
    %v2150 = vunpack.c.l.b16 %v1358
    %v2151 = vunpack.c.h.b16 %v1358
    %v2152 = vunpack.c.l.b16 %v1359
    %v2153 = vunpack.c.h.b16 %v1359
    %v2154 = vunpack.c.l.b16 %v1360
    %v2155 = vunpack.c.h.b16 %v1360
    %v2156 = vunpack.c.l.b16 %v1361
    %v2157 = vunpack.c.h.b16 %v1361
    %v2158 = vunpack.c.l.b16 %v1362
    %v2159 = vunpack.c.h.b16 %v1362
    %v2160 = vunpack.c.l.b16 %v1363
    %v2161 = vunpack.c.h.b16 %v1363
    %v2162 = vunpack.c.l.b16 %v1364
    %v2163 = vunpack.c.h.b16 %v1364
    %v2164 = vunpack.c.l.b16 %v1365
    %v2165 = vunpack.c.h.b16 %v1365
    %v2166 = vunpack.c.l.b16 %v1366
    %v2167 = vunpack.c.h.b16 %v1366
    %v2168 = vunpack.c.l.b16 %v1367
    %v2169 = vunpack.c.h.b16 %v1367
    %v2170 = vunpack.c.l.b16 %v1368
    %v2171 = vunpack.c.h.b16 %v1368
    %v2172 = vunpack.c.l.b16 %v1369
    %v2173 = vunpack.c.h.b16 %v1369
    %v2174 = vunpack.c.l.b16 %v1370
    %v2175 = vunpack.c.h.b16 %v1370
    %v2176 = vunpack.c.l.b16 %v1371
    %v2177 = vunpack.c.h.b16 %v1371
    %v2178 = vunpack.c.l.b16 %v1372
    %v2179 = vunpack.c.h.b16 %v1372
    %v2180 = vunpack.c.l.b16 %v1373
    %v2181 = vunpack.c.h.b16 %v1373
    %v2182 = vunpack.c.l.b16 %v1374
    %v2183 = vunpack.c.h.b16 %v1374
    %v2184 = vunpack.c.l.b16 %v1375
    %v2185 = vunpack.c.h.b16 %v1375
    %v2186 = vunpack.c.l.b16 %v1376
    %v2187 = vunpack.c.h.b16 %v1376
    %v2188 = vunpack.c.l.b16 %v1377
    %v2189 = vunpack.c.h.b16 %v1377
    %v2190 = vunpack.c.l.b16 %v1378
    %v2191 = vunpack.c.h.b16 %v1378
    %v2192 = vunpack.c.l.b16 %v1379
    %v2193 = vunpack.c.h.b16 %v1379
    %v2194 = vunpack.c.l.b16 %v1380
    %v2195 = vunpack.c.h.b16 %v1380
    %v2196 = vunpack.c.l.b16 %v1381
    %v2197 = vunpack.c.h.b16 %v1381
    %v2198 = vunpack.c.l.b16 %v1382
    %v2199 = vunpack.c.h.b16 %v1382
    %v2200 = vunpack.c.l.b16 %v1383
    %v2201 = vunpack.c.h.b16 %v1383
    %v2202 = vunpack.c.l.b16 %v1384
    %v2203 = vunpack.c.h.b16 %v1384
    %v2204 = vunpack.c.l.b16 %v1385
    %v2205 = vunpack.c.h.b16 %v1385
    %v2206 = vunpack.c.l.b16 %v1386
    %v2207 = vunpack.c.h.b16 %v1386
    %v2208 = vunpack.c.l.b16 %v1387
    %v2209 = vunpack.c.h.b16 %v1387
    %v2210 = vunpack.c.l.b16 %v1388
    %v2211 = vunpack.c.h.b16 %v1388
    %v2212 = vunpack.c.l.b16 %v1389
    %v2213 = vunpack.c.h.b16 %v1389
    %v2214 = vunpack.c.l.b16 %v1390
    %v2215 = vunpack.c.h.b16 %v1390
    %v2216 = vunpack.c.l.b16 %v1391
    %v2217 = vunpack.c.h.b16 %v1391
    %v2218 = vunpack.c.l.b16 %v1392
    %v2219 = vunpack.c.h.b16 %v1392
    %v2220 = vunpack.c.l.b16 %v1393
    %v2221 = vunpack.c.h.b16 %v1393
    %v2222 = vunpack.c.l.b16 %v1394
    %v2223 = vunpack.c.h.b16 %v1394
    %v2224 = vunpack.c.l.b16 %v1395
    %v2225 = vunpack.c.h.b16 %v1395
    %v2226 = vunpack.c.l.b16 %v1396
    %v2227 = vunpack.c.h.b16 %v1396
    %v2228 = vunpack.c.l.b16 %v1397
    %v2229 = vunpack.c.h.b16 %v1397
    %v2230 = vunpack.c.l.b16 %v1398
    %v2231 = vunpack.c.h.b16 %v1398
    %v2232 = vunpack.c.l.b16 %v1399
    %v2233 = vunpack.c.h.b16 %v1399
    %v2234 = vunpack.c.l.b16 %v1400
    %v2235 = vunpack.c.h.b16 %v1400
    %v2236 = vunpack.c.l.b16 %v1401
    %v2237 = vunpack.c.h.b16 %v1401
    %v2238 = vunpack.c.l.b16 %v1402
    %v2239 = vunpack.c.h.b16 %v1402
    %v2240 = vunpack.c.l.b16 %v1403
    %v2241 = vunpack.c.h.b16 %v1403
    %v2242 = vunpack.c.l.b16 %v1404
    %v2243 = vunpack.c.h.b16 %v1404
    %v2244 = vunpack.c.l.b16 %v1405
    %v2245 = vunpack.c.h.b16 %v1405
    %v2246 = vunpack.c.l.b16 %v1406
    %v2247 = vunpack.c.h.b16 %v1406
    %v2248 = vunpack.c.l.b16 %v1407
    %v2249 = vunpack.c.h.b16 %v1407
    %v2250 = vunpack.c.l.b16 %v1408
    %v2251 = vunpack.c.h.b16 %v1408
    %v2252 = vunpack.c.l.b16 %v1409
    %v2253 = vunpack.c.h.b16 %v1409
    %v2254 = vunpack.c.l.b16 %v1410
    %v2255 = vunpack.c.h.b16 %v1410
    %v2256 = vunpack.c.l.b16 %v1411
    %v2257 = vunpack.c.h.b16 %v1411
    %v2258 = vunpack.c.l.b16 %v1412
    %v2259 = vunpack.c.h.b16 %v1412
    %v2260 = vunpack.c.l.b16 %v1413
    %v2261 = vunpack.c.h.b16 %v1413
    %v2262 = vunpack.c.l.b16 %v1414
    %v2263 = vunpack.c.h.b16 %v1414
    %v2264 = vunpack.c.l.b16 %v1415
    %v2265 = vunpack.c.h.b16 %v1415
    %v2266 = vunpack.c.l.b16 %v1416
    %v2267 = vunpack.c.h.b16 %v1416
    %v2268 = vunpack.c.l.b16 %v1417
    %v2269 = vunpack.c.h.b16 %v1417
    %v2270 = vunpack.c.l.b16 %v1418
    %v2271 = vunpack.c.h.b16 %v1418
    %v2272 = vunpack.c.l.b16 %v1419
    %v2273 = vunpack.c.h.b16 %v1419
    %v2274 = vunpack.c.l.b16 %v1420
    %v2275 = vunpack.c.h.b16 %v1420
    %v2276 = vunpack.c.l.b16 %v1421
    %v2277 = vunpack.c.h.b16 %v1421
    %v2278 = vunpack.c.l.b16 %v1422
    %v2279 = vunpack.c.h.b16 %v1422
    %v2280 = vunpack.c.l.b16 %v1423
    %v2281 = vunpack.c.h.b16 %v1423
    %v2282 = vunpack.c.l.b16 %v1424
    %v2283 = vunpack.c.h.b16 %v1424
    %v2284 = vunpack.c.l.b16 %v1425
    %v2285 = vunpack.c.h.b16 %v1425
    %v2286 = vunpack.c.l.b16 %v1426
    %v2287 = vunpack.c.h.b16 %v1426
    %v2288 = vunpack.c.l.b16 %v1427
    %v2289 = vunpack.c.h.b16 %v1427
    %v2290 = vunpack.c.l.b16 %v1428
    %v2291 = vunpack.c.h.b16 %v1428
    %v2292 = vunpack.c.l.b16 %v1429
    %v2293 = vunpack.c.h.b16 %v1429
    %v2294 = vunpack.c.l.b16 %v1430
    %v2295 = vunpack.c.h.b16 %v1430
    %v2296 = vunpack.c.l.b16 %v1431
    %v2297 = vunpack.c.h.b16 %v1431
    %v2298 = vunpack.c.l.b16 %v1432
    %v2299 = vunpack.c.h.b16 %v1432
    %v2300 = vunpack.c.l.b16 %v1433
    %v2301 = vunpack.c.h.b16 %v1433
    %v2302 = vunpack.c.l.b16 %v1434
    %v2303 = vunpack.c.h.b16 %v1434
    %v2304 = vunpack.c.l.b16 %v1435
    %v2305 = vunpack.c.h.b16 %v1435
    %v2306 = vunpack.c.l.b16 %v1436
    %v2307 = vunpack.c.h.b16 %v1436
    %v2308 = vunpack.c.l.b16 %v1437
    %v2309 = vunpack.c.h.b16 %v1437
    %v2310 = vunpack.c.l.b16 %v1438
    %v2311 = vunpack.c.h.b16 %v1438
    %v2312 = vunpack.c.l.b16 %v1439
    %v2313 = vunpack.c.h.b16 %v1439
    %v2314 = vunpack.c.l.b16 %v1440
    %v2315 = vunpack.c.h.b16 %v1440
    %v2316 = vunpack.c.l.b16 %v1441
    %v2317 = vunpack.c.h.b16 %v1441
    %v2318 = vunpack.c.l.b16 %v1442
    %v2319 = vunpack.c.h.b16 %v1442
    %v2320 = vunpack.c.l.b16 %v1443
    %v2321 = vunpack.c.h.b16 %v1443
    %v2322 = vunpack.c.l.b16 %v1444
    %v2323 = vunpack.c.h.b16 %v1444
    %v2324 = vunpack.c.l.b16 %v1445
    %v2325 = vunpack.c.h.b16 %v1445
    %v2326 = vunpack.c.l.b16 %v1446
    %v2327 = vunpack.c.h.b16 %v1446
    %v2328 = vunpack.c.l.b16 %v1447
    %v2329 = vunpack.c.h.b16 %v1447
    %v2330 = vunpack.c.l.b16 %v1448
    %v2331 = vunpack.c.h.b16 %v1448
    %v2332 = vunpack.c.l.b16 %v1449
    %v2333 = vunpack.c.h.b16 %v1449
    %v2334 = vunpack.c.l.b16 %v1450
    %v2335 = vunpack.c.h.b16 %v1450
    %v2336 = vunpack.c.l.b16 %v1451
    %v2337 = vunpack.c.h.b16 %v1451
    %v2338 = vunpack.c.l.b16 %v1452
    %v2339 = vunpack.c.h.b16 %v1452
    %v2340 = vunpack.c.l.b16 %v1453
    %v2341 = vunpack.c.h.b16 %v1453
    %v2342 = vunpack.c.l.b16 %v1454
    %v2343 = vunpack.c.h.b16 %v1454
    %v2344 = vunpack.c.l.b16 %v1455
    %v2345 = vunpack.c.h.b16 %v1455
    %v2346 = vunpack.c.l.b16 %v1456
    %v2347 = vunpack.c.h.b16 %v1456
    %v2348 = vunpack.c.l.b16 %v1457
    %v2349 = vunpack.c.h.b16 %v1457
    %v2350 = vunpack.c.l.b16 %v1458
    %v2351 = vunpack.c.h.b16 %v1458
    %v2352 = vunpack.c.l.b16 %v1459
    %v2353 = vunpack.c.h.b16 %v1459
    %v2354 = vunpack.c.l.b16 %v1460
    %v2355 = vunpack.c.h.b16 %v1460
    %v2356 = vunpack.c.l.b16 %v1461
    %v2357 = vunpack.c.h.b16 %v1461
    %v2358 = vunpack.c.l.b16 %v1462
    %v2359 = vunpack.c.h.b16 %v1462
    %v2360 = vunpack.c.l.b16 %v1463
    %v2361 = vunpack.c.h.b16 %v1463
    %v2362 = vunpack.c.l.b16 %v1464
    %v2363 = vunpack.c.h.b16 %v1464
    %v2364 = vunpack.c.l.b16 %v1465
    %v2365 = vunpack.c.h.b16 %v1465
    %v2366 = vunpack.c.l.b16 %v1466
    %v2367 = vunpack.c.h.b16 %v1466
    %v2368 = vunpack.c.l.b16 %v1467
    %v2369 = vunpack.c.h.b16 %v1467
    %v2370 = vunpack.c.l.b16 %v1468
    %v2371 = vunpack.c.h.b16 %v1468
    %v2372 = vunpack.c.l.b16 %v1469
    %v2373 = vunpack.c.h.b16 %v1469
    %v2374 = vunpack.c.l.b16 %v1470
    %v2375 = vunpack.c.h.b16 %v1470
    %v2376 = vunpack.c.l.b16 %v1471
    %v2377 = vunpack.c.h.b16 %v1471
    %v2378 = vunpack.c.l.b16 %v1472
    %v2379 = vunpack.c.h.b16 %v1472
    %v2380 = vunpack.c.l.b16 %v1473
    %v2381 = vunpack.c.h.b16 %v1473
    %v2382 = vunpack.c.l.b16 %v1474
    %v2383 = vunpack.c.h.b16 %v1474
    %v2384 = vunpack.c.l.b16 %v1475
    %v2385 = vunpack.c.h.b16 %v1475
    %v2386 = vunpack.c.l.b16 %v1476
    %v2387 = vunpack.c.h.b16 %v1476
    %v2388 = vunpack.c.l.b16 %v1477
    %v2389 = vunpack.c.h.b16 %v1477
    %v2390 = vunpack.c.l.b16 %v1478
    %v2391 = vunpack.c.h.b16 %v1478
    %v2392 = vunpack.c.l.b16 %v1479
    %v2393 = vunpack.c.h.b16 %v1479
    %v2394 = vunpack.c.l.b16 %v1480
    %v2395 = vunpack.c.h.b16 %v1480
    %v2396 = vunpack.c.l.b16 %v1481
    %v2397 = vunpack.c.h.b16 %v1481
    %v2398 = vunpack.c.l.b16 %v1482
    %v2399 = vunpack.c.h.b16 %v1482
    %v2400 = vunpack.c.l.b16 %v1483
    %v2401 = vunpack.c.h.b16 %v1483
    %v2402 = vunpack.c.l.b16 %v1484
    %v2403 = vunpack.c.h.b16 %v1484
    %v2404 = vunpack.c.l.b16 %v1485
    %v2405 = vunpack.c.h.b16 %v1485
    %v2406 = vunpack.c.l.b16 %v1486
    %v2407 = vunpack.c.h.b16 %v1486
    %v2408 = vunpack.c.l.b16 %v1487
    %v2409 = vunpack.c.h.b16 %v1487
    %v2410 = vunpack.c.l.b16 %v1488
    %v2411 = vunpack.c.h.b16 %v1488
    %v2412 = vunpack.c.l.b16 %v1489
    %v2413 = vunpack.c.h.b16 %v1489
    %v2414 = vunpack.c.l.b16 %v1490
    %v2415 = vunpack.c.h.b16 %v1490
    %v2416 = vunpack.c.l.b16 %v1491
    %v2417 = vunpack.c.h.b16 %v1491
    %v2418 = vunpack.c.l.b16 %v1492
    %v2419 = vunpack.c.h.b16 %v1492
    %v2420 = vunpack.c.l.b16 %v1493
    %v2421 = vunpack.c.h.b16 %v1493
    %v2422 = vunpack.c.l.b16 %v1494
    %v2423 = vunpack.c.h.b16 %v1494
    %v2424 = vunpack.c.l.b16 %v1495
    %v2425 = vunpack.c.h.b16 %v1495
    %v2426 = vunpack.c.l.b16 %v1496
    %v2427 = vunpack.c.h.b16 %v1496
    %v2428 = vunpack.c.l.b16 %v1497
    %v2429 = vunpack.c.h.b16 %v1497
    %v2430 = vunpack.c.l.b16 %v1498
    %v2431 = vunpack.c.h.b16 %v1498
    %v2432 = vunpack.c.l.b16 %v1499
    %v2433 = vunpack.c.h.b16 %v1499
    %v2434 = vunpack.c.l.b16 %v1500
    %v2435 = vunpack.c.h.b16 %v1500
    %v2436 = vunpack.c.l.b16 %v1501
    %v2437 = vunpack.c.h.b16 %v1501
    %v2438 = vunpack.c.l.b16 %v1502
    %v2439 = vunpack.c.h.b16 %v1502
    %v2440 = vunpack.c.l.b16 %v1503
    %v2441 = vunpack.c.h.b16 %v1503
    %v2442 = vunpack.c.l.b16 %v1504
    %v2443 = vunpack.c.h.b16 %v1504
    %v2444 = vunpack.c.l.b16 %v1505
    %v2445 = vunpack.c.h.b16 %v1505
    %v2446 = vunpack.c.l.b16 %v1506
    %v2447 = vunpack.c.h.b16 %v1506
    %v2448 = vunpack.c.l.b16 %v1507
    %v2449 = vunpack.c.h.b16 %v1507
    %v2450 = vunpack.c.l.b16 %v1508
    %v2451 = vunpack.c.h.b16 %v1508
    %v2452 = vunpack.c.l.b16 %v1509
    %v2453 = vunpack.c.h.b16 %v1509
    %v2454 = vunpack.c.l.b16 %v1510
    %v2455 = vunpack.c.h.b16 %v1510
    %v2456 = vunpack.c.l.b16 %v1511
    %v2457 = vunpack.c.h.b16 %v1511
    %v2458 = vunpack.c.l.b16 %v1512
    %v2459 = vunpack.c.h.b16 %v1512
    %v2460 = vunpack.c.l.b16 %v1513
    %v2461 = vunpack.c.h.b16 %v1513
    %v2462 = vunpack.c.l.b16 %v1514
    %v2463 = vunpack.c.h.b16 %v1514
    %v2464 = vunpack.c.l.b16 %v1515
    %v2465 = vunpack.c.h.b16 %v1515
    %v2466 = vunpack.c.l.b16 %v1516
    %v2467 = vunpack.c.h.b16 %v1516
    %v2468 = vunpack.c.l.b16 %v1517
    %v2469 = vunpack.c.h.b16 %v1517
    %v2470 = vunpack.c.l.b16 %v1518
    %v2471 = vunpack.c.h.b16 %v1518
    %v2472 = vunpack.c.l.b16 %v1519
    %v2473 = vunpack.c.h.b16 %v1519
    %v2474 = vunpack.c.l.b16 %v1520
    %v2475 = vunpack.c.h.b16 %v1520
    %v2476 = vunpack.c.l.b16 %v1521
    %v2477 = vunpack.c.h.b16 %v1521
    %v2478 = vunpack.c.l.b16 %v1522
    %v2479 = vunpack.c.h.b16 %v1522
    %v2480 = vunpack.c.l.b16 %v1523
    %v2481 = vunpack.c.h.b16 %v1523
    %v2482 = vunpack.c.l.b16 %v1524
    %v2483 = vunpack.c.h.b16 %v1524
    %v2484 = vunpack.c.l.b16 %v1525
    %v2485 = vunpack.c.h.b16 %v1525
    %v2486 = vunpack.c.l.b16 %v1526
    %v2487 = vunpack.c.h.b16 %v1526
    %v2488 = vunpack.c.l.b16 %v1527
    %v2489 = vunpack.c.h.b16 %v1527
    %v2490 = vunpack.c.l.b16 %v1528
    %v2491 = vunpack.c.h.b16 %v1528
    %v2492 = vunpack.c.l.b16 %v1529
    %v2493 = vunpack.c.h.b16 %v1529
    %v2494 = vunpack.c.l.b16 %v1530
    %v2495 = vunpack.c.h.b16 %v1530
    %v2496 = vunpack.c.l.b16 %v1531
    %v2497 = vunpack.c.h.b16 %v1531
    %v2498 = vunpack.c.l.b16 %v1532
    %v2499 = vunpack.c.h.b16 %v1532
    %v2500 = vunpack.c.l.b16 %v1533
    %v2501 = vunpack.c.h.b16 %v1533
    %v2502 = vunpack.c.l.b16 %v1534
    %v2503 = vunpack.c.h.b16 %v1534
    %v2504 = vunpack.c.l.b16 %v1535
    %v2505 = vunpack.c.h.b16 %v1535
    %v2506 = vunpack.c.l.b16 %v1536
    %v2507 = vunpack.c.h.b16 %v1536
    %v2508 = vunpack.c.l.b16 %v1537
    %v2509 = vunpack.c.h.b16 %v1537
    %v2510 = vunpack.c.l.b16 %v1538
    %v2511 = vunpack.c.h.b16 %v1538
    %v2512 = vunpack.c.l.b16 %v1539
    %v2513 = vunpack.c.h.b16 %v1539
    %v2514 = vunpack.c.l.b16 %v1540
    %v2515 = vunpack.c.h.b16 %v1540
    %v2516 = vunpack.c.l.b16 %v1541
    %v2517 = vunpack.c.h.b16 %v1541
    %v2518 = vunpack.c.l.b16 %v1542
    %v2519 = vunpack.c.h.b16 %v1542
    %v2520 = vunpack.c.l.b16 %v1543
    %v2521 = vunpack.c.h.b16 %v1543
    %v2522 = vunpack.c.l.b16 %v1544
    %v2523 = vunpack.c.h.b16 %v1544
    %v2524 = vunpack.c.l.b16 %v1545
    %v2525 = vunpack.c.h.b16 %v1545
    %v2526 = vunpack.c.l.b16 %v1546
    %v2527 = vunpack.c.h.b16 %v1546
    %v2528 = vunpack.c.l.b16 %v1547
    %v2529 = vunpack.c.h.b16 %v1547
    %v2530 = vunpack.c.l.b16 %v1548
    %v2531 = vunpack.c.h.b16 %v1548
    %v2532 = vunpack.c.l.b16 %v1549
    %v2533 = vunpack.c.h.b16 %v1549
    %v2534 = vunpack.c.l.b16 %v1550
    %v2535 = vunpack.c.h.b16 %v1550
    %v2536 = vunpack.c.l.b16 %v1551
    %v2537 = vunpack.c.h.b16 %v1551
    %v2538 = vunpack.c.l.b16 %v1552
    %v2539 = vunpack.c.h.b16 %v1552
    %v2540 = vunpack.c.l.b16 %v1553
    %v2541 = vunpack.c.h.b16 %v1553
    %v2542 = vunpack.c.l.b16 %v1554
    %v2543 = vunpack.c.h.b16 %v1554
    %v2544 = vunpack.c.l.b16 %v1555
    %v2545 = vunpack.c.h.b16 %v1555
    %v2546 = vunpack.c.l.b16 %v1556
    %v2547 = vunpack.c.h.b16 %v1556
    %v2548 = vunpack.c.l.b16 %v1557
    %v2549 = vunpack.c.h.b16 %v1557
    %v2550 = vunpack.c.l.b16 %v1558
    %v2551 = vunpack.c.h.b16 %v1558
    %v2552 = vunpack.c.l.b16 %v1559
    %v2553 = vunpack.c.h.b16 %v1559
    %v2554 = vunpack.c.l.b16 %v1560
    %v2555 = vunpack.c.h.b16 %v1560
    %v2556 = vunpack.c.l.b16 %v1561
    %v2557 = vunpack.c.h.b16 %v1561
    %v2558 = vunpack.c.l.b16 %v1562
    %v2559 = vunpack.c.h.b16 %v1562
    %v2560 = vunpack.c.l.b16 %v1563
    %v2561 = vunpack.c.h.b16 %v1563
    %v2562 = vunpack.c.l.b16 %v1564
    %v2563 = vunpack.c.h.b16 %v1564
    %v2564 = vunpack.c.l.b16 %v1565
    %v2565 = vunpack.c.h.b16 %v1565
    %v2566 = vunpack.c.l.b16 %v1566
    %v2567 = vunpack.c.h.b16 %v1566
    %v2568 = vunpack.c.l.b16 %v1567
    %v2569 = vunpack.c.h.b16 %v1567
    %v2570 = vunpack.c.l.b16 %v1568
    %v2571 = vunpack.c.h.b16 %v1568
    %v2572 = vunpack.c.l.b16 %v1569
    %v2573 = vunpack.c.h.b16 %v1569
    %v2574 = vunpack.c.l.b16 %v1570
    %v2575 = vunpack.c.h.b16 %v1570
    %v2576 = vunpack.c.l.b16 %v1571
    %v2577 = vunpack.c.h.b16 %v1571
    %v2578 = vunpack.c.l.b16 %v1572
    %v2579 = vunpack.c.h.b16 %v1572
    %v2580 = vunpack.c.l.b16 %v1573
    %v2581 = vunpack.c.h.b16 %v1573
    %v2582 = vunpack.c.l.b16 %v1574
    %v2583 = vunpack.c.h.b16 %v1574
    %v2584 = vunpack.c.l.b16 %v1575
    %v2585 = vunpack.c.h.b16 %v1575
    %v2586 = vunpack.c.l.b16 %v1576
    %v2587 = vunpack.c.h.b16 %v1576
    %v2588 = vunpack.c.l.b16 %v1577
    %v2589 = vunpack.c.h.b16 %v1577
    %v2590 = vunpack.c.l.b16 %v1578
    %v2591 = vunpack.c.h.b16 %v1578
    %v2592 = vunpack.c.l.b16 %v1579
    %v2593 = vunpack.c.h.b16 %v1579
    %v2594 = vunpack.c.l.b16 %v1580
    %v2595 = vunpack.c.h.b16 %v1580
    %v2596 = vunpack.c.l.b16 %v1581
    %v2597 = vunpack.c.h.b16 %v1581
    %v2598 = vunpack.c.l.b16 %v1582
    %v2599 = vunpack.c.h.b16 %v1582
    %v2600 = vunpack.c.l.b16 %v1583
    %v2601 = vunpack.c.h.b16 %v1583
    %v2602 = vunpack.c.l.b16 %v1584
    %v2603 = vunpack.c.h.b16 %v1584
    %v2604 = vunpack.c.l.b16 %v1585
    %v2605 = vunpack.c.h.b16 %v1585
    %v2606 = vunpack.c.l.b16 %v1586
    %v2607 = vunpack.c.h.b16 %v1586
    %v2608 = vunpack.c.l.b16 %v1587
    %v2609 = vunpack.c.h.b16 %v1587
    %v2610 = vunpack.c.l.b16 %v1588
    %v2611 = vunpack.c.h.b16 %v1588
    %v2612 = vunpack.c.l.b16 %v1589
    %v2613 = vunpack.c.h.b16 %v1589
    %v2614 = vunpack.c.l.b16 %v1590
    %v2615 = vunpack.c.h.b16 %v1590
    %v2616 = vunpack.c.l.b16 %v1591
    %v2617 = vunpack.c.h.b16 %v1591
    %v2618 = vunpack.c.l.b16 %v1592
    %v2619 = vunpack.c.h.b16 %v1592
    %v2620 = vunpack.c.l.b16 %v1593
    %v2621 = vunpack.c.h.b16 %v1593
    %v2622 = vunpack.c.l.b16 %v1594
    %v2623 = vunpack.c.h.b16 %v1594
    %v2624 = vunpack.c.l.b16 %v1595
    %v2625 = vunpack.c.h.b16 %v1595
    %v2626 = vunpack.c.l.b16 %v1596
    %v2627 = vunpack.c.h.b16 %v1596
    %v2628 = vunpack.c.l.b16 %v1597
    %v2629 = vunpack.c.h.b16 %v1597
    %v2630 = vunpack.c.l.b16 %v1598
    %v2631 = vunpack.c.h.b16 %v1598
    %v2632 = vunpack.c.l.b16 %v1599
    %v2633 = vunpack.c.h.b16 %v1599
    %v2634 = vunpack.c.l.b16 %v1600
    %v2635 = vunpack.c.h.b16 %v1600
    %v2636 = vunpack.c.l.b16 %v1601
    %v2637 = vunpack.c.h.b16 %v1601
    %v2638 = vunpack.c.l.b16 %v1602
    %v2639 = vunpack.c.h.b16 %v1602
    %v2640 = vunpack.c.l.b16 %v1603
    %v2641 = vunpack.c.h.b16 %v1603
    %v2642 = vunpack.c.l.b16 %v1604
    %v2643 = vunpack.c.h.b16 %v1604
    %v2644 = vunpack.c.l.b16 %v1605
    %v2645 = vunpack.c.h.b16 %v1605
    %v2646 = vpack.c.b16 %v2010, %v2006
    %v2647 = vpack.c.b16 %v2011, %v2007
    %v2648 = vpack.c.b16 %v2012, %v2008
    %v2649 = vpack.c.b16 %v2013, %v2009
    %v2650 = vpack.c.b16 %v2018, %v2014
    %v2651 = vpack.c.b16 %v2019, %v2015
    %v2652 = vpack.c.b16 %v2020, %v2016
    %v2653 = vpack.c.b16 %v2021, %v2017
    %v2654 = vpack.c.b16 %v2026, %v2022
    %v2655 = vpack.c.b16 %v2027, %v2023
    %v2656 = vpack.c.b16 %v2028, %v2024
    %v2657 = vpack.c.b16 %v2029, %v2025
    %v2658 = vpack.c.b16 %v2034, %v2030
    %v2659 = vpack.c.b16 %v2035, %v2031
    %v2660 = vpack.c.b16 %v2036, %v2032
    %v2661 = vpack.c.b16 %v2037, %v2033
    %v2662 = vpack.c.b16 %v2042, %v2038
    %v2663 = vpack.c.b16 %v2043, %v2039
    %v2664 = vpack.c.b16 %v2044, %v2040
    %v2665 = vpack.c.b16 %v2045, %v2041
    %v2666 = vpack.c.b16 %v2050, %v2046
    %v2667 = vpack.c.b16 %v2051, %v2047
    %v2668 = vpack.c.b16 %v2052, %v2048
    %v2669 = vpack.c.b16 %v2053, %v2049
    %v2670 = vpack.c.b16 %v2058, %v2054
    %v2671 = vpack.c.b16 %v2059, %v2055
    %v2672 = vpack.c.b16 %v2060, %v2056
    %v2673 = vpack.c.b16 %v2061, %v2057
    %v2674 = vpack.c.b16 %v2066, %v2062
    %v2675 = vpack.c.b16 %v2067, %v2063
    %v2676 = vpack.c.b16 %v2068, %v2064
    %v2677 = vpack.c.b16 %v2069, %v2065
    %v2678 = vpack.c.b16 %v2074, %v2070
    %v2679 = vpack.c.b16 %v2075, %v2071
    %v2680 = vpack.c.b16 %v2076, %v2072
    %v2681 = vpack.c.b16 %v2077, %v2073
    %v2682 = vpack.c.b16 %v2082, %v2078
    %v2683 = vpack.c.b16 %v2083, %v2079
    %v2684 = vpack.c.b16 %v2084, %v2080
    %v2685 = vpack.c.b16 %v2085, %v2081
    %v2686 = vpack.c.b16 %v2090, %v2086
    %v2687 = vpack.c.b16 %v2091, %v2087
    %v2688 = vpack.c.b16 %v2092, %v2088
    %v2689 = vpack.c.b16 %v2093, %v2089
    %v2690 = vpack.c.b16 %v2098, %v2094
    %v2691 = vpack.c.b16 %v2099, %v2095
    %v2692 = vpack.c.b16 %v2100, %v2096
    %v2693 = vpack.c.b16 %v2101, %v2097
    %v2694 = vpack.c.b16 %v2106, %v2102
    %v2695 = vpack.c.b16 %v2107, %v2103
    %v2696 = vpack.c.b16 %v2108, %v2104
    %v2697 = vpack.c.b16 %v2109, %v2105
    %v2698 = vpack.c.b16 %v2114, %v2110
    %v2699 = vpack.c.b16 %v2115, %v2111
    %v2700 = vpack.c.b16 %v2116, %v2112
    %v2701 = vpack.c.b16 %v2117, %v2113
    %v2702 = vpack.c.b16 %v2122, %v2118
    %v2703 = vpack.c.b16 %v2123, %v2119
    %v2704 = vpack.c.b16 %v2124, %v2120
    %v2705 = vpack.c.b16 %v2125, %v2121
    %v2706 = vpack.c.b16 %v2130, %v2126
    %v2707 = vpack.c.b16 %v2131, %v2127
    %v2708 = vpack.c.b16 %v2132, %v2128
    %v2709 = vpack.c.b16 %v2133, %v2129
    %v2710 = vpack.c.b16 %v2138, %v2134
    %v2711 = vpack.c.b16 %v2139, %v2135
    %v2712 = vpack.c.b16 %v2140, %v2136
    %v2713 = vpack.c.b16 %v2141, %v2137
    %v2714 = vpack.c.b16 %v2146, %v2142
    %v2715 = vpack.c.b16 %v2147, %v2143
    %v2716 = vpack.c.b16 %v2148, %v2144
    %v2717 = vpack.c.b16 %v2149, %v2145
    %v2718 = vpack.c.b16 %v2154, %v2150
    %v2719 = vpack.c.b16 %v2155, %v2151
    %v2720 = vpack.c.b16 %v2156, %v2152
    %v2721 = vpack.c.b16 %v2157, %v2153
    %v2722 = vpack.c.b16 %v2162, %v2158
    %v2723 = vpack.c.b16 %v2163, %v2159
    %v2724 = vpack.c.b16 %v2164, %v2160
    %v2725 = vpack.c.b16 %v2165, %v2161
    %v2726 = vpack.c.b16 %v2170, %v2166
    %v2727 = vpack.c.b16 %v2171, %v2167
    %v2728 = vpack.c.b16 %v2172, %v2168
    %v2729 = vpack.c.b16 %v2173, %v2169
    %v2730 = vpack.c.b16 %v2178, %v2174
    %v2731 = vpack.c.b16 %v2179, %v2175
    %v2732 = vpack.c.b16 %v2180, %v2176
    %v2733 = vpack.c.b16 %v2181, %v2177
    %v2734 = vpack.c.b16 %v2186, %v2182
    %v2735 = vpack.c.b16 %v2187, %v2183
    %v2736 = vpack.c.b16 %v2188, %v2184
    %v2737 = vpack.c.b16 %v2189, %v2185
    %v2738 = vpack.c.b16 %v2194, %v2190
    %v2739 = vpack.c.b16 %v2195, %v2191
    %v2740 = vpack.c.b16 %v2196, %v2192
    %v2741 = vpack.c.b16 %v2197, %v2193
    %v2742 = vpack.c.b16 %v2202, %v2198
    %v2743 = vpack.c.b16 %v2203, %v2199
    %v2744 = vpack.c.b16 %v2204, %v2200
    %v2745 = vpack.c.b16 %v2205, %v2201
    %v2746 = vpack.c.b16 %v2210, %v2206
    %v2747 = vpack.c.b16 %v2211, %v2207
    %v2748 = vpack.c.b16 %v2212, %v2208
    %v2749 = vpack.c.b16 %v2213, %v2209
    %v2750 = vpack.c.b16 %v2218, %v2214
    %v2751 = vpack.c.b16 %v2219, %v2215
    %v2752 = vpack.c.b16 %v2220, %v2216
    %v2753 = vpack.c.b16 %v2221, %v2217
    %v2754 = vpack.c.b16 %v2226, %v2222
    %v2755 = vpack.c.b16 %v2227, %v2223
    %v2756 = vpack.c.b16 %v2228, %v2224
    %v2757 = vpack.c.b16 %v2229, %v2225
    %v2758 = vpack.c.b16 %v2234, %v2230
    %v2759 = vpack.c.b16 %v2235, %v2231
    %v2760 = vpack.c.b16 %v2236, %v2232
    %v2761 = vpack.c.b16 %v2237, %v2233
    %v2762 = vpack.c.b16 %v2242, %v2238
    %v2763 = vpack.c.b16 %v2243, %v2239
    %v2764 = vpack.c.b16 %v2244, %v2240
    %v2765 = vpack.c.b16 %v2245, %v2241
    %v2766 = vpack.c.b16 %v2250, %v2246
    %v2767 = vpack.c.b16 %v2251, %v2247
    %v2768 = vpack.c.b16 %v2252, %v2248
    %v2769 = vpack.c.b16 %v2253, %v2249
    %v2770 = vpack.c.b16 %v2258, %v2254
    %v2771 = vpack.c.b16 %v2259, %v2255
    %v2772 = vpack.c.b16 %v2260, %v2256
    %v2773 = vpack.c.b16 %v2261, %v2257
    %v2774 = vpack.c.b16 %v2266, %v2262
    %v2775 = vpack.c.b16 %v2267, %v2263
    %v2776 = vpack.c.b16 %v2268, %v2264
    %v2777 = vpack.c.b16 %v2269, %v2265
    %v2778 = vpack.c.b16 %v2274, %v2270
    %v2779 = vpack.c.b16 %v2275, %v2271
    %v2780 = vpack.c.b16 %v2276, %v2272
    %v2781 = vpack.c.b16 %v2277, %v2273
    %v2782 = vpack.c.b16 %v2282, %v2278
    %v2783 = vpack.c.b16 %v2283, %v2279
    %v2784 = vpack.c.b16 %v2284, %v2280
    %v2785 = vpack.c.b16 %v2285, %v2281
    %v2786 = vpack.c.b16 %v2290, %v2286
    %v2787 = vpack.c.b16 %v2291, %v2287
    %v2788 = vpack.c.b16 %v2292, %v2288
    %v2789 = vpack.c.b16 %v2293, %v2289
    %v2790 = vpack.c.b16 %v2298, %v2294
    %v2791 = vpack.c.b16 %v2299, %v2295
    %v2792 = vpack.c.b16 %v2300, %v2296
    %v2793 = vpack.c.b16 %v2301, %v2297
    %v2794 = vpack.c.b16 %v2306, %v2302
    %v2795 = vpack.c.b16 %v2307, %v2303
    %v2796 = vpack.c.b16 %v2308, %v2304
    %v2797 = vpack.c.b16 %v2309, %v2305
    %v2798 = vpack.c.b16 %v2314, %v2310
    %v2799 = vpack.c.b16 %v2315, %v2311
    %v2800 = vpack.c.b16 %v2316, %v2312
    %v2801 = vpack.c.b16 %v2317, %v2313
    %v2802 = vpack.c.b16 %v2322, %v2318
    %v2803 = vpack.c.b16 %v2323, %v2319
    %v2804 = vpack.c.b16 %v2324, %v2320
    %v2805 = vpack.c.b16 %v2325, %v2321
    %v2806 = vpack.c.b16 %v2330, %v2326
    %v2807 = vpack.c.b16 %v2331, %v2327
    %v2808 = vpack.c.b16 %v2332, %v2328
    %v2809 = vpack.c.b16 %v2333, %v2329
    %v2810 = vpack.c.b16 %v2338, %v2334
    %v2811 = vpack.c.b16 %v2339, %v2335
    %v2812 = vpack.c.b16 %v2340, %v2336
    %v2813 = vpack.c.b16 %v2341, %v2337
    %v2814 = vpack.c.b16 %v2346, %v2342
    %v2815 = vpack.c.b16 %v2347, %v2343
    %v2816 = vpack.c.b16 %v2348, %v2344
    %v2817 = vpack.c.b16 %v2349, %v2345
    %v2818 = vpack.c.b16 %v2354, %v2350
    %v2819 = vpack.c.b16 %v2355, %v2351
    %v2820 = vpack.c.b16 %v2356, %v2352
    %v2821 = vpack.c.b16 %v2357, %v2353
    %v2822 = vpack.c.b16 %v2362, %v2358
    %v2823 = vpack.c.b16 %v2363, %v2359
    %v2824 = vpack.c.b16 %v2364, %v2360
    %v2825 = vpack.c.b16 %v2365, %v2361
    %v2826 = vpack.c.b16 %v2370, %v2366
    %v2827 = vpack.c.b16 %v2371, %v2367
    %v2828 = vpack.c.b16 %v2372, %v2368
    %v2829 = vpack.c.b16 %v2373, %v2369
    %v2830 = vpack.c.b16 %v2378, %v2374
    %v2831 = vpack.c.b16 %v2379, %v2375
    %v2832 = vpack.c.b16 %v2380, %v2376
    %v2833 = vpack.c.b16 %v2381, %v2377
    %v2834 = vpack.c.b16 %v2386, %v2382
    %v2835 = vpack.c.b16 %v2387, %v2383
    %v2836 = vpack.c.b16 %v2388, %v2384
    %v2837 = vpack.c.b16 %v2389, %v2385
    %v2838 = vpack.c.b16 %v2394, %v2390
    %v2839 = vpack.c.b16 %v2395, %v2391
    %v2840 = vpack.c.b16 %v2396, %v2392
    %v2841 = vpack.c.b16 %v2397, %v2393
    %v2842 = vpack.c.b16 %v2402, %v2398
    %v2843 = vpack.c.b16 %v2403, %v2399
    %v2844 = vpack.c.b16 %v2404, %v2400
    %v2845 = vpack.c.b16 %v2405, %v2401
    %v2846 = vpack.c.b16 %v2410, %v2406
    %v2847 = vpack.c.b16 %v2411, %v2407
    %v2848 = vpack.c.b16 %v2412, %v2408
    %v2849 = vpack.c.b16 %v2413, %v2409
    %v2850 = vpack.c.b16 %v2418, %v2414
    %v2851 = vpack.c.b16 %v2419, %v2415
    %v2852 = vpack.c.b16 %v2420, %v2416
    %v2853 = vpack.c.b16 %v2421, %v2417
    %v2854 = vpack.c.b16 %v2426, %v2422
    %v2855 = vpack.c.b16 %v2427, %v2423
    %v2856 = vpack.c.b16 %v2428, %v2424
    %v2857 = vpack.c.b16 %v2429, %v2425
    %v2858 = vpack.c.b16 %v2434, %v2430
    %v2859 = vpack.c.b16 %v2435, %v2431
    %v2860 = vpack.c.b16 %v2436, %v2432
    %v2861 = vpack.c.b16 %v2437, %v2433
    %v2862 = vpack.c.b16 %v2442, %v2438
    %v2863 = vpack.c.b16 %v2443, %v2439
    %v2864 = vpack.c.b16 %v2444, %v2440
    %v2865 = vpack.c.b16 %v2445, %v2441
    %v2866 = vpack.c.b16 %v2450, %v2446
    %v2867 = vpack.c.b16 %v2451, %v2447
    %v2868 = vpack.c.b16 %v2452, %v2448
    %v2869 = vpack.c.b16 %v2453, %v2449
    %v2870 = vpack.c.b16 %v2458, %v2454
    %v2871 = vpack.c.b16 %v2459, %v2455
    %v2872 = vpack.c.b16 %v2460, %v2456
    %v2873 = vpack.c.b16 %v2461, %v2457
    %v2874 = vpack.c.b16 %v2466, %v2462
    %v2875 = vpack.c.b16 %v2467, %v2463
    %v2876 = vpack.c.b16 %v2468, %v2464
    %v2877 = vpack.c.b16 %v2469, %v2465
    %v2878 = vpack.c.b16 %v2474, %v2470
    %v2879 = vpack.c.b16 %v2475, %v2471
    %v2880 = vpack.c.b16 %v2476, %v2472
    %v2881 = vpack.c.b16 %v2477, %v2473
    %v2882 = vpack.c.b16 %v2482, %v2478
    %v2883 = vpack.c.b16 %v2483, %v2479
    %v2884 = vpack.c.b16 %v2484, %v2480
    %v2885 = vpack.c.b16 %v2485, %v2481
    %v2886 = vpack.c.b16 %v2490, %v2486
    %v2887 = vpack.c.b16 %v2491, %v2487
    %v2888 = vpack.c.b16 %v2492, %v2488
    %v2889 = vpack.c.b16 %v2493, %v2489
    %v2890 = vpack.c.b16 %v2498, %v2494
    %v2891 = vpack.c.b16 %v2499, %v2495
    %v2892 = vpack.c.b16 %v2500, %v2496
    %v2893 = vpack.c.b16 %v2501, %v2497
    %v2894 = vpack.c.b16 %v2506, %v2502
    %v2895 = vpack.c.b16 %v2507, %v2503
    %v2896 = vpack.c.b16 %v2508, %v2504
    %v2897 = vpack.c.b16 %v2509, %v2505
    %v2898 = vpack.c.b16 %v2514, %v2510
    %v2899 = vpack.c.b16 %v2515, %v2511
    %v2900 = vpack.c.b16 %v2516, %v2512
    %v2901 = vpack.c.b16 %v2517, %v2513
    %v2902 = vpack.c.b16 %v2522, %v2518
    %v2903 = vpack.c.b16 %v2523, %v2519
    %v2904 = vpack.c.b16 %v2524, %v2520
    %v2905 = vpack.c.b16 %v2525, %v2521
    %v2906 = vpack.c.b16 %v2530, %v2526
    %v2907 = vpack.c.b16 %v2531, %v2527
    %v2908 = vpack.c.b16 %v2532, %v2528
    %v2909 = vpack.c.b16 %v2533, %v2529
    %v2910 = vpack.c.b16 %v2538, %v2534
    %v2911 = vpack.c.b16 %v2539, %v2535
    %v2912 = vpack.c.b16 %v2540, %v2536
    %v2913 = vpack.c.b16 %v2541, %v2537
    %v2914 = vpack.c.b16 %v2546, %v2542
    %v2915 = vpack.c.b16 %v2547, %v2543
    %v2916 = vpack.c.b16 %v2548, %v2544
    %v2917 = vpack.c.b16 %v2549, %v2545
    %v2918 = vpack.c.b16 %v2554, %v2550
    %v2919 = vpack.c.b16 %v2555, %v2551
    %v2920 = vpack.c.b16 %v2556, %v2552
    %v2921 = vpack.c.b16 %v2557, %v2553
    %v2922 = vpack.c.b16 %v2562, %v2558
    %v2923 = vpack.c.b16 %v2563, %v2559
    %v2924 = vpack.c.b16 %v2564, %v2560
    %v2925 = vpack.c.b16 %v2565, %v2561
    %v2926 = vpack.c.b16 %v2570, %v2566
    %v2927 = vpack.c.b16 %v2571, %v2567
    %v2928 = vpack.c.b16 %v2572, %v2568
    %v2929 = vpack.c.b16 %v2573, %v2569
    %v2930 = vpack.c.b16 %v2578, %v2574
    %v2931 = vpack.c.b16 %v2579, %v2575
    %v2932 = vpack.c.b16 %v2580, %v2576
    %v2933 = vpack.c.b16 %v2581, %v2577
    %v2934 = vpack.c.b16 %v2586, %v2582
    %v2935 = vpack.c.b16 %v2587, %v2583
    %v2936 = vpack.c.b16 %v2588, %v2584
    %v2937 = vpack.c.b16 %v2589, %v2585
    %v2938 = vpack.c.b16 %v2594, %v2590
    %v2939 = vpack.c.b16 %v2595, %v2591
    %v2940 = vpack.c.b16 %v2596, %v2592
    %v2941 = vpack.c.b16 %v2597, %v2593
    %v2942 = vpack.c.b16 %v2602, %v2598
    %v2943 = vpack.c.b16 %v2603, %v2599
    %v2944 = vpack.c.b16 %v2604, %v2600
    %v2945 = vpack.c.b16 %v2605, %v2601
    %v2946 = vpack.c.b16 %v2610, %v2606
    %v2947 = vpack.c.b16 %v2611, %v2607
    %v2948 = vpack.c.b16 %v2612, %v2608
    %v2949 = vpack.c.b16 %v2613, %v2609
    %v2950 = vpack.c.b16 %v2618, %v2614
    %v2951 = vpack.c.b16 %v2619, %v2615
    %v2952 = vpack.c.b16 %v2620, %v2616
    %v2953 = vpack.c.b16 %v2621, %v2617
    %v2954 = vpack.c.b16 %v2626, %v2622
    %v2955 = vpack.c.b16 %v2627, %v2623
    %v2956 = vpack.c.b16 %v2628, %v2624
    %v2957 = vpack.c.b16 %v2629, %v2625
    %v2958 = vpack.c.b16 %v2634, %v2630
    %v2959 = vpack.c.b16 %v2635, %v2631
    %v2960 = vpack.c.b16 %v2636, %v2632
    %v2961 = vpack.c.b16 %v2637, %v2633
    %v2962 = vpack.c.b16 %v2642, %v2638
    %v2963 = vpack.c.b16 %v2643, %v2639
    %v2964 = vpack.c.b16 %v2644, %v2640
    %v2965 = vpack.c.b16 %v2645, %v2641
    %3286 = vmatprep.subr.bf16.mxu0 %v2675
    %3287 = vmatpush1.bf16.msra.mxu0 %v2674
    %3288 = vmatprep.subr.bf16.mxu0 %v2671
    %3289 = vmatpush1.bf16.msra.mxu0 %v2670
    %3290 = vmatprep.subr.bf16.mxu0 %v2667
    %3291 = vmatpush1.bf16.msra.mxu0 %v2666
    %3292 = vmatprep.subr.bf16.mxu0 %v2663
    %3293 = vmatpush1.bf16.msra.mxu0 %v2662
    %3294 = vmatprep.subr.bf16.mxu0 %v2659
    %3295 = vmatpush1.bf16.msra.mxu0 %v2658
    %3296 = vmatprep.subr.bf16.mxu0 %v2655
    %3297 = vmatpush1.bf16.msra.mxu0 %v2654
    %3298 = vmatprep.subr.bf16.mxu0 %v2651
    %3299 = vmatpush1.bf16.msra.mxu0 %v2650
    %3300 = vmatprep.subr.bf16.mxu0 %v2647
    %3301 = vmatpush1.bf16.msra.mxu0 %v2646
    %3302 = vmatprep.subr.bf16.mxu0 %v2707
    %3303 = vmatpush2.bf16.msra.mxu0 %v2706
    %3304 = vmatprep.subr.bf16.mxu0 %v2703
    %3305 = vmatpush2.bf16.msra.mxu0 %v2702
    %3306 = vmatprep.subr.bf16.mxu0 %v2699
    %3307 = vmatpush2.bf16.msra.mxu0 %v2698
    %3308 = vmatprep.subr.bf16.mxu0 %v2695
    %3309 = vmatpush2.bf16.msra.mxu0 %v2694
    %3310 = vmatprep.subr.bf16.mxu0 %v2691
    %3311 = vmatpush2.bf16.msra.mxu0 %v2690
    %3312 = vmatprep.subr.bf16.mxu0 %v2687
    %3313 = vmatpush2.bf16.msra.mxu0 %v2686
    %3314 = vmatprep.subr.bf16.mxu0 %v2683
    %3315 = vmatpush2.bf16.msra.mxu0 %v2682
    %3316 = vmatprep.subr.bf16.mxu0 %v2679
    %3317 = vmatpush2.bf16.msra.mxu0 %v2678
    %3318 = vmatprep.mubr.bf16.mxu0 %v1607
    %3319 = vmatmul.mubr.bf16.gmra.mxu0 %v1606
    %v3320 = vpop.f32.mrf.mxu0
    %v3321 = vadd.f32 0.0, %v3320
    %v3322 = vpop.f32.mrf.mxu0
    %v3323 = vadd.f32 0.0, %v3322
    %v3324 = vpop.f32.mrf.mxu0
    %v3325 = vadd.f32 0.0, %v3324
    %v3326 = vpop.f32.mrf.mxu0
    %v3327 = vadd.f32 0.0, %v3326
    %3328 = vmatprep.mubr.bf16.mxu0 %v1617
    %3329 = vmatmul.mubr.bf16.gmra.mxu0 %v1616
    %v3330 = vpop.f32.mrf.mxu0
    %v3331 = vadd.f32 0.0, %v3330
    %v3332 = vpop.f32.mrf.mxu0
    %v3333 = vadd.f32 0.0, %v3332
    %v3334 = vpop.f32.mrf.mxu0
    %v3335 = vadd.f32 0.0, %v3334
    %v3336 = vpop.f32.mrf.mxu0
    %v3337 = vadd.f32 0.0, %v3336
    %3338 = vmatprep.mubr.bf16.mxu0 %v1627
    %3339 = vmatmul.mubr.bf16.gmra.mxu0 %v1626
    %v3340 = vpop.f32.mrf.mxu0
    %v3341 = vadd.f32 0.0, %v3340
    %v3342 = vpop.f32.mrf.mxu0
    %v3343 = vadd.f32 0.0, %v3342
    %v3344 = vpop.f32.mrf.mxu0
    %v3345 = vadd.f32 0.0, %v3344
    %v3346 = vpop.f32.mrf.mxu0
    %v3347 = vadd.f32 0.0, %v3346
    %3348 = vmatprep.mubr.bf16.mxu0 %v1637
    %3349 = vmatmul.mubr.bf16.gmra.mxu0 %v1636
    %v3350 = vpop.f32.mrf.mxu0
    %v3351 = vadd.f32 0.0, %v3350
    %v3352 = vpop.f32.mrf.mxu0
    %v3353 = vadd.f32 0.0, %v3352
    %v3354 = vpop.f32.mrf.mxu0
    %v3355 = vadd.f32 0.0, %v3354
    %v3356 = vpop.f32.mrf.mxu0
    %v3357 = vadd.f32 0.0, %v3356
    %3358 = vdwg.mxu0
    %3359 = vmatprep.subr.bf16.mxu0 %v2739
    %3360 = vmatpush1.bf16.msra.mxu0 %v2738
    %3361 = vmatprep.subr.bf16.mxu0 %v2735
    %3362 = vmatpush1.bf16.msra.mxu0 %v2734
    %3363 = vmatprep.subr.bf16.mxu0 %v2731
    %3364 = vmatpush1.bf16.msra.mxu0 %v2730
    %3365 = vmatprep.subr.bf16.mxu0 %v2727
    %3366 = vmatpush1.bf16.msra.mxu0 %v2726
    %3367 = vmatprep.subr.bf16.mxu0 %v2723
    %3368 = vmatpush1.bf16.msra.mxu0 %v2722
    %3369 = vmatprep.subr.bf16.mxu0 %v2719
    %3370 = vmatpush1.bf16.msra.mxu0 %v2718
    %3371 = vmatprep.subr.bf16.mxu0 %v2715
    %3372 = vmatpush1.bf16.msra.mxu0 %v2714
    %3373 = vmatprep.subr.bf16.mxu0 %v2711
    %3374 = vmatpush1.bf16.msra.mxu0 %v2710
    %3375 = vmatprep.subr.bf16.mxu0 %v2771
    %3376 = vmatpush2.bf16.msra.mxu0 %v2770
    %3377 = vmatprep.subr.bf16.mxu0 %v2767
    %3378 = vmatpush2.bf16.msra.mxu0 %v2766
    %3379 = vmatprep.subr.bf16.mxu0 %v2763
    %3380 = vmatpush2.bf16.msra.mxu0 %v2762
    %3381 = vmatprep.subr.bf16.mxu0 %v2759
    %3382 = vmatpush2.bf16.msra.mxu0 %v2758
    %3383 = vmatprep.subr.bf16.mxu0 %v2755
    %3384 = vmatpush2.bf16.msra.mxu0 %v2754
    %3385 = vmatprep.subr.bf16.mxu0 %v2751
    %3386 = vmatpush2.bf16.msra.mxu0 %v2750
    %3387 = vmatprep.subr.bf16.mxu0 %v2747
    %3388 = vmatpush2.bf16.msra.mxu0 %v2746
    %3389 = vmatprep.subr.bf16.mxu0 %v2743
    %3390 = vmatpush2.bf16.msra.mxu0 %v2742
    %3391 = vmatprep.mubr.bf16.mxu0 %v1609
    %3392 = vmatmul.mubr.bf16.gmra.mxu0 %v1608
    %v3393 = vpop.f32.mrf.mxu0
    %v3394 = vadd.f32 %v3321, %v3393
    %v3395 = vpop.f32.mrf.mxu0
    %v3396 = vadd.f32 %v3323, %v3395
    %v3397 = vpop.f32.mrf.mxu0
    %v3398 = vadd.f32 %v3325, %v3397
    %v3399 = vpop.f32.mrf.mxu0
    %v3400 = vadd.f32 %v3327, %v3399
    %3401 = vmatprep.mubr.bf16.mxu0 %v1619
    %3402 = vmatmul.mubr.bf16.gmra.mxu0 %v1618
    %v3403 = vpop.f32.mrf.mxu0
    %v3404 = vadd.f32 %v3331, %v3403
    %v3405 = vpop.f32.mrf.mxu0
    %v3406 = vadd.f32 %v3333, %v3405
    %v3407 = vpop.f32.mrf.mxu0
    %v3408 = vadd.f32 %v3335, %v3407
    %v3409 = vpop.f32.mrf.mxu0
    %v3410 = vadd.f32 %v3337, %v3409
    %3411 = vmatprep.mubr.bf16.mxu0 %v1629
    %3412 = vmatmul.mubr.bf16.gmra.mxu0 %v1628
    %v3413 = vpop.f32.mrf.mxu0
    %v3414 = vadd.f32 %v3341, %v3413
    %v3415 = vpop.f32.mrf.mxu0
    %v3416 = vadd.f32 %v3343, %v3415
    %v3417 = vpop.f32.mrf.mxu0
    %v3418 = vadd.f32 %v3345, %v3417
    %v3419 = vpop.f32.mrf.mxu0
    %v3420 = vadd.f32 %v3347, %v3419
    %3421 = vmatprep.mubr.bf16.mxu0 %v1639
    %3422 = vmatmul.mubr.bf16.gmra.mxu0 %v1638
    %v3423 = vpop.f32.mrf.mxu0
    %v3424 = vadd.f32 %v3351, %v3423
    %v3425 = vpop.f32.mrf.mxu0
    %v3426 = vadd.f32 %v3353, %v3425
    %v3427 = vpop.f32.mrf.mxu0
    %v3428 = vadd.f32 %v3355, %v3427
    %v3429 = vpop.f32.mrf.mxu0
    %v3430 = vadd.f32 %v3357, %v3429
    %3431 = vdwg.mxu0
    %3432 = vmatprep.subr.bf16.mxu0 %v2803
    %3433 = vmatpush1.bf16.msra.mxu0 %v2802
    %3434 = vmatprep.subr.bf16.mxu0 %v2799
    %3435 = vmatpush1.bf16.msra.mxu0 %v2798
    %3436 = vmatprep.subr.bf16.mxu0 %v2795
    %3437 = vmatpush1.bf16.msra.mxu0 %v2794
    %3438 = vmatprep.subr.bf16.mxu0 %v2791
    %3439 = vmatpush1.bf16.msra.mxu0 %v2790
    %3440 = vmatprep.subr.bf16.mxu0 %v2787
    %3441 = vmatpush1.bf16.msra.mxu0 %v2786
    %3442 = vmatprep.subr.bf16.mxu0 %v2783
    %3443 = vmatpush1.bf16.msra.mxu0 %v2782
    %3444 = vmatprep.subr.bf16.mxu0 %v2779
    %3445 = vmatpush1.bf16.msra.mxu0 %v2778
    %3446 = vmatprep.subr.bf16.mxu0 %v2775
    %3447 = vmatpush1.bf16.msra.mxu0 %v2774
    %3448 = vmatprep.subr.bf16.mxu0 %v2835
    %3449 = vmatpush2.bf16.msra.mxu0 %v2834
    %3450 = vmatprep.subr.bf16.mxu0 %v2831
    %3451 = vmatpush2.bf16.msra.mxu0 %v2830
    %3452 = vmatprep.subr.bf16.mxu0 %v2827
    %3453 = vmatpush2.bf16.msra.mxu0 %v2826
    %3454 = vmatprep.subr.bf16.mxu0 %v2823
    %3455 = vmatpush2.bf16.msra.mxu0 %v2822
    %3456 = vmatprep.subr.bf16.mxu0 %v2819
    %3457 = vmatpush2.bf16.msra.mxu0 %v2818
    %3458 = vmatprep.subr.bf16.mxu0 %v2815
    %3459 = vmatpush2.bf16.msra.mxu0 %v2814
    %3460 = vmatprep.subr.bf16.mxu0 %v2811
    %3461 = vmatpush2.bf16.msra.mxu0 %v2810
    %3462 = vmatprep.subr.bf16.mxu0 %v2807
    %3463 = vmatpush2.bf16.msra.mxu0 %v2806
    %3464 = vmatprep.mubr.bf16.mxu0 %v1611
    %3465 = vmatmul.mubr.bf16.gmra.mxu0 %v1610
    %v3466 = vpop.f32.mrf.mxu0
    %v3467 = vadd.f32 %v3394, %v3466
    %v3468 = vpop.f32.mrf.mxu0
    %v3469 = vadd.f32 %v3396, %v3468
    %v3470 = vpop.f32.mrf.mxu0
    %v3471 = vadd.f32 %v3398, %v3470
    %v3472 = vpop.f32.mrf.mxu0
    %v3473 = vadd.f32 %v3400, %v3472
    %3474 = vmatprep.mubr.bf16.mxu0 %v1621
    %3475 = vmatmul.mubr.bf16.gmra.mxu0 %v1620
    %v3476 = vpop.f32.mrf.mxu0
    %v3477 = vadd.f32 %v3404, %v3476
    %v3478 = vpop.f32.mrf.mxu0
    %v3479 = vadd.f32 %v3406, %v3478
    %v3480 = vpop.f32.mrf.mxu0
    %v3481 = vadd.f32 %v3408, %v3480
    %v3482 = vpop.f32.mrf.mxu0
    %v3483 = vadd.f32 %v3410, %v3482
    %3484 = vmatprep.mubr.bf16.mxu0 %v1631
    %3485 = vmatmul.mubr.bf16.gmra.mxu0 %v1630
    %v3486 = vpop.f32.mrf.mxu0
    %v3487 = vadd.f32 %v3414, %v3486
    %v3488 = vpop.f32.mrf.mxu0
    %v3489 = vadd.f32 %v3416, %v3488
    %v3490 = vpop.f32.mrf.mxu0
    %v3491 = vadd.f32 %v3418, %v3490
    %v3492 = vpop.f32.mrf.mxu0
    %v3493 = vadd.f32 %v3420, %v3492
    %3494 = vmatprep.mubr.bf16.mxu0 %v1641
    %3495 = vmatmul.mubr.bf16.gmra.mxu0 %v1640
    %v3496 = vpop.f32.mrf.mxu0
    %v3497 = vadd.f32 %v3424, %v3496
    %v3498 = vpop.f32.mrf.mxu0
    %v3499 = vadd.f32 %v3426, %v3498
    %v3500 = vpop.f32.mrf.mxu0
    %v3501 = vadd.f32 %v3428, %v3500
    %v3502 = vpop.f32.mrf.mxu0
    %v3503 = vadd.f32 %v3430, %v3502
    %3504 = vdwg.mxu0
    %3505 = vmatprep.subr.bf16.mxu0 %v2867
    %3506 = vmatpush1.bf16.msra.mxu0 %v2866
    %3507 = vmatprep.subr.bf16.mxu0 %v2863
    %3508 = vmatpush1.bf16.msra.mxu0 %v2862
    %3509 = vmatprep.subr.bf16.mxu0 %v2859
    %3510 = vmatpush1.bf16.msra.mxu0 %v2858
    %3511 = vmatprep.subr.bf16.mxu0 %v2855
    %3512 = vmatpush1.bf16.msra.mxu0 %v2854
    %3513 = vmatprep.subr.bf16.mxu0 %v2851
    %3514 = vmatpush1.bf16.msra.mxu0 %v2850
    %3515 = vmatprep.subr.bf16.mxu0 %v2847
    %3516 = vmatpush1.bf16.msra.mxu0 %v2846
    %3517 = vmatprep.subr.bf16.mxu0 %v2843
    %3518 = vmatpush1.bf16.msra.mxu0 %v2842
    %3519 = vmatprep.subr.bf16.mxu0 %v2839
    %3520 = vmatpush1.bf16.msra.mxu0 %v2838
    %3521 = vmatprep.subr.bf16.mxu0 %v2899
    %3522 = vmatpush2.bf16.msra.mxu0 %v2898
    %3523 = vmatprep.subr.bf16.mxu0 %v2895
    %3524 = vmatpush2.bf16.msra.mxu0 %v2894
    %3525 = vmatprep.subr.bf16.mxu0 %v2891
    %3526 = vmatpush2.bf16.msra.mxu0 %v2890
    %3527 = vmatprep.subr.bf16.mxu0 %v2887
    %3528 = vmatpush2.bf16.msra.mxu0 %v2886
    %3529 = vmatprep.subr.bf16.mxu0 %v2883
    %3530 = vmatpush2.bf16.msra.mxu0 %v2882
    %3531 = vmatprep.subr.bf16.mxu0 %v2879
    %3532 = vmatpush2.bf16.msra.mxu0 %v2878
    %3533 = vmatprep.subr.bf16.mxu0 %v2875
    %3534 = vmatpush2.bf16.msra.mxu0 %v2874
    %3535 = vmatprep.subr.bf16.mxu0 %v2871
    %3536 = vmatpush2.bf16.msra.mxu0 %v2870
    %3537 = vmatprep.mubr.bf16.mxu0 %v1613
    %3538 = vmatmul.mubr.bf16.gmra.mxu0 %v1612
    %v3539 = vpop.f32.mrf.mxu0
    %v3540 = vadd.f32 %v3467, %v3539
    %v3541 = vpop.f32.mrf.mxu0
    %v3542 = vadd.f32 %v3469, %v3541
    %v3543 = vpop.f32.mrf.mxu0
    %v3544 = vadd.f32 %v3471, %v3543
    %v3545 = vpop.f32.mrf.mxu0
    %v3546 = vadd.f32 %v3473, %v3545
    %3547 = vmatprep.mubr.bf16.mxu0 %v1623
    %3548 = vmatmul.mubr.bf16.gmra.mxu0 %v1622
    %v3549 = vpop.f32.mrf.mxu0
    %v3550 = vadd.f32 %v3477, %v3549
    %v3551 = vpop.f32.mrf.mxu0
    %v3552 = vadd.f32 %v3479, %v3551
    %v3553 = vpop.f32.mrf.mxu0
    %v3554 = vadd.f32 %v3481, %v3553
    %v3555 = vpop.f32.mrf.mxu0
    %v3556 = vadd.f32 %v3483, %v3555
    %3557 = vmatprep.mubr.bf16.mxu0 %v1633
    %3558 = vmatmul.mubr.bf16.gmra.mxu0 %v1632
    %v3559 = vpop.f32.mrf.mxu0
    %v3560 = vadd.f32 %v3487, %v3559
    %v3561 = vpop.f32.mrf.mxu0
    %v3562 = vadd.f32 %v3489, %v3561
    %v3563 = vpop.f32.mrf.mxu0
    %v3564 = vadd.f32 %v3491, %v3563
    %v3565 = vpop.f32.mrf.mxu0
    %v3566 = vadd.f32 %v3493, %v3565
    %3567 = vmatprep.mubr.bf16.mxu0 %v1643
    %3568 = vmatmul.mubr.bf16.gmra.mxu0 %v1642
    %v3569 = vpop.f32.mrf.mxu0
    %v3570 = vadd.f32 %v3497, %v3569
    %v3571 = vpop.f32.mrf.mxu0
    %v3572 = vadd.f32 %v3499, %v3571
    %v3573 = vpop.f32.mrf.mxu0
    %v3574 = vadd.f32 %v3501, %v3573
    %v3575 = vpop.f32.mrf.mxu0
    %v3576 = vadd.f32 %v3503, %v3575
    %3577 = vdwg.mxu0
    %3578 = vmatprep.subr.bf16.mxu0 %v2931
    %3579 = vmatpush1.bf16.msra.mxu0 %v2930
    %3580 = vmatprep.subr.bf16.mxu0 %v2927
    %3581 = vmatpush1.bf16.msra.mxu0 %v2926
    %3582 = vmatprep.subr.bf16.mxu0 %v2923
    %3583 = vmatpush1.bf16.msra.mxu0 %v2922
    %3584 = vmatprep.subr.bf16.mxu0 %v2919
    %3585 = vmatpush1.bf16.msra.mxu0 %v2918
    %3586 = vmatprep.subr.bf16.mxu0 %v2915
    %3587 = vmatpush1.bf16.msra.mxu0 %v2914
    %3588 = vmatprep.subr.bf16.mxu0 %v2911
    %3589 = vmatpush1.bf16.msra.mxu0 %v2910
    %3590 = vmatprep.subr.bf16.mxu0 %v2907
    %3591 = vmatpush1.bf16.msra.mxu0 %v2906
    %3592 = vmatprep.subr.bf16.mxu0 %v2903
    %3593 = vmatpush1.bf16.msra.mxu0 %v2902
    %3594 = vmatprep.subr.bf16.mxu0 %v2963
    %3595 = vmatpush2.bf16.msra.mxu0 %v2962
    %3596 = vmatprep.subr.bf16.mxu0 %v2959
    %3597 = vmatpush2.bf16.msra.mxu0 %v2958
    %3598 = vmatprep.subr.bf16.mxu0 %v2955
    %3599 = vmatpush2.bf16.msra.mxu0 %v2954
    %3600 = vmatprep.subr.bf16.mxu0 %v2951
    %3601 = vmatpush2.bf16.msra.mxu0 %v2950
    %3602 = vmatprep.subr.bf16.mxu0 %v2947
    %3603 = vmatpush2.bf16.msra.mxu0 %v2946
    %3604 = vmatprep.subr.bf16.mxu0 %v2943
    %3605 = vmatpush2.bf16.msra.mxu0 %v2942
    %3606 = vmatprep.subr.bf16.mxu0 %v2939
    %3607 = vmatpush2.bf16.msra.mxu0 %v2938
    %3608 = vmatprep.subr.bf16.mxu0 %v2935
    %3609 = vmatpush2.bf16.msra.mxu0 %v2934
    %3610 = vmatprep.mubr.bf16.mxu0 %v1615
    %3611 = vmatmul.mubr.bf16.gmra.mxu0 %v1614
    %v3612 = vpop.f32.mrf.mxu0
    %v3613 = vadd.f32 %v3540, %v3612
    %v3614 = vpop.f32.mrf.mxu0
    %v3615 = vadd.f32 %v3542, %v3614
    %v3616 = vpop.f32.mrf.mxu0
    %v3617 = vadd.f32 %v3544, %v3616
    %v3618 = vpop.f32.mrf.mxu0
    %v3619 = vadd.f32 %v3546, %v3618
    %3620 = vmatprep.mubr.bf16.mxu0 %v1625
    %3621 = vmatmul.mubr.bf16.gmra.mxu0 %v1624
    %v3622 = vpop.f32.mrf.mxu0
    %v3623 = vadd.f32 %v3550, %v3622
    %v3624 = vpop.f32.mrf.mxu0
    %v3625 = vadd.f32 %v3552, %v3624
    %v3626 = vpop.f32.mrf.mxu0
    %v3627 = vadd.f32 %v3554, %v3626
    %v3628 = vpop.f32.mrf.mxu0
    %v3629 = vadd.f32 %v3556, %v3628
    %3630 = vmatprep.mubr.bf16.mxu0 %v1635
    %3631 = vmatmul.mubr.bf16.gmra.mxu0 %v1634
    %v3632 = vpop.f32.mrf.mxu0
    %v3633 = vadd.f32 %v3560, %v3632
    %v3634 = vpop.f32.mrf.mxu0
    %v3635 = vadd.f32 %v3562, %v3634
    %v3636 = vpop.f32.mrf.mxu0
    %v3637 = vadd.f32 %v3564, %v3636
    %v3638 = vpop.f32.mrf.mxu0
    %v3639 = vadd.f32 %v3566, %v3638
    %3640 = vmatprep.mubr.bf16.mxu0 %v1645
    %3641 = vmatmul.mubr.bf16.gmra.mxu0 %v1644
    %v3642 = vpop.f32.mrf.mxu0
    %v3643 = vadd.f32 %v3570, %v3642
    %v3644 = vpop.f32.mrf.mxu0
    %v3645 = vadd.f32 %v3572, %v3644
    %v3646 = vpop.f32.mrf.mxu0
    %v3647 = vadd.f32 %v3574, %v3646
    %v3648 = vpop.f32.mrf.mxu0
    %v3649 = vadd.f32 %v3576, %v3648
    %3650 = vdwg.mxu0
    %3651 = vmatprep.subr.bf16.mxu0 %v2677
    %3652 = vmatpush1.bf16.msra.mxu0 %v2676
    %3653 = vmatprep.subr.bf16.mxu0 %v2673
    %3654 = vmatpush1.bf16.msra.mxu0 %v2672
    %3655 = vmatprep.subr.bf16.mxu0 %v2669
    %3656 = vmatpush1.bf16.msra.mxu0 %v2668
    %3657 = vmatprep.subr.bf16.mxu0 %v2665
    %3658 = vmatpush1.bf16.msra.mxu0 %v2664
    %3659 = vmatprep.subr.bf16.mxu0 %v2661
    %3660 = vmatpush1.bf16.msra.mxu0 %v2660
    %3661 = vmatprep.subr.bf16.mxu0 %v2657
    %3662 = vmatpush1.bf16.msra.mxu0 %v2656
    %3663 = vmatprep.subr.bf16.mxu0 %v2653
    %3664 = vmatpush1.bf16.msra.mxu0 %v2652
    %3665 = vmatprep.subr.bf16.mxu0 %v2649
    %3666 = vmatpush1.bf16.msra.mxu0 %v2648
    %3667 = vmatprep.subr.bf16.mxu0 %v2709
    %3668 = vmatpush2.bf16.msra.mxu0 %v2708
    %3669 = vmatprep.subr.bf16.mxu0 %v2705
    %3670 = vmatpush2.bf16.msra.mxu0 %v2704
    %3671 = vmatprep.subr.bf16.mxu0 %v2701
    %3672 = vmatpush2.bf16.msra.mxu0 %v2700
    %3673 = vmatprep.subr.bf16.mxu0 %v2697
    %3674 = vmatpush2.bf16.msra.mxu0 %v2696
    %3675 = vmatprep.subr.bf16.mxu0 %v2693
    %3676 = vmatpush2.bf16.msra.mxu0 %v2692
    %3677 = vmatprep.subr.bf16.mxu0 %v2689
    %3678 = vmatpush2.bf16.msra.mxu0 %v2688
    %3679 = vmatprep.subr.bf16.mxu0 %v2685
    %3680 = vmatpush2.bf16.msra.mxu0 %v2684
    %3681 = vmatprep.subr.bf16.mxu0 %v2681
    %3682 = vmatpush2.bf16.msra.mxu0 %v2680
    %3683 = vmatprep.mubr.bf16.mxu0 %v1607
    %3684 = vmatmul.mubr.bf16.gmra.mxu0 %v1606
    %v3685 = vpop.f32.mrf.mxu0
    %v3686 = vadd.f32 0.0, %v3685
    %v3687 = vpop.f32.mrf.mxu0
    %v3688 = vadd.f32 0.0, %v3687
    %v3689 = vpop.f32.mrf.mxu0
    %v3690 = vadd.f32 0.0, %v3689
    %v3691 = vpop.f32.mrf.mxu0
    %v3692 = vadd.f32 0.0, %v3691
    %3693 = vmatprep.mubr.bf16.mxu0 %v1617
    %3694 = vmatmul.mubr.bf16.gmra.mxu0 %v1616
    %v3695 = vpop.f32.mrf.mxu0
    %v3696 = vadd.f32 0.0, %v3695
    %v3697 = vpop.f32.mrf.mxu0
    %v3698 = vadd.f32 0.0, %v3697
    %v3699 = vpop.f32.mrf.mxu0
    %v3700 = vadd.f32 0.0, %v3699
    %v3701 = vpop.f32.mrf.mxu0
    %v3702 = vadd.f32 0.0, %v3701
    %3703 = vmatprep.mubr.bf16.mxu0 %v1627
    %3704 = vmatmul.mubr.bf16.gmra.mxu0 %v1626
    %v3705 = vpop.f32.mrf.mxu0
    %v3706 = vadd.f32 0.0, %v3705
    %v3707 = vpop.f32.mrf.mxu0
    %v3708 = vadd.f32 0.0, %v3707
    %v3709 = vpop.f32.mrf.mxu0
    %v3710 = vadd.f32 0.0, %v3709
    %v3711 = vpop.f32.mrf.mxu0
    %v3712 = vadd.f32 0.0, %v3711
    %3713 = vmatprep.mubr.bf16.mxu0 %v1637
    %3714 = vmatmul.mubr.bf16.gmra.mxu0 %v1636
    %v3715 = vpop.f32.mrf.mxu0
    %v3716 = vadd.f32 0.0, %v3715
    %v3717 = vpop.f32.mrf.mxu0
    %v3718 = vadd.f32 0.0, %v3717
    %v3719 = vpop.f32.mrf.mxu0
    %v3720 = vadd.f32 0.0, %v3719
    %v3721 = vpop.f32.mrf.mxu0
    %v3722 = vadd.f32 0.0, %v3721
    %3723 = vdwg.mxu0
    %3724 = vmatprep.subr.bf16.mxu0 %v2741
    %3725 = vmatpush1.bf16.msra.mxu0 %v2740
    %3726 = vmatprep.subr.bf16.mxu0 %v2737
    %3727 = vmatpush1.bf16.msra.mxu0 %v2736
    %3728 = vmatprep.subr.bf16.mxu0 %v2733
    %3729 = vmatpush1.bf16.msra.mxu0 %v2732
    %3730 = vmatprep.subr.bf16.mxu0 %v2729
    %3731 = vmatpush1.bf16.msra.mxu0 %v2728
    %3732 = vmatprep.subr.bf16.mxu0 %v2725
    %3733 = vmatpush1.bf16.msra.mxu0 %v2724
    %3734 = vmatprep.subr.bf16.mxu0 %v2721
    %3735 = vmatpush1.bf16.msra.mxu0 %v2720
    %3736 = vmatprep.subr.bf16.mxu0 %v2717
    %3737 = vmatpush1.bf16.msra.mxu0 %v2716
    %3738 = vmatprep.subr.bf16.mxu0 %v2713
    %3739 = vmatpush1.bf16.msra.mxu0 %v2712
    %3740 = vmatprep.subr.bf16.mxu0 %v2773
    %3741 = vmatpush2.bf16.msra.mxu0 %v2772
    %3742 = vmatprep.subr.bf16.mxu0 %v2769
    %3743 = vmatpush2.bf16.msra.mxu0 %v2768
    %3744 = vmatprep.subr.bf16.mxu0 %v2765
    %3745 = vmatpush2.bf16.msra.mxu0 %v2764
    %3746 = vmatprep.subr.bf16.mxu0 %v2761
    %3747 = vmatpush2.bf16.msra.mxu0 %v2760
    %3748 = vmatprep.subr.bf16.mxu0 %v2757
    %3749 = vmatpush2.bf16.msra.mxu0 %v2756
    %3750 = vmatprep.subr.bf16.mxu0 %v2753
    %3751 = vmatpush2.bf16.msra.mxu0 %v2752
    %3752 = vmatprep.subr.bf16.mxu0 %v2749
    %3753 = vmatpush2.bf16.msra.mxu0 %v2748
    %3754 = vmatprep.subr.bf16.mxu0 %v2745
    %3755 = vmatpush2.bf16.msra.mxu0 %v2744
    %3756 = vmatprep.mubr.bf16.mxu0 %v1609
    %3757 = vmatmul.mubr.bf16.gmra.mxu0 %v1608
    %v3758 = vpop.f32.mrf.mxu0
    %v3759 = vadd.f32 %v3686, %v3758
    %v3760 = vpop.f32.mrf.mxu0
    %v3761 = vadd.f32 %v3688, %v3760
    %v3762 = vpop.f32.mrf.mxu0
    %v3763 = vadd.f32 %v3690, %v3762
    %v3764 = vpop.f32.mrf.mxu0
    %v3765 = vadd.f32 %v3692, %v3764
    %3766 = vmatprep.mubr.bf16.mxu0 %v1619
    %3767 = vmatmul.mubr.bf16.gmra.mxu0 %v1618
    %v3768 = vpop.f32.mrf.mxu0
    %v3769 = vadd.f32 %v3696, %v3768
    %v3770 = vpop.f32.mrf.mxu0
    %v3771 = vadd.f32 %v3698, %v3770
    %v3772 = vpop.f32.mrf.mxu0
    %v3773 = vadd.f32 %v3700, %v3772
    %v3774 = vpop.f32.mrf.mxu0
    %v3775 = vadd.f32 %v3702, %v3774
    %3776 = vmatprep.mubr.bf16.mxu0 %v1629
    %3777 = vmatmul.mubr.bf16.gmra.mxu0 %v1628
    %v3778 = vpop.f32.mrf.mxu0
    %v3779 = vadd.f32 %v3706, %v3778
    %v3780 = vpop.f32.mrf.mxu0
    %v3781 = vadd.f32 %v3708, %v3780
    %v3782 = vpop.f32.mrf.mxu0
    %v3783 = vadd.f32 %v3710, %v3782
    %v3784 = vpop.f32.mrf.mxu0
    %v3785 = vadd.f32 %v3712, %v3784
    %3786 = vmatprep.mubr.bf16.mxu0 %v1639
    %3787 = vmatmul.mubr.bf16.gmra.mxu0 %v1638
    %v3788 = vpop.f32.mrf.mxu0
    %v3789 = vadd.f32 %v3716, %v3788
    %v3790 = vpop.f32.mrf.mxu0
    %v3791 = vadd.f32 %v3718, %v3790
    %v3792 = vpop.f32.mrf.mxu0
    %v3793 = vadd.f32 %v3720, %v3792
    %v3794 = vpop.f32.mrf.mxu0
    %v3795 = vadd.f32 %v3722, %v3794
    %3796 = vdwg.mxu0
    %3797 = vmatprep.subr.bf16.mxu0 %v2805
    %3798 = vmatpush1.bf16.msra.mxu0 %v2804
    %3799 = vmatprep.subr.bf16.mxu0 %v2801
    %3800 = vmatpush1.bf16.msra.mxu0 %v2800
    %3801 = vmatprep.subr.bf16.mxu0 %v2797
    %3802 = vmatpush1.bf16.msra.mxu0 %v2796
    %3803 = vmatprep.subr.bf16.mxu0 %v2793
    %3804 = vmatpush1.bf16.msra.mxu0 %v2792
    %3805 = vmatprep.subr.bf16.mxu0 %v2789
    %3806 = vmatpush1.bf16.msra.mxu0 %v2788
    %3807 = vmatprep.subr.bf16.mxu0 %v2785
    %3808 = vmatpush1.bf16.msra.mxu0 %v2784
    %3809 = vmatprep.subr.bf16.mxu0 %v2781
    %3810 = vmatpush1.bf16.msra.mxu0 %v2780
    %3811 = vmatprep.subr.bf16.mxu0 %v2777
    %3812 = vmatpush1.bf16.msra.mxu0 %v2776
    %3813 = vmatprep.subr.bf16.mxu0 %v2837
    %3814 = vmatpush2.bf16.msra.mxu0 %v2836
    %3815 = vmatprep.subr.bf16.mxu0 %v2833
    %3816 = vmatpush2.bf16.msra.mxu0 %v2832
    %3817 = vmatprep.subr.bf16.mxu0 %v2829
    %3818 = vmatpush2.bf16.msra.mxu0 %v2828
    %3819 = vmatprep.subr.bf16.mxu0 %v2825
    %3820 = vmatpush2.bf16.msra.mxu0 %v2824
    %3821 = vmatprep.subr.bf16.mxu0 %v2821
    %3822 = vmatpush2.bf16.msra.mxu0 %v2820
    %3823 = vmatprep.subr.bf16.mxu0 %v2817
    %3824 = vmatpush2.bf16.msra.mxu0 %v2816
    %3825 = vmatprep.subr.bf16.mxu0 %v2813
    %3826 = vmatpush2.bf16.msra.mxu0 %v2812
    %3827 = vmatprep.subr.bf16.mxu0 %v2809
    %3828 = vmatpush2.bf16.msra.mxu0 %v2808
    %3829 = vmatprep.mubr.bf16.mxu0 %v1611
    %3830 = vmatmul.mubr.bf16.gmra.mxu0 %v1610
    %v3831 = vpop.f32.mrf.mxu0
    %v3832 = vadd.f32 %v3759, %v3831
    %v3833 = vpop.f32.mrf.mxu0
    %v3834 = vadd.f32 %v3761, %v3833
    %v3835 = vpop.f32.mrf.mxu0
    %v3836 = vadd.f32 %v3763, %v3835
    %v3837 = vpop.f32.mrf.mxu0
    %v3838 = vadd.f32 %v3765, %v3837
    %3839 = vmatprep.mubr.bf16.mxu0 %v1621
    %3840 = vmatmul.mubr.bf16.gmra.mxu0 %v1620
    %v3841 = vpop.f32.mrf.mxu0
    %v3842 = vadd.f32 %v3769, %v3841
    %v3843 = vpop.f32.mrf.mxu0
    %v3844 = vadd.f32 %v3771, %v3843
    %v3845 = vpop.f32.mrf.mxu0
    %v3846 = vadd.f32 %v3773, %v3845
    %v3847 = vpop.f32.mrf.mxu0
    %v3848 = vadd.f32 %v3775, %v3847
    %3849 = vmatprep.mubr.bf16.mxu0 %v1631
    %3850 = vmatmul.mubr.bf16.gmra.mxu0 %v1630
    %v3851 = vpop.f32.mrf.mxu0
    %v3852 = vadd.f32 %v3779, %v3851
    %v3853 = vpop.f32.mrf.mxu0
    %v3854 = vadd.f32 %v3781, %v3853
    %v3855 = vpop.f32.mrf.mxu0
    %v3856 = vadd.f32 %v3783, %v3855
    %v3857 = vpop.f32.mrf.mxu0
    %v3858 = vadd.f32 %v3785, %v3857
    %3859 = vmatprep.mubr.bf16.mxu0 %v1641
    %3860 = vmatmul.mubr.bf16.gmra.mxu0 %v1640
    %v3861 = vpop.f32.mrf.mxu0
    %v3862 = vadd.f32 %v3789, %v3861
    %v3863 = vpop.f32.mrf.mxu0
    %v3864 = vadd.f32 %v3791, %v3863
    %v3865 = vpop.f32.mrf.mxu0
    %v3866 = vadd.f32 %v3793, %v3865
    %v3867 = vpop.f32.mrf.mxu0
    %v3868 = vadd.f32 %v3795, %v3867
    %3869 = vdwg.mxu0
    %3870 = vmatprep.subr.bf16.mxu0 %v2869
    %3871 = vmatpush1.bf16.msra.mxu0 %v2868
    %3872 = vmatprep.subr.bf16.mxu0 %v2865
    %3873 = vmatpush1.bf16.msra.mxu0 %v2864
    %3874 = vmatprep.subr.bf16.mxu0 %v2861
    %3875 = vmatpush1.bf16.msra.mxu0 %v2860
    %3876 = vmatprep.subr.bf16.mxu0 %v2857
    %3877 = vmatpush1.bf16.msra.mxu0 %v2856
    %3878 = vmatprep.subr.bf16.mxu0 %v2853
    %3879 = vmatpush1.bf16.msra.mxu0 %v2852
    %3880 = vmatprep.subr.bf16.mxu0 %v2849
    %3881 = vmatpush1.bf16.msra.mxu0 %v2848
    %3882 = vmatprep.subr.bf16.mxu0 %v2845
    %3883 = vmatpush1.bf16.msra.mxu0 %v2844
    %3884 = vmatprep.subr.bf16.mxu0 %v2841
    %3885 = vmatpush1.bf16.msra.mxu0 %v2840
    %3886 = vmatprep.subr.bf16.mxu0 %v2901
    %3887 = vmatpush2.bf16.msra.mxu0 %v2900
    %3888 = vmatprep.subr.bf16.mxu0 %v2897
    %3889 = vmatpush2.bf16.msra.mxu0 %v2896
    %3890 = vmatprep.subr.bf16.mxu0 %v2893
    %3891 = vmatpush2.bf16.msra.mxu0 %v2892
    %3892 = vmatprep.subr.bf16.mxu0 %v2889
    %3893 = vmatpush2.bf16.msra.mxu0 %v2888
    %3894 = vmatprep.subr.bf16.mxu0 %v2885
    %3895 = vmatpush2.bf16.msra.mxu0 %v2884
    %3896 = vmatprep.subr.bf16.mxu0 %v2881
    %3897 = vmatpush2.bf16.msra.mxu0 %v2880
    %3898 = vmatprep.subr.bf16.mxu0 %v2877
    %3899 = vmatpush2.bf16.msra.mxu0 %v2876
    %3900 = vmatprep.subr.bf16.mxu0 %v2873
    %3901 = vmatpush2.bf16.msra.mxu0 %v2872
    %3902 = vmatprep.mubr.bf16.mxu0 %v1613
    %3903 = vmatmul.mubr.bf16.gmra.mxu0 %v1612
    %v3904 = vpop.f32.mrf.mxu0
    %v3905 = vadd.f32 %v3832, %v3904
    %v3906 = vpop.f32.mrf.mxu0
    %v3907 = vadd.f32 %v3834, %v3906
    %v3908 = vpop.f32.mrf.mxu0
    %v3909 = vadd.f32 %v3836, %v3908
    %v3910 = vpop.f32.mrf.mxu0
    %v3911 = vadd.f32 %v3838, %v3910
    %3912 = vmatprep.mubr.bf16.mxu0 %v1623
    %3913 = vmatmul.mubr.bf16.gmra.mxu0 %v1622
    %v3914 = vpop.f32.mrf.mxu0
    %v3915 = vadd.f32 %v3842, %v3914
    %v3916 = vpop.f32.mrf.mxu0
    %v3917 = vadd.f32 %v3844, %v3916
    %v3918 = vpop.f32.mrf.mxu0
    %v3919 = vadd.f32 %v3846, %v3918
    %v3920 = vpop.f32.mrf.mxu0
    %v3921 = vadd.f32 %v3848, %v3920
    %3922 = vmatprep.mubr.bf16.mxu0 %v1633
    %3923 = vmatmul.mubr.bf16.gmra.mxu0 %v1632
    %v3924 = vpop.f32.mrf.mxu0
    %v3925 = vadd.f32 %v3852, %v3924
    %v3926 = vpop.f32.mrf.mxu0
    %v3927 = vadd.f32 %v3854, %v3926
    %v3928 = vpop.f32.mrf.mxu0
    %v3929 = vadd.f32 %v3856, %v3928
    %v3930 = vpop.f32.mrf.mxu0
    %v3931 = vadd.f32 %v3858, %v3930
    %3932 = vmatprep.mubr.bf16.mxu0 %v1643
    %3933 = vmatmul.mubr.bf16.gmra.mxu0 %v1642
    %v3934 = vpop.f32.mrf.mxu0
    %v3935 = vadd.f32 %v3862, %v3934
    %v3936 = vpop.f32.mrf.mxu0
    %v3937 = vadd.f32 %v3864, %v3936
    %v3938 = vpop.f32.mrf.mxu0
    %v3939 = vadd.f32 %v3866, %v3938
    %v3940 = vpop.f32.mrf.mxu0
    %v3941 = vadd.f32 %v3868, %v3940
    %3942 = vdwg.mxu0
    %3943 = vmatprep.subr.bf16.mxu0 %v2933
    %3944 = vmatpush1.bf16.msra.mxu0 %v2932
    %3945 = vmatprep.subr.bf16.mxu0 %v2929
    %3946 = vmatpush1.bf16.msra.mxu0 %v2928
    %3947 = vmatprep.subr.bf16.mxu0 %v2925
    %3948 = vmatpush1.bf16.msra.mxu0 %v2924
    %3949 = vmatprep.subr.bf16.mxu0 %v2921
    %3950 = vmatpush1.bf16.msra.mxu0 %v2920
    %3951 = vmatprep.subr.bf16.mxu0 %v2917
    %3952 = vmatpush1.bf16.msra.mxu0 %v2916
    %3953 = vmatprep.subr.bf16.mxu0 %v2913
    %3954 = vmatpush1.bf16.msra.mxu0 %v2912
    %3955 = vmatprep.subr.bf16.mxu0 %v2909
    %3956 = vmatpush1.bf16.msra.mxu0 %v2908
    %3957 = vmatprep.subr.bf16.mxu0 %v2905
    %3958 = vmatpush1.bf16.msra.mxu0 %v2904
    %3959 = vmatprep.subr.bf16.mxu0 %v2965
    %3960 = vmatpush2.bf16.msra.mxu0 %v2964
    %3961 = vmatprep.subr.bf16.mxu0 %v2961
    %3962 = vmatpush2.bf16.msra.mxu0 %v2960
    %3963 = vmatprep.subr.bf16.mxu0 %v2957
    %3964 = vmatpush2.bf16.msra.mxu0 %v2956
    %3965 = vmatprep.subr.bf16.mxu0 %v2953
    %3966 = vmatpush2.bf16.msra.mxu0 %v2952
    %3967 = vmatprep.subr.bf16.mxu0 %v2949
    %3968 = vmatpush2.bf16.msra.mxu0 %v2948
    %3969 = vmatprep.subr.bf16.mxu0 %v2945
    %3970 = vmatpush2.bf16.msra.mxu0 %v2944
    %3971 = vmatprep.subr.bf16.mxu0 %v2941
    %3972 = vmatpush2.bf16.msra.mxu0 %v2940
    %3973 = vmatprep.subr.bf16.mxu0 %v2937
    %3974 = vmatpush2.bf16.msra.mxu0 %v2936
    %3975 = vmatprep.mubr.bf16.mxu0 %v1615
    %3976 = vmatmul.mubr.bf16.gmra.mxu0 %v1614
    %v3977 = vpop.f32.mrf.mxu0
    %v3978 = vadd.f32 %v3905, %v3977
    %v3979 = vpop.f32.mrf.mxu0
    %v3980 = vadd.f32 %v3907, %v3979
    %v3981 = vpop.f32.mrf.mxu0
    %v3982 = vadd.f32 %v3909, %v3981
    %v3983 = vpop.f32.mrf.mxu0
    %v3984 = vadd.f32 %v3911, %v3983
    %3985 = vmatprep.mubr.bf16.mxu0 %v1625
    %3986 = vmatmul.mubr.bf16.gmra.mxu0 %v1624
    %v3987 = vpop.f32.mrf.mxu0
    %v3988 = vadd.f32 %v3915, %v3987
    %v3989 = vpop.f32.mrf.mxu0
    %v3990 = vadd.f32 %v3917, %v3989
    %v3991 = vpop.f32.mrf.mxu0
    %v3992 = vadd.f32 %v3919, %v3991
    %v3993 = vpop.f32.mrf.mxu0
    %v3994 = vadd.f32 %v3921, %v3993
    %3995 = vmatprep.mubr.bf16.mxu0 %v1635
    %3996 = vmatmul.mubr.bf16.gmra.mxu0 %v1634
    %v3997 = vpop.f32.mrf.mxu0
    %v3998 = vadd.f32 %v3925, %v3997
    %v3999 = vpop.f32.mrf.mxu0
    %v4000 = vadd.f32 %v3927, %v3999
    %v4001 = vpop.f32.mrf.mxu0
    %v4002 = vadd.f32 %v3929, %v4001
    %v4003 = vpop.f32.mrf.mxu0
    %v4004 = vadd.f32 %v3931, %v4003
    %4005 = vmatprep.mubr.bf16.mxu0 %v1645
    %4006 = vmatmul.mubr.bf16.gmra.mxu0 %v1644
    %v4007 = vpop.f32.mrf.mxu0
    %v4008 = vadd.f32 %v3935, %v4007
    %v4009 = vpop.f32.mrf.mxu0
    %v4010 = vadd.f32 %v3937, %v4009
    %v4011 = vpop.f32.mrf.mxu0
    %v4012 = vadd.f32 %v3939, %v4011
    %v4013 = vpop.f32.mrf.mxu0
    %v4014 = vadd.f32 %v3941, %v4013
    %4015 = vdwg.mxu0
    %v4016 = vmax.f32 %v3613, %v3978
    %v4017 = vmax.f32 %v3615, %v3980
    %v4018 = vmax.f32 %v3617, %v3982
    %v4019 = vmax.f32 %v3619, %v3984
    %v4020 = vmax.f32 %v3623, %v3988
    %v4021 = vmax.f32 %v3625, %v3990
    %v4022 = vmax.f32 %v3627, %v3992
    %v4023 = vmax.f32 %v3629, %v3994
    %v4024 = vmax.f32 %v3633, %v3998
    %v4025 = vmax.f32 %v3635, %v4000
    %v4026 = vmax.f32 %v3637, %v4002
    %v4027 = vmax.f32 %v3639, %v4004
    %v4028 = vmax.f32 %v3643, %v4008
    %v4029 = vmax.f32 %v3645, %v4010
    %v4030 = vmax.f32 %v3647, %v4012
    %v4031 = vmax.f32 %v3649, %v4014
    %v4032 = vld [vmem:[#allocation8] sm:$0x3]
    %v4034 = vlaneseq
    %v4035 = vshrl.u32 %v4034, 7
    %v4036 = vsub.s32 0, %v4035
    %v4037 = vrot.slane %v4032, %v4036
    %v4038 = vlaneseq
    %v4039 = vshrl.u32 %v4038, 7
    %v4040 = vsub.s32 1, %v4039
    %v4041 = vrot.slane %v4032, %v4040
    %v4044 = vadd.f32 %v4016, %v4037
    %v4045 = vadd.f32 %v4017, %v4041
    %v4046 = vadd.f32 %v4018, %v4037
    %v4047 = vadd.f32 %v4019, %v4041
    %v4048 = vadd.f32 %v4020, %v4037
    %v4049 = vadd.f32 %v4021, %v4041
    %v4050 = vadd.f32 %v4022, %v4037
    %v4051 = vadd.f32 %v4023, %v4041
    %v4052 = vadd.f32 %v4024, %v4037
    %v4053 = vadd.f32 %v4025, %v4041
    %v4054 = vadd.f32 %v4026, %v4037
    %v4055 = vadd.f32 %v4027, %v4041
    %v4056 = vadd.f32 %v4028, %v4037
    %v4057 = vadd.f32 %v4029, %v4041
    %v4058 = vadd.f32 %v4030, %v4037
    %v4059 = vadd.f32 %v4031, %v4041
    %v4060 = vmax.f32 %v4044, 0.0
    %v4061 = vmax.f32 %v4045, 0.0
    %v4062 = vmax.f32 %v4046, 0.0
    %v4063 = vmax.f32 %v4047, 0.0
    %v4064 = vmax.f32 %v4048, 0.0
    %v4065 = vmax.f32 %v4049, 0.0
    %v4066 = vmax.f32 %v4050, 0.0
    %v4067 = vmax.f32 %v4051, 0.0
    %v4068 = vmax.f32 %v4052, 0.0
    %v4069 = vmax.f32 %v4053, 0.0
    %v4070 = vmax.f32 %v4054, 0.0
    %v4071 = vmax.f32 %v4055, 0.0
    %v4072 = vmax.f32 %v4056, 0.0
    %v4073 = vmax.f32 %v4057, 0.0
    %v4074 = vmax.f32 %v4058, 0.0
    %v4075 = vmax.f32 %v4059, 0.0
    %v4076 = vmax.f32 %v4060, %v4062
    %v4077 = vmax.f32 %v4061, %v4063
    %v4078 = vmax.f32 %v4064, %v4066
    %v4079 = vmax.f32 %v4065, %v4067
    %v4080 = vmax.f32 %v4068, %v4070
    %v4081 = vmax.f32 %v4069, %v4071
    %v4082 = vmax.f32 %v4072, %v4074
    %v4083 = vmax.f32 %v4073, %v4075
    %v4084 = vpack.c.bf16 %v4076, %v4076
    %v4085 = vpack.c.bf16 %v4077, %v4077
    %v4086 = vpack.c.bf16 %v4078, %v4078
    %v4087 = vpack.c.bf16 %v4079, %v4079
    %v4088 = vpack.c.bf16 %v4080, %v4080
    %v4089 = vpack.c.bf16 %v4081, %v4081
    %v4090 = vpack.c.bf16 %v4082, %v4082
    %v4091 = vpack.c.bf16 %v4083, %v4083
    %v4092 = vld [vmem:[#allocation10] sm:$0xff]
    %v4093 = vld [vmem:[#allocation10 + $0x8] sm:$0xff]
    %v4094 = vld [vmem:[#allocation10 + $0x10] sm:$0xff]
    %v4095 = vld [vmem:[#allocation10 + $0x18] sm:$0xff]
    %v4096 = vld [vmem:[#allocation10 + $0x20] sm:$0xff]
    %v4097 = vld [vmem:[#allocation10 + $0x28] sm:$0xff]
    %v4098 = vld [vmem:[#allocation10 + $0x30] sm:$0xff]
    %v4099 = vld [vmem:[#allocation10 + $0x38] sm:$0xff]
    %v4100 = vld [vmem:[#allocation10 + $0x40] sm:$0xff]
    %v4101 = vld [vmem:[#allocation10 + $0x48] sm:$0xff]
    %v4102 = vld [vmem:[#allocation10 + $0x50] sm:$0xff]
    %v4103 = vld [vmem:[#allocation10 + $0x58] sm:$0xff]
    %v4104 = vld [vmem:[#allocation10 + $0x60] sm:$0xff]
    %v4105 = vld [vmem:[#allocation10 + $0x68] sm:$0xff]
    %v4106 = vld [vmem:[#allocation10 + $0x70] sm:$0xff]
    %v4107 = vld [vmem:[#allocation10 + $0x78] sm:$0xff]
    %v4108 = vld [vmem:[#allocation10 + $0x80] sm:$0xff]
    %v4109 = vld [vmem:[#allocation10 + $0x88] sm:$0xff]
    %v4110 = vld [vmem:[#allocation10 + $0x90] sm:$0xff]
    %v4111 = vld [vmem:[#allocation10 + $0x98] sm:$0xff]
    %v4112 = vld [vmem:[#allocation10 + $0xa0] sm:$0xff]
    %v4113 = vld [vmem:[#allocation10 + $0xa8] sm:$0xff]
    %v4114 = vld [vmem:[#allocation10 + $0xb0] sm:$0xff]
    %v4115 = vld [vmem:[#allocation10 + $0xb8] sm:$0xff]
    %v4116 = vld [vmem:[#allocation10 + $0xc0] sm:$0xff]
    %v4117 = vld [vmem:[#allocation10 + $0xc8] sm:$0xff]
    %v4118 = vld [vmem:[#allocation10 + $0xd0] sm:$0xff]
    %v4119 = vld [vmem:[#allocation10 + $0xd8] sm:$0xff]
    %v4120 = vld [vmem:[#allocation10 + $0xe0] sm:$0xff]
    %v4121 = vld [vmem:[#allocation10 + $0xe8] sm:$0xff]
    %v4122 = vld [vmem:[#allocation10 + $0xf0] sm:$0xff]
    %v4123 = vld [vmem:[#allocation10 + $0xf8] sm:$0xff]
    %v4124 = vld [vmem:[#allocation10 + $0x100] sm:$0xff]
    %v4125 = vld [vmem:[#allocation10 + $0x108] sm:$0xff]
    %v4126 = vld [vmem:[#allocation10 + $0x110] sm:$0xff]
    %v4127 = vld [vmem:[#allocation10 + $0x118] sm:$0xff]
    %v4128 = vld [vmem:[#allocation10 + $0x120] sm:$0xff]
    %v4129 = vld [vmem:[#allocation10 + $0x128] sm:$0xff]
    %v4130 = vld [vmem:[#allocation10 + $0x130] sm:$0xff]
    %v4131 = vld [vmem:[#allocation10 + $0x138] sm:$0xff]
    %v4132 = vld [vmem:[#allocation10 + $0x140] sm:$0xff]
    %v4133 = vld [vmem:[#allocation10 + $0x148] sm:$0xff]
    %v4134 = vld [vmem:[#allocation10 + $0x150] sm:$0xff]
    %v4135 = vld [vmem:[#allocation10 + $0x158] sm:$0xff]
    %v4136 = vld [vmem:[#allocation10 + $0x160] sm:$0xff]
    %v4137 = vld [vmem:[#allocation10 + $0x168] sm:$0xff]
    %v4138 = vld [vmem:[#allocation10 + $0x170] sm:$0xff]
    %v4139 = vld [vmem:[#allocation10 + $0x178] sm:$0xff]
    %v4140 = vld [vmem:[#allocation10 + $0x180] sm:$0xff]
    %v4141 = vld [vmem:[#allocation10 + $0x188] sm:$0xff]
    %v4142 = vld [vmem:[#allocation10 + $0x190] sm:$0xff]
    %v4143 = vld [vmem:[#allocation10 + $0x198] sm:$0xff]
    %v4144 = vld [vmem:[#allocation10 + $0x1a0] sm:$0xff]
    %v4145 = vld [vmem:[#allocation10 + $0x1a8] sm:$0xff]
    %v4146 = vld [vmem:[#allocation10 + $0x1b0] sm:$0xff]
    %v4147 = vld [vmem:[#allocation10 + $0x1b8] sm:$0xff]
    %v4148 = vld [vmem:[#allocation10 + $0x1c0] sm:$0xff]
    %v4149 = vld [vmem:[#allocation10 + $0x1c8] sm:$0xff]
    %v4150 = vld [vmem:[#allocation10 + $0x1d0] sm:$0xff]
    %v4151 = vld [vmem:[#allocation10 + $0x1d8] sm:$0xff]
    %v4152 = vld [vmem:[#allocation10 + $0x1e0] sm:$0xff]
    %v4153 = vld [vmem:[#allocation10 + $0x1e8] sm:$0xff]
    %v4154 = vld [vmem:[#allocation10 + $0x1f0] sm:$0xff]
    %v4155 = vld [vmem:[#allocation10 + $0x1f8] sm:$0xff]
    %v4156 = vld [vmem:[#allocation10 + $0x200] sm:$0xff]
    %v4157 = vld [vmem:[#allocation10 + $0x208] sm:$0xff]
    %v4158 = vld [vmem:[#allocation10 + $0x210] sm:$0xff]
    %v4159 = vld [vmem:[#allocation10 + $0x218] sm:$0xff]
    %v4160 = vld [vmem:[#allocation10 + $0x220] sm:$0xff]
    %v4161 = vld [vmem:[#allocation10 + $0x228] sm:$0xff]
    %v4162 = vld [vmem:[#allocation10 + $0x230] sm:$0xff]
    %v4163 = vld [vmem:[#allocation10 + $0x238] sm:$0xff]
    %v4164 = vld [vmem:[#allocation10 + $0x240] sm:$0xff]
    %v4165 = vld [vmem:[#allocation10 + $0x248] sm:$0xff]
    %v4166 = vld [vmem:[#allocation10 + $0x250] sm:$0xff]
    %v4167 = vld [vmem:[#allocation10 + $0x258] sm:$0xff]
    %v4168 = vld [vmem:[#allocation10 + $0x260] sm:$0xff]
    %v4169 = vld [vmem:[#allocation10 + $0x268] sm:$0xff]
    %v4170 = vld [vmem:[#allocation10 + $0x270] sm:$0xff]
    %v4171 = vld [vmem:[#allocation10 + $0x278] sm:$0xff]
    %v4172 = vld [vmem:[#allocation10 + $0x280] sm:$0xff]
    %v4173 = vld [vmem:[#allocation10 + $0x288] sm:$0xff]
    %v4174 = vld [vmem:[#allocation10 + $0x290] sm:$0xff]
    %v4175 = vld [vmem:[#allocation10 + $0x298] sm:$0xff]
    %v4176 = vld [vmem:[#allocation10 + $0x2a0] sm:$0xff]
    %v4177 = vld [vmem:[#allocation10 + $0x2a8] sm:$0xff]
    %v4178 = vld [vmem:[#allocation10 + $0x2b0] sm:$0xff]
    %v4179 = vld [vmem:[#allocation10 + $0x2b8] sm:$0xff]
    %v4180 = vld [vmem:[#allocation10 + $0x2c0] sm:$0xff]
    %v4181 = vld [vmem:[#allocation10 + $0x2c8] sm:$0xff]
    %v4182 = vld [vmem:[#allocation10 + $0x2d0] sm:$0xff]
    %v4183 = vld [vmem:[#allocation10 + $0x2d8] sm:$0xff]
    %v4184 = vld [vmem:[#allocation10 + $0x2e0] sm:$0xff]
    %v4185 = vld [vmem:[#allocation10 + $0x2e8] sm:$0xff]
    %v4186 = vld [vmem:[#allocation10 + $0x2f0] sm:$0xff]
    %v4187 = vld [vmem:[#allocation10 + $0x2f8] sm:$0xff]
    %v4188 = vld [vmem:[#allocation10 + $0x300] sm:$0xff]
    %v4189 = vld [vmem:[#allocation10 + $0x308] sm:$0xff]
    %v4190 = vld [vmem:[#allocation10 + $0x310] sm:$0xff]
    %v4191 = vld [vmem:[#allocation10 + $0x318] sm:$0xff]
    %v4192 = vld [vmem:[#allocation10 + $0x320] sm:$0xff]
    %v4193 = vld [vmem:[#allocation10 + $0x328] sm:$0xff]
    %v4194 = vld [vmem:[#allocation10 + $0x330] sm:$0xff]
    %v4195 = vld [vmem:[#allocation10 + $0x338] sm:$0xff]
    %v4196 = vld [vmem:[#allocation10 + $0x340] sm:$0xff]
    %v4197 = vld [vmem:[#allocation10 + $0x348] sm:$0xff]
    %v4198 = vld [vmem:[#allocation10 + $0x350] sm:$0xff]
    %v4199 = vld [vmem:[#allocation10 + $0x358] sm:$0xff]
    %v4200 = vld [vmem:[#allocation10 + $0x360] sm:$0xff]
    %v4201 = vld [vmem:[#allocation10 + $0x368] sm:$0xff]
    %v4202 = vld [vmem:[#allocation10 + $0x370] sm:$0xff]
    %v4203 = vld [vmem:[#allocation10 + $0x378] sm:$0xff]
    %v4204 = vld [vmem:[#allocation10 + $0x380] sm:$0xff]
    %v4205 = vld [vmem:[#allocation10 + $0x388] sm:$0xff]
    %v4206 = vld [vmem:[#allocation10 + $0x390] sm:$0xff]
    %v4207 = vld [vmem:[#allocation10 + $0x398] sm:$0xff]
    %v4208 = vld [vmem:[#allocation10 + $0x3a0] sm:$0xff]
    %v4209 = vld [vmem:[#allocation10 + $0x3a8] sm:$0xff]
    %v4210 = vld [vmem:[#allocation10 + $0x3b0] sm:$0xff]
    %v4211 = vld [vmem:[#allocation10 + $0x3b8] sm:$0xff]
    %v4212 = vld [vmem:[#allocation10 + $0x3c0] sm:$0xff]
    %v4213 = vld [vmem:[#allocation10 + $0x3c8] sm:$0xff]
    %v4214 = vld [vmem:[#allocation10 + $0x3d0] sm:$0xff]
    %v4215 = vld [vmem:[#allocation10 + $0x3d8] sm:$0xff]
    %v4216 = vld [vmem:[#allocation10 + $0x3e0] sm:$0xff]
    %v4217 = vld [vmem:[#allocation10 + $0x3e8] sm:$0xff]
    %v4218 = vld [vmem:[#allocation10 + $0x3f0] sm:$0xff]
    %v4219 = vld [vmem:[#allocation10 + $0x3f8] sm:$0xff]
    %v4220 = vld [vmem:[#allocation10 + $0x400] sm:$0xff]
    %v4221 = vld [vmem:[#allocation10 + $0x408] sm:$0xff]
    %v4222 = vld [vmem:[#allocation10 + $0x410] sm:$0xff]
    %v4223 = vld [vmem:[#allocation10 + $0x418] sm:$0xff]
    %v4224 = vld [vmem:[#allocation10 + $0x420] sm:$0xff]
    %v4225 = vld [vmem:[#allocation10 + $0x428] sm:$0xff]
    %v4226 = vld [vmem:[#allocation10 + $0x430] sm:$0xff]
    %v4227 = vld [vmem:[#allocation10 + $0x438] sm:$0xff]
    %v4228 = vld [vmem:[#allocation10 + $0x440] sm:$0xff]
    %v4229 = vld [vmem:[#allocation10 + $0x448] sm:$0xff]
    %v4230 = vld [vmem:[#allocation10 + $0x450] sm:$0xff]
    %v4231 = vld [vmem:[#allocation10 + $0x458] sm:$0xff]
    %v4232 = vld [vmem:[#allocation10 + $0x460] sm:$0xff]
    %v4233 = vld [vmem:[#allocation10 + $0x468] sm:$0xff]
    %v4234 = vld [vmem:[#allocation10 + $0x470] sm:$0xff]
    %v4235 = vld [vmem:[#allocation10 + $0x478] sm:$0xff]
    %v4236 = vld [vmem:[#allocation10 + $0x480] sm:$0xff]
    %v4237 = vld [vmem:[#allocation10 + $0x488] sm:$0xff]
    %v4238 = vld [vmem:[#allocation10 + $0x490] sm:$0xff]
    %v4239 = vld [vmem:[#allocation10 + $0x498] sm:$0xff]
    %v4240 = vld [vmem:[#allocation10 + $0x4a0] sm:$0xff]
    %v4241 = vld [vmem:[#allocation10 + $0x4a8] sm:$0xff]
    %v4242 = vld [vmem:[#allocation10 + $0x4b0] sm:$0xff]
    %v4243 = vld [vmem:[#allocation10 + $0x4b8] sm:$0xff]
    %v4244 = vld [vmem:[#allocation10 + $0x4c0] sm:$0xff]
    %v4245 = vld [vmem:[#allocation10 + $0x4c8] sm:$0xff]
    %v4246 = vld [vmem:[#allocation10 + $0x4d0] sm:$0xff]
    %v4247 = vld [vmem:[#allocation10 + $0x4d8] sm:$0xff]
    %v4248 = vld [vmem:[#allocation10 + $0x4e0] sm:$0xff]
    %v4249 = vld [vmem:[#allocation10 + $0x4e8] sm:$0xff]
    %v4250 = vld [vmem:[#allocation10 + $0x4f0] sm:$0xff]
    %v4251 = vld [vmem:[#allocation10 + $0x4f8] sm:$0xff]
    %v4252 = vld [vmem:[#allocation10 + $0x500] sm:$0xff]
    %v4253 = vld [vmem:[#allocation10 + $0x508] sm:$0xff]
    %v4254 = vld [vmem:[#allocation10 + $0x510] sm:$0xff]
    %v4255 = vld [vmem:[#allocation10 + $0x518] sm:$0xff]
    %v4256 = vld [vmem:[#allocation10 + $0x520] sm:$0xff]
    %v4257 = vld [vmem:[#allocation10 + $0x528] sm:$0xff]
    %v4258 = vld [vmem:[#allocation10 + $0x530] sm:$0xff]
    %v4259 = vld [vmem:[#allocation10 + $0x538] sm:$0xff]
    %v4260 = vld [vmem:[#allocation10 + $0x540] sm:$0xff]
    %v4261 = vld [vmem:[#allocation10 + $0x548] sm:$0xff]
    %v4262 = vld [vmem:[#allocation10 + $0x550] sm:$0xff]
    %v4263 = vld [vmem:[#allocation10 + $0x558] sm:$0xff]
    %v4264 = vld [vmem:[#allocation10 + $0x560] sm:$0xff]
    %v4265 = vld [vmem:[#allocation10 + $0x568] sm:$0xff]
    %v4266 = vld [vmem:[#allocation10 + $0x570] sm:$0xff]
    %v4267 = vld [vmem:[#allocation10 + $0x578] sm:$0xff]
    %v4268 = vld [vmem:[#allocation10 + $0x580] sm:$0xff]
    %v4269 = vld [vmem:[#allocation10 + $0x588] sm:$0xff]
    %v4270 = vld [vmem:[#allocation10 + $0x590] sm:$0xff]
    %v4271 = vld [vmem:[#allocation10 + $0x598] sm:$0xff]
    %v4272 = vld [vmem:[#allocation10 + $0x5a0] sm:$0xff]
    %v4273 = vld [vmem:[#allocation10 + $0x5a8] sm:$0xff]
    %v4274 = vld [vmem:[#allocation10 + $0x5b0] sm:$0xff]
    %v4275 = vld [vmem:[#allocation10 + $0x5b8] sm:$0xff]
    %v4276 = vld [vmem:[#allocation10 + $0x5c0] sm:$0xff]
    %v4277 = vld [vmem:[#allocation10 + $0x5c8] sm:$0xff]
    %v4278 = vld [vmem:[#allocation10 + $0x5d0] sm:$0xff]
    %v4279 = vld [vmem:[#allocation10 + $0x5d8] sm:$0xff]
    %v4280 = vld [vmem:[#allocation10 + $0x5e0] sm:$0xff]
    %v4281 = vld [vmem:[#allocation10 + $0x5e8] sm:$0xff]
    %v4282 = vld [vmem:[#allocation10 + $0x5f0] sm:$0xff]
    %v4283 = vld [vmem:[#allocation10 + $0x5f8] sm:$0xff]
    %v4284 = vld [vmem:[#allocation10 + $0x600] sm:$0xff]
    %v4285 = vld [vmem:[#allocation10 + $0x608] sm:$0xff]
    %v4286 = vld [vmem:[#allocation10 + $0x610] sm:$0xff]
    %v4287 = vld [vmem:[#allocation10 + $0x618] sm:$0xff]
    %v4288 = vld [vmem:[#allocation10 + $0x620] sm:$0xff]
    %v4289 = vld [vmem:[#allocation10 + $0x628] sm:$0xff]
    %v4290 = vld [vmem:[#allocation10 + $0x630] sm:$0xff]
    %v4291 = vld [vmem:[#allocation10 + $0x638] sm:$0xff]
    %v4292 = vld [vmem:[#allocation10 + $0x640] sm:$0xff]
    %v4293 = vld [vmem:[#allocation10 + $0x648] sm:$0xff]
    %v4294 = vld [vmem:[#allocation10 + $0x650] sm:$0xff]
    %v4295 = vld [vmem:[#allocation10 + $0x658] sm:$0xff]
    %v4296 = vld [vmem:[#allocation10 + $0x660] sm:$0xff]
    %v4297 = vld [vmem:[#allocation10 + $0x668] sm:$0xff]
    %v4298 = vld [vmem:[#allocation10 + $0x670] sm:$0xff]
    %v4299 = vld [vmem:[#allocation10 + $0x678] sm:$0xff]
    %v4300 = vld [vmem:[#allocation10 + $0x680] sm:$0xff]
    %v4301 = vld [vmem:[#allocation10 + $0x688] sm:$0xff]
    %v4302 = vld [vmem:[#allocation10 + $0x690] sm:$0xff]
    %v4303 = vld [vmem:[#allocation10 + $0x698] sm:$0xff]
    %v4304 = vld [vmem:[#allocation10 + $0x6a0] sm:$0xff]
    %v4305 = vld [vmem:[#allocation10 + $0x6a8] sm:$0xff]
    %v4306 = vld [vmem:[#allocation10 + $0x6b0] sm:$0xff]
    %v4307 = vld [vmem:[#allocation10 + $0x6b8] sm:$0xff]
    %v4308 = vld [vmem:[#allocation10 + $0x6c0] sm:$0xff]
    %v4309 = vld [vmem:[#allocation10 + $0x6c8] sm:$0xff]
    %v4310 = vld [vmem:[#allocation10 + $0x6d0] sm:$0xff]
    %v4311 = vld [vmem:[#allocation10 + $0x6d8] sm:$0xff]
    %v4312 = vld [vmem:[#allocation10 + $0x6e0] sm:$0xff]
    %v4313 = vld [vmem:[#allocation10 + $0x6e8] sm:$0xff]
    %v4314 = vld [vmem:[#allocation10 + $0x6f0] sm:$0xff]
    %v4315 = vld [vmem:[#allocation10 + $0x6f8] sm:$0xff]
    %v4316 = vld [vmem:[#allocation10 + $0x700] sm:$0xff]
    %v4317 = vld [vmem:[#allocation10 + $0x708] sm:$0xff]
    %v4318 = vld [vmem:[#allocation10 + $0x710] sm:$0xff]
    %v4319 = vld [vmem:[#allocation10 + $0x718] sm:$0xff]
    %v4320 = vld [vmem:[#allocation10 + $0x720] sm:$0xff]
    %v4321 = vld [vmem:[#allocation10 + $0x728] sm:$0xff]
    %v4322 = vld [vmem:[#allocation10 + $0x730] sm:$0xff]
    %v4323 = vld [vmem:[#allocation10 + $0x738] sm:$0xff]
    %v4324 = vld [vmem:[#allocation10 + $0x740] sm:$0xff]
    %v4325 = vld [vmem:[#allocation10 + $0x748] sm:$0xff]
    %v4326 = vld [vmem:[#allocation10 + $0x750] sm:$0xff]
    %v4327 = vld [vmem:[#allocation10 + $0x758] sm:$0xff]
    %v4328 = vld [vmem:[#allocation10 + $0x760] sm:$0xff]
    %v4329 = vld [vmem:[#allocation10 + $0x768] sm:$0xff]
    %v4330 = vld [vmem:[#allocation10 + $0x770] sm:$0xff]
    %v4331 = vld [vmem:[#allocation10 + $0x778] sm:$0xff]
    %v4332 = vld [vmem:[#allocation10 + $0x780] sm:$0xff]
    %v4333 = vld [vmem:[#allocation10 + $0x788] sm:$0xff]
    %v4334 = vld [vmem:[#allocation10 + $0x790] sm:$0xff]
    %v4335 = vld [vmem:[#allocation10 + $0x798] sm:$0xff]
    %v4336 = vld [vmem:[#allocation10 + $0x7a0] sm:$0xff]
    %v4337 = vld [vmem:[#allocation10 + $0x7a8] sm:$0xff]
    %v4338 = vld [vmem:[#allocation10 + $0x7b0] sm:$0xff]
    %v4339 = vld [vmem:[#allocation10 + $0x7b8] sm:$0xff]
    %v4340 = vld [vmem:[#allocation10 + $0x7c0] sm:$0xff]
    %v4341 = vld [vmem:[#allocation10 + $0x7c8] sm:$0xff]
    %v4342 = vld [vmem:[#allocation10 + $0x7d0] sm:$0xff]
    %v4343 = vld [vmem:[#allocation10 + $0x7d8] sm:$0xff]
    %v4344 = vld [vmem:[#allocation10 + $0x7e0] sm:$0xff]
    %v4345 = vld [vmem:[#allocation10 + $0x7e8] sm:$0xff]
    %v4346 = vld [vmem:[#allocation10 + $0x7f0] sm:$0xff]
    %v4347 = vld [vmem:[#allocation10 + $0x7f8] sm:$0xff]
    %v4348 = vld [vmem:[#allocation11] sm:$0xf]
    %v4350 = vlaneseq
    %v4351 = vshrl.u32 %v4350, 7
    %v4352 = vsub.s32 0, %v4351
    %v4353 = vrot.slane %v4348, %v4352
    %v4354 = vlaneseq
    %v4355 = vshrl.u32 %v4354, 7
    %v4356 = vsub.s32 1, %v4355
    %v4357 = vrot.slane %v4348, %v4356
    %v4358 = vlaneseq
    %v4359 = vshrl.u32 %v4358, 7
    %v4360 = vsub.s32 2, %v4359
    %v4361 = vrot.slane %v4348, %v4360
    %v4362 = vlaneseq
    %v4363 = vshrl.u32 %v4362, 7
    %v4364 = vsub.s32 3, %v4363
    %v4365 = vrot.slane %v4348, %v4364
    %v4626 = vunpack.c.l.b16 %v4092
    %v4627 = vunpack.c.h.b16 %v4092
    %v4628 = vunpack.c.l.b16 %v4093
    %v4629 = vunpack.c.h.b16 %v4093
    %v4630 = vunpack.c.l.b16 %v4094
    %v4631 = vunpack.c.h.b16 %v4094
    %v4632 = vunpack.c.l.b16 %v4095
    %v4633 = vunpack.c.h.b16 %v4095
    %v4634 = vunpack.c.l.b16 %v4096
    %v4635 = vunpack.c.h.b16 %v4096
    %v4636 = vunpack.c.l.b16 %v4097
    %v4637 = vunpack.c.h.b16 %v4097
    %v4638 = vunpack.c.l.b16 %v4098
    %v4639 = vunpack.c.h.b16 %v4098
    %v4640 = vunpack.c.l.b16 %v4099
    %v4641 = vunpack.c.h.b16 %v4099
    %v4642 = vunpack.c.l.b16 %v4100
    %v4643 = vunpack.c.h.b16 %v4100
    %v4644 = vunpack.c.l.b16 %v4101
    %v4645 = vunpack.c.h.b16 %v4101
    %v4646 = vunpack.c.l.b16 %v4102
    %v4647 = vunpack.c.h.b16 %v4102
    %v4648 = vunpack.c.l.b16 %v4103
    %v4649 = vunpack.c.h.b16 %v4103
    %v4650 = vunpack.c.l.b16 %v4104
    %v4651 = vunpack.c.h.b16 %v4104
    %v4652 = vunpack.c.l.b16 %v4105
    %v4653 = vunpack.c.h.b16 %v4105
    %v4654 = vunpack.c.l.b16 %v4106
    %v4655 = vunpack.c.h.b16 %v4106
    %v4656 = vunpack.c.l.b16 %v4107
    %v4657 = vunpack.c.h.b16 %v4107
    %v4658 = vunpack.c.l.b16 %v4108
    %v4659 = vunpack.c.h.b16 %v4108
    %v4660 = vunpack.c.l.b16 %v4109
    %v4661 = vunpack.c.h.b16 %v4109
    %v4662 = vunpack.c.l.b16 %v4110
    %v4663 = vunpack.c.h.b16 %v4110
    %v4664 = vunpack.c.l.b16 %v4111
    %v4665 = vunpack.c.h.b16 %v4111
    %v4666 = vunpack.c.l.b16 %v4112
    %v4667 = vunpack.c.h.b16 %v4112
    %v4668 = vunpack.c.l.b16 %v4113
    %v4669 = vunpack.c.h.b16 %v4113
    %v4670 = vunpack.c.l.b16 %v4114
    %v4671 = vunpack.c.h.b16 %v4114
    %v4672 = vunpack.c.l.b16 %v4115
    %v4673 = vunpack.c.h.b16 %v4115
    %v4674 = vunpack.c.l.b16 %v4116
    %v4675 = vunpack.c.h.b16 %v4116
    %v4676 = vunpack.c.l.b16 %v4117
    %v4677 = vunpack.c.h.b16 %v4117
    %v4678 = vunpack.c.l.b16 %v4118
    %v4679 = vunpack.c.h.b16 %v4118
    %v4680 = vunpack.c.l.b16 %v4119
    %v4681 = vunpack.c.h.b16 %v4119
    %v4682 = vunpack.c.l.b16 %v4120
    %v4683 = vunpack.c.h.b16 %v4120
    %v4684 = vunpack.c.l.b16 %v4121
    %v4685 = vunpack.c.h.b16 %v4121
    %v4686 = vunpack.c.l.b16 %v4122
    %v4687 = vunpack.c.h.b16 %v4122
    %v4688 = vunpack.c.l.b16 %v4123
    %v4689 = vunpack.c.h.b16 %v4123
    %v4690 = vunpack.c.l.b16 %v4124
    %v4691 = vunpack.c.h.b16 %v4124
    %v4692 = vunpack.c.l.b16 %v4125
    %v4693 = vunpack.c.h.b16 %v4125
    %v4694 = vunpack.c.l.b16 %v4126
    %v4695 = vunpack.c.h.b16 %v4126
    %v4696 = vunpack.c.l.b16 %v4127
    %v4697 = vunpack.c.h.b16 %v4127
    %v4698 = vunpack.c.l.b16 %v4128
    %v4699 = vunpack.c.h.b16 %v4128
    %v4700 = vunpack.c.l.b16 %v4129
    %v4701 = vunpack.c.h.b16 %v4129
    %v4702 = vunpack.c.l.b16 %v4130
    %v4703 = vunpack.c.h.b16 %v4130
    %v4704 = vunpack.c.l.b16 %v4131
    %v4705 = vunpack.c.h.b16 %v4131
    %v4706 = vunpack.c.l.b16 %v4132
    %v4707 = vunpack.c.h.b16 %v4132
    %v4708 = vunpack.c.l.b16 %v4133
    %v4709 = vunpack.c.h.b16 %v4133
    %v4710 = vunpack.c.l.b16 %v4134
    %v4711 = vunpack.c.h.b16 %v4134
    %v4712 = vunpack.c.l.b16 %v4135
    %v4713 = vunpack.c.h.b16 %v4135
    %v4714 = vunpack.c.l.b16 %v4136
    %v4715 = vunpack.c.h.b16 %v4136
    %v4716 = vunpack.c.l.b16 %v4137
    %v4717 = vunpack.c.h.b16 %v4137
    %v4718 = vunpack.c.l.b16 %v4138
    %v4719 = vunpack.c.h.b16 %v4138
    %v4720 = vunpack.c.l.b16 %v4139
    %v4721 = vunpack.c.h.b16 %v4139
    %v4722 = vunpack.c.l.b16 %v4140
    %v4723 = vunpack.c.h.b16 %v4140
    %v4724 = vunpack.c.l.b16 %v4141
    %v4725 = vunpack.c.h.b16 %v4141
    %v4726 = vunpack.c.l.b16 %v4142
    %v4727 = vunpack.c.h.b16 %v4142
    %v4728 = vunpack.c.l.b16 %v4143
    %v4729 = vunpack.c.h.b16 %v4143
    %v4730 = vunpack.c.l.b16 %v4144
    %v4731 = vunpack.c.h.b16 %v4144
    %v4732 = vunpack.c.l.b16 %v4145
    %v4733 = vunpack.c.h.b16 %v4145
    %v4734 = vunpack.c.l.b16 %v4146
    %v4735 = vunpack.c.h.b16 %v4146
    %v4736 = vunpack.c.l.b16 %v4147
    %v4737 = vunpack.c.h.b16 %v4147
    %v4738 = vunpack.c.l.b16 %v4148
    %v4739 = vunpack.c.h.b16 %v4148
    %v4740 = vunpack.c.l.b16 %v4149
    %v4741 = vunpack.c.h.b16 %v4149
    %v4742 = vunpack.c.l.b16 %v4150
    %v4743 = vunpack.c.h.b16 %v4150
    %v4744 = vunpack.c.l.b16 %v4151
    %v4745 = vunpack.c.h.b16 %v4151
    %v4746 = vunpack.c.l.b16 %v4152
    %v4747 = vunpack.c.h.b16 %v4152
    %v4748 = vunpack.c.l.b16 %v4153
    %v4749 = vunpack.c.h.b16 %v4153
    %v4750 = vunpack.c.l.b16 %v4154
    %v4751 = vunpack.c.h.b16 %v4154
    %v4752 = vunpack.c.l.b16 %v4155
    %v4753 = vunpack.c.h.b16 %v4155
    %v4754 = vunpack.c.l.b16 %v4156
    %v4755 = vunpack.c.h.b16 %v4156
    %v4756 = vunpack.c.l.b16 %v4157
    %v4757 = vunpack.c.h.b16 %v4157
    %v4758 = vunpack.c.l.b16 %v4158
    %v4759 = vunpack.c.h.b16 %v4158
    %v4760 = vunpack.c.l.b16 %v4159
    %v4761 = vunpack.c.h.b16 %v4159
    %v4762 = vunpack.c.l.b16 %v4160
    %v4763 = vunpack.c.h.b16 %v4160
    %v4764 = vunpack.c.l.b16 %v4161
    %v4765 = vunpack.c.h.b16 %v4161
    %v4766 = vunpack.c.l.b16 %v4162
    %v4767 = vunpack.c.h.b16 %v4162
    %v4768 = vunpack.c.l.b16 %v4163
    %v4769 = vunpack.c.h.b16 %v4163
    %v4770 = vunpack.c.l.b16 %v4164
    %v4771 = vunpack.c.h.b16 %v4164
    %v4772 = vunpack.c.l.b16 %v4165
    %v4773 = vunpack.c.h.b16 %v4165
    %v4774 = vunpack.c.l.b16 %v4166
    %v4775 = vunpack.c.h.b16 %v4166
    %v4776 = vunpack.c.l.b16 %v4167
    %v4777 = vunpack.c.h.b16 %v4167
    %v4778 = vunpack.c.l.b16 %v4168
    %v4779 = vunpack.c.h.b16 %v4168
    %v4780 = vunpack.c.l.b16 %v4169
    %v4781 = vunpack.c.h.b16 %v4169
    %v4782 = vunpack.c.l.b16 %v4170
    %v4783 = vunpack.c.h.b16 %v4170
    %v4784 = vunpack.c.l.b16 %v4171
    %v4785 = vunpack.c.h.b16 %v4171
    %v4786 = vunpack.c.l.b16 %v4172
    %v4787 = vunpack.c.h.b16 %v4172
    %v4788 = vunpack.c.l.b16 %v4173
    %v4789 = vunpack.c.h.b16 %v4173
    %v4790 = vunpack.c.l.b16 %v4174
    %v4791 = vunpack.c.h.b16 %v4174
    %v4792 = vunpack.c.l.b16 %v4175
    %v4793 = vunpack.c.h.b16 %v4175
    %v4794 = vunpack.c.l.b16 %v4176
    %v4795 = vunpack.c.h.b16 %v4176
    %v4796 = vunpack.c.l.b16 %v4177
    %v4797 = vunpack.c.h.b16 %v4177
    %v4798 = vunpack.c.l.b16 %v4178
    %v4799 = vunpack.c.h.b16 %v4178
    %v4800 = vunpack.c.l.b16 %v4179
    %v4801 = vunpack.c.h.b16 %v4179
    %v4802 = vunpack.c.l.b16 %v4180
    %v4803 = vunpack.c.h.b16 %v4180
    %v4804 = vunpack.c.l.b16 %v4181
    %v4805 = vunpack.c.h.b16 %v4181
    %v4806 = vunpack.c.l.b16 %v4182
    %v4807 = vunpack.c.h.b16 %v4182
    %v4808 = vunpack.c.l.b16 %v4183
    %v4809 = vunpack.c.h.b16 %v4183
    %v4810 = vunpack.c.l.b16 %v4184
    %v4811 = vunpack.c.h.b16 %v4184
    %v4812 = vunpack.c.l.b16 %v4185
    %v4813 = vunpack.c.h.b16 %v4185
    %v4814 = vunpack.c.l.b16 %v4186
    %v4815 = vunpack.c.h.b16 %v4186
    %v4816 = vunpack.c.l.b16 %v4187
    %v4817 = vunpack.c.h.b16 %v4187
    %v4818 = vunpack.c.l.b16 %v4188
    %v4819 = vunpack.c.h.b16 %v4188
    %v4820 = vunpack.c.l.b16 %v4189
    %v4821 = vunpack.c.h.b16 %v4189
    %v4822 = vunpack.c.l.b16 %v4190
    %v4823 = vunpack.c.h.b16 %v4190
    %v4824 = vunpack.c.l.b16 %v4191
    %v4825 = vunpack.c.h.b16 %v4191
    %v4826 = vunpack.c.l.b16 %v4192
    %v4827 = vunpack.c.h.b16 %v4192
    %v4828 = vunpack.c.l.b16 %v4193
    %v4829 = vunpack.c.h.b16 %v4193
    %v4830 = vunpack.c.l.b16 %v4194
    %v4831 = vunpack.c.h.b16 %v4194
    %v4832 = vunpack.c.l.b16 %v4195
    %v4833 = vunpack.c.h.b16 %v4195
    %v4834 = vunpack.c.l.b16 %v4196
    %v4835 = vunpack.c.h.b16 %v4196
    %v4836 = vunpack.c.l.b16 %v4197
    %v4837 = vunpack.c.h.b16 %v4197
    %v4838 = vunpack.c.l.b16 %v4198
    %v4839 = vunpack.c.h.b16 %v4198
    %v4840 = vunpack.c.l.b16 %v4199
    %v4841 = vunpack.c.h.b16 %v4199
    %v4842 = vunpack.c.l.b16 %v4200
    %v4843 = vunpack.c.h.b16 %v4200
    %v4844 = vunpack.c.l.b16 %v4201
    %v4845 = vunpack.c.h.b16 %v4201
    %v4846 = vunpack.c.l.b16 %v4202
    %v4847 = vunpack.c.h.b16 %v4202
    %v4848 = vunpack.c.l.b16 %v4203
    %v4849 = vunpack.c.h.b16 %v4203
    %v4850 = vunpack.c.l.b16 %v4204
    %v4851 = vunpack.c.h.b16 %v4204
    %v4852 = vunpack.c.l.b16 %v4205
    %v4853 = vunpack.c.h.b16 %v4205
    %v4854 = vunpack.c.l.b16 %v4206
    %v4855 = vunpack.c.h.b16 %v4206
    %v4856 = vunpack.c.l.b16 %v4207
    %v4857 = vunpack.c.h.b16 %v4207
    %v4858 = vunpack.c.l.b16 %v4208
    %v4859 = vunpack.c.h.b16 %v4208
    %v4860 = vunpack.c.l.b16 %v4209
    %v4861 = vunpack.c.h.b16 %v4209
    %v4862 = vunpack.c.l.b16 %v4210
    %v4863 = vunpack.c.h.b16 %v4210
    %v4864 = vunpack.c.l.b16 %v4211
    %v4865 = vunpack.c.h.b16 %v4211
    %v4866 = vunpack.c.l.b16 %v4212
    %v4867 = vunpack.c.h.b16 %v4212
    %v4868 = vunpack.c.l.b16 %v4213
    %v4869 = vunpack.c.h.b16 %v4213
    %v4870 = vunpack.c.l.b16 %v4214
    %v4871 = vunpack.c.h.b16 %v4214
    %v4872 = vunpack.c.l.b16 %v4215
    %v4873 = vunpack.c.h.b16 %v4215
    %v4874 = vunpack.c.l.b16 %v4216
    %v4875 = vunpack.c.h.b16 %v4216
    %v4876 = vunpack.c.l.b16 %v4217
    %v4877 = vunpack.c.h.b16 %v4217
    %v4878 = vunpack.c.l.b16 %v4218
    %v4879 = vunpack.c.h.b16 %v4218
    %v4880 = vunpack.c.l.b16 %v4219
    %v4881 = vunpack.c.h.b16 %v4219
    %v4882 = vunpack.c.l.b16 %v4220
    %v4883 = vunpack.c.h.b16 %v4220
    %v4884 = vunpack.c.l.b16 %v4221
    %v4885 = vunpack.c.h.b16 %v4221
    %v4886 = vunpack.c.l.b16 %v4222
    %v4887 = vunpack.c.h.b16 %v4222
    %v4888 = vunpack.c.l.b16 %v4223
    %v4889 = vunpack.c.h.b16 %v4223
    %v4890 = vunpack.c.l.b16 %v4224
    %v4891 = vunpack.c.h.b16 %v4224
    %v4892 = vunpack.c.l.b16 %v4225
    %v4893 = vunpack.c.h.b16 %v4225
    %v4894 = vunpack.c.l.b16 %v4226
    %v4895 = vunpack.c.h.b16 %v4226
    %v4896 = vunpack.c.l.b16 %v4227
    %v4897 = vunpack.c.h.b16 %v4227
    %v4898 = vunpack.c.l.b16 %v4228
    %v4899 = vunpack.c.h.b16 %v4228
    %v4900 = vunpack.c.l.b16 %v4229
    %v4901 = vunpack.c.h.b16 %v4229
    %v4902 = vunpack.c.l.b16 %v4230
    %v4903 = vunpack.c.h.b16 %v4230
    %v4904 = vunpack.c.l.b16 %v4231
    %v4905 = vunpack.c.h.b16 %v4231
    %v4906 = vunpack.c.l.b16 %v4232
    %v4907 = vunpack.c.h.b16 %v4232
    %v4908 = vunpack.c.l.b16 %v4233
    %v4909 = vunpack.c.h.b16 %v4233
    %v4910 = vunpack.c.l.b16 %v4234
    %v4911 = vunpack.c.h.b16 %v4234
    %v4912 = vunpack.c.l.b16 %v4235
    %v4913 = vunpack.c.h.b16 %v4235
    %v4914 = vunpack.c.l.b16 %v4236
    %v4915 = vunpack.c.h.b16 %v4236
    %v4916 = vunpack.c.l.b16 %v4237
    %v4917 = vunpack.c.h.b16 %v4237
    %v4918 = vunpack.c.l.b16 %v4238
    %v4919 = vunpack.c.h.b16 %v4238
    %v4920 = vunpack.c.l.b16 %v4239
    %v4921 = vunpack.c.h.b16 %v4239
    %v4922 = vunpack.c.l.b16 %v4240
    %v4923 = vunpack.c.h.b16 %v4240
    %v4924 = vunpack.c.l.b16 %v4241
    %v4925 = vunpack.c.h.b16 %v4241
    %v4926 = vunpack.c.l.b16 %v4242
    %v4927 = vunpack.c.h.b16 %v4242
    %v4928 = vunpack.c.l.b16 %v4243
    %v4929 = vunpack.c.h.b16 %v4243
    %v4930 = vunpack.c.l.b16 %v4244
    %v4931 = vunpack.c.h.b16 %v4244
    %v4932 = vunpack.c.l.b16 %v4245
    %v4933 = vunpack.c.h.b16 %v4245
    %v4934 = vunpack.c.l.b16 %v4246
    %v4935 = vunpack.c.h.b16 %v4246
    %v4936 = vunpack.c.l.b16 %v4247
    %v4937 = vunpack.c.h.b16 %v4247
    %v4938 = vunpack.c.l.b16 %v4248
    %v4939 = vunpack.c.h.b16 %v4248
    %v4940 = vunpack.c.l.b16 %v4249
    %v4941 = vunpack.c.h.b16 %v4249
    %v4942 = vunpack.c.l.b16 %v4250
    %v4943 = vunpack.c.h.b16 %v4250
    %v4944 = vunpack.c.l.b16 %v4251
    %v4945 = vunpack.c.h.b16 %v4251
    %v4946 = vunpack.c.l.b16 %v4252
    %v4947 = vunpack.c.h.b16 %v4252
    %v4948 = vunpack.c.l.b16 %v4253
    %v4949 = vunpack.c.h.b16 %v4253
    %v4950 = vunpack.c.l.b16 %v4254
    %v4951 = vunpack.c.h.b16 %v4254
    %v4952 = vunpack.c.l.b16 %v4255
    %v4953 = vunpack.c.h.b16 %v4255
    %v4954 = vunpack.c.l.b16 %v4256
    %v4955 = vunpack.c.h.b16 %v4256
    %v4956 = vunpack.c.l.b16 %v4257
    %v4957 = vunpack.c.h.b16 %v4257
    %v4958 = vunpack.c.l.b16 %v4258
    %v4959 = vunpack.c.h.b16 %v4258
    %v4960 = vunpack.c.l.b16 %v4259
    %v4961 = vunpack.c.h.b16 %v4259
    %v4962 = vunpack.c.l.b16 %v4260
    %v4963 = vunpack.c.h.b16 %v4260
    %v4964 = vunpack.c.l.b16 %v4261
    %v4965 = vunpack.c.h.b16 %v4261
    %v4966 = vunpack.c.l.b16 %v4262
    %v4967 = vunpack.c.h.b16 %v4262
    %v4968 = vunpack.c.l.b16 %v4263
    %v4969 = vunpack.c.h.b16 %v4263
    %v4970 = vunpack.c.l.b16 %v4264
    %v4971 = vunpack.c.h.b16 %v4264
    %v4972 = vunpack.c.l.b16 %v4265
    %v4973 = vunpack.c.h.b16 %v4265
    %v4974 = vunpack.c.l.b16 %v4266
    %v4975 = vunpack.c.h.b16 %v4266
    %v4976 = vunpack.c.l.b16 %v4267
    %v4977 = vunpack.c.h.b16 %v4267
    %v4978 = vunpack.c.l.b16 %v4268
    %v4979 = vunpack.c.h.b16 %v4268
    %v4980 = vunpack.c.l.b16 %v4269
    %v4981 = vunpack.c.h.b16 %v4269
    %v4982 = vunpack.c.l.b16 %v4270
    %v4983 = vunpack.c.h.b16 %v4270
    %v4984 = vunpack.c.l.b16 %v4271
    %v4985 = vunpack.c.h.b16 %v4271
    %v4986 = vunpack.c.l.b16 %v4272
    %v4987 = vunpack.c.h.b16 %v4272
    %v4988 = vunpack.c.l.b16 %v4273
    %v4989 = vunpack.c.h.b16 %v4273
    %v4990 = vunpack.c.l.b16 %v4274
    %v4991 = vunpack.c.h.b16 %v4274
    %v4992 = vunpack.c.l.b16 %v4275
    %v4993 = vunpack.c.h.b16 %v4275
    %v4994 = vunpack.c.l.b16 %v4276
    %v4995 = vunpack.c.h.b16 %v4276
    %v4996 = vunpack.c.l.b16 %v4277
    %v4997 = vunpack.c.h.b16 %v4277
    %v4998 = vunpack.c.l.b16 %v4278
    %v4999 = vunpack.c.h.b16 %v4278
    %v5000 = vunpack.c.l.b16 %v4279
    %v5001 = vunpack.c.h.b16 %v4279
    %v5002 = vunpack.c.l.b16 %v4280
    %v5003 = vunpack.c.h.b16 %v4280
    %v5004 = vunpack.c.l.b16 %v4281
    %v5005 = vunpack.c.h.b16 %v4281
    %v5006 = vunpack.c.l.b16 %v4282
    %v5007 = vunpack.c.h.b16 %v4282
    %v5008 = vunpack.c.l.b16 %v4283
    %v5009 = vunpack.c.h.b16 %v4283
    %v5010 = vunpack.c.l.b16 %v4284
    %v5011 = vunpack.c.h.b16 %v4284
    %v5012 = vunpack.c.l.b16 %v4285
    %v5013 = vunpack.c.h.b16 %v4285
    %v5014 = vunpack.c.l.b16 %v4286
    %v5015 = vunpack.c.h.b16 %v4286
    %v5016 = vunpack.c.l.b16 %v4287
    %v5017 = vunpack.c.h.b16 %v4287
    %v5018 = vunpack.c.l.b16 %v4288
    %v5019 = vunpack.c.h.b16 %v4288
    %v5020 = vunpack.c.l.b16 %v4289
    %v5021 = vunpack.c.h.b16 %v4289
    %v5022 = vunpack.c.l.b16 %v4290
    %v5023 = vunpack.c.h.b16 %v4290
    %v5024 = vunpack.c.l.b16 %v4291
    %v5025 = vunpack.c.h.b16 %v4291
    %v5026 = vunpack.c.l.b16 %v4292
    %v5027 = vunpack.c.h.b16 %v4292
    %v5028 = vunpack.c.l.b16 %v4293
    %v5029 = vunpack.c.h.b16 %v4293
    %v5030 = vunpack.c.l.b16 %v4294
    %v5031 = vunpack.c.h.b16 %v4294
    %v5032 = vunpack.c.l.b16 %v4295
    %v5033 = vunpack.c.h.b16 %v4295
    %v5034 = vunpack.c.l.b16 %v4296
    %v5035 = vunpack.c.h.b16 %v4296
    %v5036 = vunpack.c.l.b16 %v4297
    %v5037 = vunpack.c.h.b16 %v4297
    %v5038 = vunpack.c.l.b16 %v4298
    %v5039 = vunpack.c.h.b16 %v4298
    %v5040 = vunpack.c.l.b16 %v4299
    %v5041 = vunpack.c.h.b16 %v4299
    %v5042 = vunpack.c.l.b16 %v4300
    %v5043 = vunpack.c.h.b16 %v4300
    %v5044 = vunpack.c.l.b16 %v4301
    %v5045 = vunpack.c.h.b16 %v4301
    %v5046 = vunpack.c.l.b16 %v4302
    %v5047 = vunpack.c.h.b16 %v4302
    %v5048 = vunpack.c.l.b16 %v4303
    %v5049 = vunpack.c.h.b16 %v4303
    %v5050 = vunpack.c.l.b16 %v4304
    %v5051 = vunpack.c.h.b16 %v4304
    %v5052 = vunpack.c.l.b16 %v4305
    %v5053 = vunpack.c.h.b16 %v4305
    %v5054 = vunpack.c.l.b16 %v4306
    %v5055 = vunpack.c.h.b16 %v4306
    %v5056 = vunpack.c.l.b16 %v4307
    %v5057 = vunpack.c.h.b16 %v4307
    %v5058 = vunpack.c.l.b16 %v4308
    %v5059 = vunpack.c.h.b16 %v4308
    %v5060 = vunpack.c.l.b16 %v4309
    %v5061 = vunpack.c.h.b16 %v4309
    %v5062 = vunpack.c.l.b16 %v4310
    %v5063 = vunpack.c.h.b16 %v4310
    %v5064 = vunpack.c.l.b16 %v4311
    %v5065 = vunpack.c.h.b16 %v4311
    %v5066 = vunpack.c.l.b16 %v4312
    %v5067 = vunpack.c.h.b16 %v4312
    %v5068 = vunpack.c.l.b16 %v4313
    %v5069 = vunpack.c.h.b16 %v4313
    %v5070 = vunpack.c.l.b16 %v4314
    %v5071 = vunpack.c.h.b16 %v4314
    %v5072 = vunpack.c.l.b16 %v4315
    %v5073 = vunpack.c.h.b16 %v4315
    %v5074 = vunpack.c.l.b16 %v4316
    %v5075 = vunpack.c.h.b16 %v4316
    %v5076 = vunpack.c.l.b16 %v4317
    %v5077 = vunpack.c.h.b16 %v4317
    %v5078 = vunpack.c.l.b16 %v4318
    %v5079 = vunpack.c.h.b16 %v4318
    %v5080 = vunpack.c.l.b16 %v4319
    %v5081 = vunpack.c.h.b16 %v4319
    %v5082 = vunpack.c.l.b16 %v4320
    %v5083 = vunpack.c.h.b16 %v4320
    %v5084 = vunpack.c.l.b16 %v4321
    %v5085 = vunpack.c.h.b16 %v4321
    %v5086 = vunpack.c.l.b16 %v4322
    %v5087 = vunpack.c.h.b16 %v4322
    %v5088 = vunpack.c.l.b16 %v4323
    %v5089 = vunpack.c.h.b16 %v4323
    %v5090 = vunpack.c.l.b16 %v4324
    %v5091 = vunpack.c.h.b16 %v4324
    %v5092 = vunpack.c.l.b16 %v4325
    %v5093 = vunpack.c.h.b16 %v4325
    %v5094 = vunpack.c.l.b16 %v4326
    %v5095 = vunpack.c.h.b16 %v4326
    %v5096 = vunpack.c.l.b16 %v4327
    %v5097 = vunpack.c.h.b16 %v4327
    %v5098 = vunpack.c.l.b16 %v4328
    %v5099 = vunpack.c.h.b16 %v4328
    %v5100 = vunpack.c.l.b16 %v4329
    %v5101 = vunpack.c.h.b16 %v4329
    %v5102 = vunpack.c.l.b16 %v4330
    %v5103 = vunpack.c.h.b16 %v4330
    %v5104 = vunpack.c.l.b16 %v4331
    %v5105 = vunpack.c.h.b16 %v4331
    %v5106 = vunpack.c.l.b16 %v4332
    %v5107 = vunpack.c.h.b16 %v4332
    %v5108 = vunpack.c.l.b16 %v4333
    %v5109 = vunpack.c.h.b16 %v4333
    %v5110 = vunpack.c.l.b16 %v4334
    %v5111 = vunpack.c.h.b16 %v4334
    %v5112 = vunpack.c.l.b16 %v4335
    %v5113 = vunpack.c.h.b16 %v4335
    %v5114 = vunpack.c.l.b16 %v4336
    %v5115 = vunpack.c.h.b16 %v4336
    %v5116 = vunpack.c.l.b16 %v4337
    %v5117 = vunpack.c.h.b16 %v4337
    %v5118 = vunpack.c.l.b16 %v4338
    %v5119 = vunpack.c.h.b16 %v4338
    %v5120 = vunpack.c.l.b16 %v4339
    %v5121 = vunpack.c.h.b16 %v4339
    %v5122 = vunpack.c.l.b16 %v4340
    %v5123 = vunpack.c.h.b16 %v4340
    %v5124 = vunpack.c.l.b16 %v4341
    %v5125 = vunpack.c.h.b16 %v4341
    %v5126 = vunpack.c.l.b16 %v4342
    %v5127 = vunpack.c.h.b16 %v4342
    %v5128 = vunpack.c.l.b16 %v4343
    %v5129 = vunpack.c.h.b16 %v4343
    %v5130 = vunpack.c.l.b16 %v4344
    %v5131 = vunpack.c.h.b16 %v4344
    %v5132 = vunpack.c.l.b16 %v4345
    %v5133 = vunpack.c.h.b16 %v4345
    %v5134 = vunpack.c.l.b16 %v4346
    %v5135 = vunpack.c.h.b16 %v4346
    %v5136 = vunpack.c.l.b16 %v4347
    %v5137 = vunpack.c.h.b16 %v4347
    %v5138 = vpack.c.b16 %v4630, %v4626
    %v5139 = vpack.c.b16 %v4631, %v4627
    %v5140 = vpack.c.b16 %v4632, %v4628
    %v5141 = vpack.c.b16 %v4633, %v4629
    %v5142 = vpack.c.b16 %v4638, %v4634
    %v5143 = vpack.c.b16 %v4639, %v4635
    %v5144 = vpack.c.b16 %v4640, %v4636
    %v5145 = vpack.c.b16 %v4641, %v4637
    %v5146 = vpack.c.b16 %v4646, %v4642
    %v5147 = vpack.c.b16 %v4647, %v4643
    %v5148 = vpack.c.b16 %v4648, %v4644
    %v5149 = vpack.c.b16 %v4649, %v4645
    %v5150 = vpack.c.b16 %v4654, %v4650
    %v5151 = vpack.c.b16 %v4655, %v4651
    %v5152 = vpack.c.b16 %v4656, %v4652
    %v5153 = vpack.c.b16 %v4657, %v4653
    %v5154 = vpack.c.b16 %v4662, %v4658
    %v5155 = vpack.c.b16 %v4663, %v4659
    %v5156 = vpack.c.b16 %v4664, %v4660
    %v5157 = vpack.c.b16 %v4665, %v4661
    %v5158 = vpack.c.b16 %v4670, %v4666
    %v5159 = vpack.c.b16 %v4671, %v4667
    %v5160 = vpack.c.b16 %v4672, %v4668
    %v5161 = vpack.c.b16 %v4673, %v4669
    %v5162 = vpack.c.b16 %v4678, %v4674
    %v5163 = vpack.c.b16 %v4679, %v4675
    %v5164 = vpack.c.b16 %v4680, %v4676
    %v5165 = vpack.c.b16 %v4681, %v4677
    %v5166 = vpack.c.b16 %v4686, %v4682
    %v5167 = vpack.c.b16 %v4687, %v4683
    %v5168 = vpack.c.b16 %v4688, %v4684
    %v5169 = vpack.c.b16 %v4689, %v4685
    %v5170 = vpack.c.b16 %v4694, %v4690
    %v5171 = vpack.c.b16 %v4695, %v4691
    %v5172 = vpack.c.b16 %v4696, %v4692
    %v5173 = vpack.c.b16 %v4697, %v4693
    %v5174 = vpack.c.b16 %v4702, %v4698
    %v5175 = vpack.c.b16 %v4703, %v4699
    %v5176 = vpack.c.b16 %v4704, %v4700
    %v5177 = vpack.c.b16 %v4705, %v4701
    %v5178 = vpack.c.b16 %v4710, %v4706
    %v5179 = vpack.c.b16 %v4711, %v4707
    %v5180 = vpack.c.b16 %v4712, %v4708
    %v5181 = vpack.c.b16 %v4713, %v4709
    %v5182 = vpack.c.b16 %v4718, %v4714
    %v5183 = vpack.c.b16 %v4719, %v4715
    %v5184 = vpack.c.b16 %v4720, %v4716
    %v5185 = vpack.c.b16 %v4721, %v4717
    %v5186 = vpack.c.b16 %v4726, %v4722
    %v5187 = vpack.c.b16 %v4727, %v4723
    %v5188 = vpack.c.b16 %v4728, %v4724
    %v5189 = vpack.c.b16 %v4729, %v4725
    %v5190 = vpack.c.b16 %v4734, %v4730
    %v5191 = vpack.c.b16 %v4735, %v4731
    %v5192 = vpack.c.b16 %v4736, %v4732
    %v5193 = vpack.c.b16 %v4737, %v4733
    %v5194 = vpack.c.b16 %v4742, %v4738
    %v5195 = vpack.c.b16 %v4743, %v4739
    %v5196 = vpack.c.b16 %v4744, %v4740
    %v5197 = vpack.c.b16 %v4745, %v4741
    %v5198 = vpack.c.b16 %v4750, %v4746
    %v5199 = vpack.c.b16 %v4751, %v4747
    %v5200 = vpack.c.b16 %v4752, %v4748
    %v5201 = vpack.c.b16 %v4753, %v4749
    %v5202 = vpack.c.b16 %v4758, %v4754
    %v5203 = vpack.c.b16 %v4759, %v4755
    %v5204 = vpack.c.b16 %v4760, %v4756
    %v5205 = vpack.c.b16 %v4761, %v4757
    %v5206 = vpack.c.b16 %v4766, %v4762
    %v5207 = vpack.c.b16 %v4767, %v4763
    %v5208 = vpack.c.b16 %v4768, %v4764
    %v5209 = vpack.c.b16 %v4769, %v4765
    %v5210 = vpack.c.b16 %v4774, %v4770
    %v5211 = vpack.c.b16 %v4775, %v4771
    %v5212 = vpack.c.b16 %v4776, %v4772
    %v5213 = vpack.c.b16 %v4777, %v4773
    %v5214 = vpack.c.b16 %v4782, %v4778
    %v5215 = vpack.c.b16 %v4783, %v4779
    %v5216 = vpack.c.b16 %v4784, %v4780
    %v5217 = vpack.c.b16 %v4785, %v4781
    %v5218 = vpack.c.b16 %v4790, %v4786
    %v5219 = vpack.c.b16 %v4791, %v4787
    %v5220 = vpack.c.b16 %v4792, %v4788
    %v5221 = vpack.c.b16 %v4793, %v4789
    %v5222 = vpack.c.b16 %v4798, %v4794
    %v5223 = vpack.c.b16 %v4799, %v4795
    %v5224 = vpack.c.b16 %v4800, %v4796
    %v5225 = vpack.c.b16 %v4801, %v4797
    %v5226 = vpack.c.b16 %v4806, %v4802
    %v5227 = vpack.c.b16 %v4807, %v4803
    %v5228 = vpack.c.b16 %v4808, %v4804
    %v5229 = vpack.c.b16 %v4809, %v4805
    %v5230 = vpack.c.b16 %v4814, %v4810
    %v5231 = vpack.c.b16 %v4815, %v4811
    %v5232 = vpack.c.b16 %v4816, %v4812
    %v5233 = vpack.c.b16 %v4817, %v4813
    %v5234 = vpack.c.b16 %v4822, %v4818
    %v5235 = vpack.c.b16 %v4823, %v4819
    %v5236 = vpack.c.b16 %v4824, %v4820
    %v5237 = vpack.c.b16 %v4825, %v4821
    %v5238 = vpack.c.b16 %v4830, %v4826
    %v5239 = vpack.c.b16 %v4831, %v4827
    %v5240 = vpack.c.b16 %v4832, %v4828
    %v5241 = vpack.c.b16 %v4833, %v4829
    %v5242 = vpack.c.b16 %v4838, %v4834
    %v5243 = vpack.c.b16 %v4839, %v4835
    %v5244 = vpack.c.b16 %v4840, %v4836
    %v5245 = vpack.c.b16 %v4841, %v4837
    %v5246 = vpack.c.b16 %v4846, %v4842
    %v5247 = vpack.c.b16 %v4847, %v4843
    %v5248 = vpack.c.b16 %v4848, %v4844
    %v5249 = vpack.c.b16 %v4849, %v4845
    %v5250 = vpack.c.b16 %v4854, %v4850
    %v5251 = vpack.c.b16 %v4855, %v4851
    %v5252 = vpack.c.b16 %v4856, %v4852
    %v5253 = vpack.c.b16 %v4857, %v4853
    %v5254 = vpack.c.b16 %v4862, %v4858
    %v5255 = vpack.c.b16 %v4863, %v4859
    %v5256 = vpack.c.b16 %v4864, %v4860
    %v5257 = vpack.c.b16 %v4865, %v4861
    %v5258 = vpack.c.b16 %v4870, %v4866
    %v5259 = vpack.c.b16 %v4871, %v4867
    %v5260 = vpack.c.b16 %v4872, %v4868
    %v5261 = vpack.c.b16 %v4873, %v4869
    %v5262 = vpack.c.b16 %v4878, %v4874
    %v5263 = vpack.c.b16 %v4879, %v4875
    %v5264 = vpack.c.b16 %v4880, %v4876
    %v5265 = vpack.c.b16 %v4881, %v4877
    %v5266 = vpack.c.b16 %v4886, %v4882
    %v5267 = vpack.c.b16 %v4887, %v4883
    %v5268 = vpack.c.b16 %v4888, %v4884
    %v5269 = vpack.c.b16 %v4889, %v4885
    %v5270 = vpack.c.b16 %v4894, %v4890
    %v5271 = vpack.c.b16 %v4895, %v4891
    %v5272 = vpack.c.b16 %v4896, %v4892
    %v5273 = vpack.c.b16 %v4897, %v4893
    %v5274 = vpack.c.b16 %v4902, %v4898
    %v5275 = vpack.c.b16 %v4903, %v4899
    %v5276 = vpack.c.b16 %v4904, %v4900
    %v5277 = vpack.c.b16 %v4905, %v4901
    %v5278 = vpack.c.b16 %v4910, %v4906
    %v5279 = vpack.c.b16 %v4911, %v4907
    %v5280 = vpack.c.b16 %v4912, %v4908
    %v5281 = vpack.c.b16 %v4913, %v4909
    %v5282 = vpack.c.b16 %v4918, %v4914
    %v5283 = vpack.c.b16 %v4919, %v4915
    %v5284 = vpack.c.b16 %v4920, %v4916
    %v5285 = vpack.c.b16 %v4921, %v4917
    %v5286 = vpack.c.b16 %v4926, %v4922
    %v5287 = vpack.c.b16 %v4927, %v4923
    %v5288 = vpack.c.b16 %v4928, %v4924
    %v5289 = vpack.c.b16 %v4929, %v4925
    %v5290 = vpack.c.b16 %v4934, %v4930
    %v5291 = vpack.c.b16 %v4935, %v4931
    %v5292 = vpack.c.b16 %v4936, %v4932
    %v5293 = vpack.c.b16 %v4937, %v4933
    %v5294 = vpack.c.b16 %v4942, %v4938
    %v5295 = vpack.c.b16 %v4943, %v4939
    %v5296 = vpack.c.b16 %v4944, %v4940
    %v5297 = vpack.c.b16 %v4945, %v4941
    %v5298 = vpack.c.b16 %v4950, %v4946
    %v5299 = vpack.c.b16 %v4951, %v4947
    %v5300 = vpack.c.b16 %v4952, %v4948
    %v5301 = vpack.c.b16 %v4953, %v4949
    %v5302 = vpack.c.b16 %v4958, %v4954
    %v5303 = vpack.c.b16 %v4959, %v4955
    %v5304 = vpack.c.b16 %v4960, %v4956
    %v5305 = vpack.c.b16 %v4961, %v4957
    %v5306 = vpack.c.b16 %v4966, %v4962
    %v5307 = vpack.c.b16 %v4967, %v4963
    %v5308 = vpack.c.b16 %v4968, %v4964
    %v5309 = vpack.c.b16 %v4969, %v4965
    %v5310 = vpack.c.b16 %v4974, %v4970
    %v5311 = vpack.c.b16 %v4975, %v4971
    %v5312 = vpack.c.b16 %v4976, %v4972
    %v5313 = vpack.c.b16 %v4977, %v4973
    %v5314 = vpack.c.b16 %v4982, %v4978
    %v5315 = vpack.c.b16 %v4983, %v4979
    %v5316 = vpack.c.b16 %v4984, %v4980
    %v5317 = vpack.c.b16 %v4985, %v4981
    %v5318 = vpack.c.b16 %v4990, %v4986
    %v5319 = vpack.c.b16 %v4991, %v4987
    %v5320 = vpack.c.b16 %v4992, %v4988
    %v5321 = vpack.c.b16 %v4993, %v4989
    %v5322 = vpack.c.b16 %v4998, %v4994
    %v5323 = vpack.c.b16 %v4999, %v4995
    %v5324 = vpack.c.b16 %v5000, %v4996
    %v5325 = vpack.c.b16 %v5001, %v4997
    %v5326 = vpack.c.b16 %v5006, %v5002
    %v5327 = vpack.c.b16 %v5007, %v5003
    %v5328 = vpack.c.b16 %v5008, %v5004
    %v5329 = vpack.c.b16 %v5009, %v5005
    %v5330 = vpack.c.b16 %v5014, %v5010
    %v5331 = vpack.c.b16 %v5015, %v5011
    %v5332 = vpack.c.b16 %v5016, %v5012
    %v5333 = vpack.c.b16 %v5017, %v5013
    %v5334 = vpack.c.b16 %v5022, %v5018
    %v5335 = vpack.c.b16 %v5023, %v5019
    %v5336 = vpack.c.b16 %v5024, %v5020
    %v5337 = vpack.c.b16 %v5025, %v5021
    %v5338 = vpack.c.b16 %v5030, %v5026
    %v5339 = vpack.c.b16 %v5031, %v5027
    %v5340 = vpack.c.b16 %v5032, %v5028
    %v5341 = vpack.c.b16 %v5033, %v5029
    %v5342 = vpack.c.b16 %v5038, %v5034
    %v5343 = vpack.c.b16 %v5039, %v5035
    %v5344 = vpack.c.b16 %v5040, %v5036
    %v5345 = vpack.c.b16 %v5041, %v5037
    %v5346 = vpack.c.b16 %v5046, %v5042
    %v5347 = vpack.c.b16 %v5047, %v5043
    %v5348 = vpack.c.b16 %v5048, %v5044
    %v5349 = vpack.c.b16 %v5049, %v5045
    %v5350 = vpack.c.b16 %v5054, %v5050
    %v5351 = vpack.c.b16 %v5055, %v5051
    %v5352 = vpack.c.b16 %v5056, %v5052
    %v5353 = vpack.c.b16 %v5057, %v5053
    %v5354 = vpack.c.b16 %v5062, %v5058
    %v5355 = vpack.c.b16 %v5063, %v5059
    %v5356 = vpack.c.b16 %v5064, %v5060
    %v5357 = vpack.c.b16 %v5065, %v5061
    %v5358 = vpack.c.b16 %v5070, %v5066
    %v5359 = vpack.c.b16 %v5071, %v5067
    %v5360 = vpack.c.b16 %v5072, %v5068
    %v5361 = vpack.c.b16 %v5073, %v5069
    %v5362 = vpack.c.b16 %v5078, %v5074
    %v5363 = vpack.c.b16 %v5079, %v5075
    %v5364 = vpack.c.b16 %v5080, %v5076
    %v5365 = vpack.c.b16 %v5081, %v5077
    %v5366 = vpack.c.b16 %v5086, %v5082
    %v5367 = vpack.c.b16 %v5087, %v5083
    %v5368 = vpack.c.b16 %v5088, %v5084
    %v5369 = vpack.c.b16 %v5089, %v5085
    %v5370 = vpack.c.b16 %v5094, %v5090
    %v5371 = vpack.c.b16 %v5095, %v5091
    %v5372 = vpack.c.b16 %v5096, %v5092
    %v5373 = vpack.c.b16 %v5097, %v5093
    %v5374 = vpack.c.b16 %v5102, %v5098
    %v5375 = vpack.c.b16 %v5103, %v5099
    %v5376 = vpack.c.b16 %v5104, %v5100
    %v5377 = vpack.c.b16 %v5105, %v5101
    %v5378 = vpack.c.b16 %v5110, %v5106
    %v5379 = vpack.c.b16 %v5111, %v5107
    %v5380 = vpack.c.b16 %v5112, %v5108
    %v5381 = vpack.c.b16 %v5113, %v5109
    %v5382 = vpack.c.b16 %v5118, %v5114
    %v5383 = vpack.c.b16 %v5119, %v5115
    %v5384 = vpack.c.b16 %v5120, %v5116
    %v5385 = vpack.c.b16 %v5121, %v5117
    %v5386 = vpack.c.b16 %v5126, %v5122
    %v5387 = vpack.c.b16 %v5127, %v5123
    %v5388 = vpack.c.b16 %v5128, %v5124
    %v5389 = vpack.c.b16 %v5129, %v5125
    %v5390 = vpack.c.b16 %v5134, %v5130
    %v5391 = vpack.c.b16 %v5135, %v5131
    %v5392 = vpack.c.b16 %v5136, %v5132
    %v5393 = vpack.c.b16 %v5137, %v5133
    %5650 = vmatprep.subr.bf16.mxu0 %v5167
    %5651 = vmatpush1.bf16.msra.mxu0 %v5166
    %5652 = vmatprep.subr.bf16.mxu0 %v5163
    %5653 = vmatpush1.bf16.msra.mxu0 %v5162
    %5654 = vmatprep.subr.bf16.mxu0 %v5159
    %5655 = vmatpush1.bf16.msra.mxu0 %v5158
    %5656 = vmatprep.subr.bf16.mxu0 %v5155
    %5657 = vmatpush1.bf16.msra.mxu0 %v5154
    %5658 = vmatprep.subr.bf16.mxu0 %v5151
    %5659 = vmatpush1.bf16.msra.mxu0 %v5150
    %5660 = vmatprep.subr.bf16.mxu0 %v5147
    %5661 = vmatpush1.bf16.msra.mxu0 %v5146
    %5662 = vmatprep.subr.bf16.mxu0 %v5143
    %5663 = vmatpush1.bf16.msra.mxu0 %v5142
    %5664 = vmatprep.subr.bf16.mxu0 %v5139
    %5665 = vmatpush1.bf16.msra.mxu0 %v5138
    %5666 = vmatprep.subr.bf16.mxu0 %v5199
    %5667 = vmatpush2.bf16.msra.mxu0 %v5198
    %5668 = vmatprep.subr.bf16.mxu0 %v5195
    %5669 = vmatpush2.bf16.msra.mxu0 %v5194
    %5670 = vmatprep.subr.bf16.mxu0 %v5191
    %5671 = vmatpush2.bf16.msra.mxu0 %v5190
    %5672 = vmatprep.subr.bf16.mxu0 %v5187
    %5673 = vmatpush2.bf16.msra.mxu0 %v5186
    %5674 = vmatprep.subr.bf16.mxu0 %v5183
    %5675 = vmatpush2.bf16.msra.mxu0 %v5182
    %5676 = vmatprep.subr.bf16.mxu0 %v5179
    %5677 = vmatpush2.bf16.msra.mxu0 %v5178
    %5678 = vmatprep.subr.bf16.mxu0 %v5175
    %5679 = vmatpush2.bf16.msra.mxu0 %v5174
    %5680 = vmatprep.subr.bf16.mxu0 %v5171
    %5681 = vmatpush2.bf16.msra.mxu0 %v5170
    %5682 = vmatprep.mubr.bf16.mxu0 %v4085
    %5683 = vmatmul.mubr.bf16.gmra.mxu0 %v4084
    %v5684 = vpop.f32.mrf.mxu0
    %v5685 = vadd.f32 %v4353, %v5684
    %v5686 = vpop.f32.mrf.mxu0
    %v5687 = vadd.f32 %v4357, %v5686
    %v5688 = vpop.f32.mrf.mxu0
    %v5689 = vpop.f32.mrf.mxu0
    %5690 = vdwg.mxu0
    %5691 = vmatprep.subr.bf16.mxu0 %v5231
    %5692 = vmatpush1.bf16.msra.mxu0 %v5230
    %5693 = vmatprep.subr.bf16.mxu0 %v5227
    %5694 = vmatpush1.bf16.msra.mxu0 %v5226
    %5695 = vmatprep.subr.bf16.mxu0 %v5223
    %5696 = vmatpush1.bf16.msra.mxu0 %v5222
    %5697 = vmatprep.subr.bf16.mxu0 %v5219
    %5698 = vmatpush1.bf16.msra.mxu0 %v5218
    %5699 = vmatprep.subr.bf16.mxu0 %v5215
    %5700 = vmatpush1.bf16.msra.mxu0 %v5214
    %5701 = vmatprep.subr.bf16.mxu0 %v5211
    %5702 = vmatpush1.bf16.msra.mxu0 %v5210
    %5703 = vmatprep.subr.bf16.mxu0 %v5207
    %5704 = vmatpush1.bf16.msra.mxu0 %v5206
    %5705 = vmatprep.subr.bf16.mxu0 %v5203
    %5706 = vmatpush1.bf16.msra.mxu0 %v5202
    %5707 = vmatprep.subr.bf16.mxu0 %v5263
    %5708 = vmatpush2.bf16.msra.mxu0 %v5262
    %5709 = vmatprep.subr.bf16.mxu0 %v5259
    %5710 = vmatpush2.bf16.msra.mxu0 %v5258
    %5711 = vmatprep.subr.bf16.mxu0 %v5255
    %5712 = vmatpush2.bf16.msra.mxu0 %v5254
    %5713 = vmatprep.subr.bf16.mxu0 %v5251
    %5714 = vmatpush2.bf16.msra.mxu0 %v5250
    %5715 = vmatprep.subr.bf16.mxu0 %v5247
    %5716 = vmatpush2.bf16.msra.mxu0 %v5246
    %5717 = vmatprep.subr.bf16.mxu0 %v5243
    %5718 = vmatpush2.bf16.msra.mxu0 %v5242
    %5719 = vmatprep.subr.bf16.mxu0 %v5239
    %5720 = vmatpush2.bf16.msra.mxu0 %v5238
    %5721 = vmatprep.subr.bf16.mxu0 %v5235
    %5722 = vmatpush2.bf16.msra.mxu0 %v5234
    %5723 = vmatprep.mubr.bf16.mxu0 %v4087
    %5724 = vmatmul.mubr.bf16.gmra.mxu0 %v4086
    %v5725 = vpop.f32.mrf.mxu0
    %v5726 = vadd.f32 %v5685, %v5725
    %v5727 = vpop.f32.mrf.mxu0
    %v5728 = vadd.f32 %v5687, %v5727
    %v5729 = vpop.f32.mrf.mxu0
    %v5730 = vpop.f32.mrf.mxu0
    %5731 = vdwg.mxu0
    %5732 = vmatprep.subr.bf16.mxu0 %v5295
    %5733 = vmatpush1.bf16.msra.mxu0 %v5294
    %5734 = vmatprep.subr.bf16.mxu0 %v5291
    %5735 = vmatpush1.bf16.msra.mxu0 %v5290
    %5736 = vmatprep.subr.bf16.mxu0 %v5287
    %5737 = vmatpush1.bf16.msra.mxu0 %v5286
    %5738 = vmatprep.subr.bf16.mxu0 %v5283
    %5739 = vmatpush1.bf16.msra.mxu0 %v5282
    %5740 = vmatprep.subr.bf16.mxu0 %v5279
    %5741 = vmatpush1.bf16.msra.mxu0 %v5278
    %5742 = vmatprep.subr.bf16.mxu0 %v5275
    %5743 = vmatpush1.bf16.msra.mxu0 %v5274
    %5744 = vmatprep.subr.bf16.mxu0 %v5271
    %5745 = vmatpush1.bf16.msra.mxu0 %v5270
    %5746 = vmatprep.subr.bf16.mxu0 %v5267
    %5747 = vmatpush1.bf16.msra.mxu0 %v5266
    %5748 = vmatprep.subr.bf16.mxu0 %v5327
    %5749 = vmatpush2.bf16.msra.mxu0 %v5326
    %5750 = vmatprep.subr.bf16.mxu0 %v5323
    %5751 = vmatpush2.bf16.msra.mxu0 %v5322
    %5752 = vmatprep.subr.bf16.mxu0 %v5319
    %5753 = vmatpush2.bf16.msra.mxu0 %v5318
    %5754 = vmatprep.subr.bf16.mxu0 %v5315
    %5755 = vmatpush2.bf16.msra.mxu0 %v5314
    %5756 = vmatprep.subr.bf16.mxu0 %v5311
    %5757 = vmatpush2.bf16.msra.mxu0 %v5310
    %5758 = vmatprep.subr.bf16.mxu0 %v5307
    %5759 = vmatpush2.bf16.msra.mxu0 %v5306
    %5760 = vmatprep.subr.bf16.mxu0 %v5303
    %5761 = vmatpush2.bf16.msra.mxu0 %v5302
    %5762 = vmatprep.subr.bf16.mxu0 %v5299
    %5763 = vmatpush2.bf16.msra.mxu0 %v5298
    %5764 = vmatprep.mubr.bf16.mxu0 %v4089
    %5765 = vmatmul.mubr.bf16.gmra.mxu0 %v4088
    %v5766 = vpop.f32.mrf.mxu0
    %v5767 = vadd.f32 %v5726, %v5766
    %v5768 = vpop.f32.mrf.mxu0
    %v5769 = vadd.f32 %v5728, %v5768
    %v5770 = vpop.f32.mrf.mxu0
    %v5771 = vpop.f32.mrf.mxu0
    %5772 = vdwg.mxu0
    %5773 = vmatprep.subr.bf16.mxu0 %v5359
    %5774 = vmatpush1.bf16.msra.mxu0 %v5358
    %5775 = vmatprep.subr.bf16.mxu0 %v5355
    %5776 = vmatpush1.bf16.msra.mxu0 %v5354
    %5777 = vmatprep.subr.bf16.mxu0 %v5351
    %5778 = vmatpush1.bf16.msra.mxu0 %v5350
    %5779 = vmatprep.subr.bf16.mxu0 %v5347
    %5780 = vmatpush1.bf16.msra.mxu0 %v5346
    %5781 = vmatprep.subr.bf16.mxu0 %v5343
    %5782 = vmatpush1.bf16.msra.mxu0 %v5342
    %5783 = vmatprep.subr.bf16.mxu0 %v5339
    %5784 = vmatpush1.bf16.msra.mxu0 %v5338
    %5785 = vmatprep.subr.bf16.mxu0 %v5335
    %5786 = vmatpush1.bf16.msra.mxu0 %v5334
    %5787 = vmatprep.subr.bf16.mxu0 %v5331
    %5788 = vmatpush1.bf16.msra.mxu0 %v5330
    %5789 = vmatprep.subr.bf16.mxu0 %v5391
    %5790 = vmatpush2.bf16.msra.mxu0 %v5390
    %5791 = vmatprep.subr.bf16.mxu0 %v5387
    %5792 = vmatpush2.bf16.msra.mxu0 %v5386
    %5793 = vmatprep.subr.bf16.mxu0 %v5383
    %5794 = vmatpush2.bf16.msra.mxu0 %v5382
    %5795 = vmatprep.subr.bf16.mxu0 %v5379
    %5796 = vmatpush2.bf16.msra.mxu0 %v5378
    %5797 = vmatprep.subr.bf16.mxu0 %v5375
    %5798 = vmatpush2.bf16.msra.mxu0 %v5374
    %5799 = vmatprep.subr.bf16.mxu0 %v5371
    %5800 = vmatpush2.bf16.msra.mxu0 %v5370
    %5801 = vmatprep.subr.bf16.mxu0 %v5367
    %5802 = vmatpush2.bf16.msra.mxu0 %v5366
    %5803 = vmatprep.subr.bf16.mxu0 %v5363
    %5804 = vmatpush2.bf16.msra.mxu0 %v5362
    %5805 = vmatprep.mubr.bf16.mxu0 %v4091
    %5806 = vmatmul.mubr.bf16.gmra.mxu0 %v4090
    %v5807 = vpop.f32.mrf.mxu0
    %v5808 = vadd.f32 %v5767, %v5807
    %v5809 = vpop.f32.mrf.mxu0
    %v5810 = vadd.f32 %v5769, %v5809
    %v5811 = vpop.f32.mrf.mxu0
    %v5812 = vpop.f32.mrf.mxu0
    %5813 = vdwg.mxu0
    %5814 = vmatprep.subr.bf16.mxu0 %v5169
    %5815 = vmatpush1.bf16.msra.mxu0 %v5168
    %5816 = vmatprep.subr.bf16.mxu0 %v5165
    %5817 = vmatpush1.bf16.msra.mxu0 %v5164
    %5818 = vmatprep.subr.bf16.mxu0 %v5161
    %5819 = vmatpush1.bf16.msra.mxu0 %v5160
    %5820 = vmatprep.subr.bf16.mxu0 %v5157
    %5821 = vmatpush1.bf16.msra.mxu0 %v5156
    %5822 = vmatprep.subr.bf16.mxu0 %v5153
    %5823 = vmatpush1.bf16.msra.mxu0 %v5152
    %5824 = vmatprep.subr.bf16.mxu0 %v5149
    %5825 = vmatpush1.bf16.msra.mxu0 %v5148
    %5826 = vmatprep.subr.bf16.mxu0 %v5145
    %5827 = vmatpush1.bf16.msra.mxu0 %v5144
    %5828 = vmatprep.subr.bf16.mxu0 %v5141
    %5829 = vmatpush1.bf16.msra.mxu0 %v5140
    %5830 = vmatprep.subr.bf16.mxu0 %v5201
    %5831 = vmatpush2.bf16.msra.mxu0 %v5200
    %5832 = vmatprep.subr.bf16.mxu0 %v5197
    %5833 = vmatpush2.bf16.msra.mxu0 %v5196
    %5834 = vmatprep.subr.bf16.mxu0 %v5193
    %5835 = vmatpush2.bf16.msra.mxu0 %v5192
    %5836 = vmatprep.subr.bf16.mxu0 %v5189
    %5837 = vmatpush2.bf16.msra.mxu0 %v5188
    %5838 = vmatprep.subr.bf16.mxu0 %v5185
    %5839 = vmatpush2.bf16.msra.mxu0 %v5184
    %5840 = vmatprep.subr.bf16.mxu0 %v5181
    %5841 = vmatpush2.bf16.msra.mxu0 %v5180
    %5842 = vmatprep.subr.bf16.mxu0 %v5177
    %5843 = vmatpush2.bf16.msra.mxu0 %v5176
    %5844 = vmatprep.subr.bf16.mxu0 %v5173
    %5845 = vmatpush2.bf16.msra.mxu0 %v5172
    %5846 = vmatprep.mubr.bf16.mxu0 %v4085
    %5847 = vmatmul.mubr.bf16.gmra.mxu0 %v4084
    %v5848 = vpop.f32.mrf.mxu0
    %v5849 = vadd.f32 %v4361, %v5848
    %v5850 = vpop.f32.mrf.mxu0
    %v5851 = vadd.f32 %v4365, %v5850
    %v5852 = vpop.f32.mrf.mxu0
    %v5853 = vpop.f32.mrf.mxu0
    %5854 = vdwg.mxu0
    %5855 = vmatprep.subr.bf16.mxu0 %v5233
    %5856 = vmatpush1.bf16.msra.mxu0 %v5232
    %5857 = vmatprep.subr.bf16.mxu0 %v5229
    %5858 = vmatpush1.bf16.msra.mxu0 %v5228
    %5859 = vmatprep.subr.bf16.mxu0 %v5225
    %5860 = vmatpush1.bf16.msra.mxu0 %v5224
    %5861 = vmatprep.subr.bf16.mxu0 %v5221
    %5862 = vmatpush1.bf16.msra.mxu0 %v5220
    %5863 = vmatprep.subr.bf16.mxu0 %v5217
    %5864 = vmatpush1.bf16.msra.mxu0 %v5216
    %5865 = vmatprep.subr.bf16.mxu0 %v5213
    %5866 = vmatpush1.bf16.msra.mxu0 %v5212
    %5867 = vmatprep.subr.bf16.mxu0 %v5209
    %5868 = vmatpush1.bf16.msra.mxu0 %v5208
    %5869 = vmatprep.subr.bf16.mxu0 %v5205
    %5870 = vmatpush1.bf16.msra.mxu0 %v5204
    %5871 = vmatprep.subr.bf16.mxu0 %v5265
    %5872 = vmatpush2.bf16.msra.mxu0 %v5264
    %5873 = vmatprep.subr.bf16.mxu0 %v5261
    %5874 = vmatpush2.bf16.msra.mxu0 %v5260
    %5875 = vmatprep.subr.bf16.mxu0 %v5257
    %5876 = vmatpush2.bf16.msra.mxu0 %v5256
    %5877 = vmatprep.subr.bf16.mxu0 %v5253
    %5878 = vmatpush2.bf16.msra.mxu0 %v5252
    %5879 = vmatprep.subr.bf16.mxu0 %v5249
    %5880 = vmatpush2.bf16.msra.mxu0 %v5248
    %5881 = vmatprep.subr.bf16.mxu0 %v5245
    %5882 = vmatpush2.bf16.msra.mxu0 %v5244
    %5883 = vmatprep.subr.bf16.mxu0 %v5241
    %5884 = vmatpush2.bf16.msra.mxu0 %v5240
    %5885 = vmatprep.subr.bf16.mxu0 %v5237
    %5886 = vmatpush2.bf16.msra.mxu0 %v5236
    %5887 = vmatprep.mubr.bf16.mxu0 %v4087
    %5888 = vmatmul.mubr.bf16.gmra.mxu0 %v4086
    %v5889 = vpop.f32.mrf.mxu0
    %v5890 = vadd.f32 %v5849, %v5889
    %v5891 = vpop.f32.mrf.mxu0
    %v5892 = vadd.f32 %v5851, %v5891
    %v5893 = vpop.f32.mrf.mxu0
    %v5894 = vpop.f32.mrf.mxu0
    %5895 = vdwg.mxu0
    %5896 = vmatprep.subr.bf16.mxu0 %v5297
    %5897 = vmatpush1.bf16.msra.mxu0 %v5296
    %5898 = vmatprep.subr.bf16.mxu0 %v5293
    %5899 = vmatpush1.bf16.msra.mxu0 %v5292
    %5900 = vmatprep.subr.bf16.mxu0 %v5289
    %5901 = vmatpush1.bf16.msra.mxu0 %v5288
    %5902 = vmatprep.subr.bf16.mxu0 %v5285
    %5903 = vmatpush1.bf16.msra.mxu0 %v5284
    %5904 = vmatprep.subr.bf16.mxu0 %v5281
    %5905 = vmatpush1.bf16.msra.mxu0 %v5280
    %5906 = vmatprep.subr.bf16.mxu0 %v5277
    %5907 = vmatpush1.bf16.msra.mxu0 %v5276
    %5908 = vmatprep.subr.bf16.mxu0 %v5273
    %5909 = vmatpush1.bf16.msra.mxu0 %v5272
    %5910 = vmatprep.subr.bf16.mxu0 %v5269
    %5911 = vmatpush1.bf16.msra.mxu0 %v5268
    %5912 = vmatprep.subr.bf16.mxu0 %v5329
    %5913 = vmatpush2.bf16.msra.mxu0 %v5328
    %5914 = vmatprep.subr.bf16.mxu0 %v5325
    %5915 = vmatpush2.bf16.msra.mxu0 %v5324
    %5916 = vmatprep.subr.bf16.mxu0 %v5321
    %5917 = vmatpush2.bf16.msra.mxu0 %v5320
    %5918 = vmatprep.subr.bf16.mxu0 %v5317
    %5919 = vmatpush2.bf16.msra.mxu0 %v5316
    %5920 = vmatprep.subr.bf16.mxu0 %v5313
    %5921 = vmatpush2.bf16.msra.mxu0 %v5312
    %5922 = vmatprep.subr.bf16.mxu0 %v5309
    %5923 = vmatpush2.bf16.msra.mxu0 %v5308
    %5924 = vmatprep.subr.bf16.mxu0 %v5305
    %5925 = vmatpush2.bf16.msra.mxu0 %v5304
    %5926 = vmatprep.subr.bf16.mxu0 %v5301
    %5927 = vmatpush2.bf16.msra.mxu0 %v5300
    %5928 = vmatprep.mubr.bf16.mxu0 %v4089
    %5929 = vmatmul.mubr.bf16.gmra.mxu0 %v4088
    %v5930 = vpop.f32.mrf.mxu0
    %v5931 = vadd.f32 %v5890, %v5930
    %v5932 = vpop.f32.mrf.mxu0
    %v5933 = vadd.f32 %v5892, %v5932
    %v5934 = vpop.f32.mrf.mxu0
    %v5935 = vpop.f32.mrf.mxu0
    %5936 = vdwg.mxu0
    %5937 = vmatprep.subr.bf16.mxu0 %v5361
    %5938 = vmatpush1.bf16.msra.mxu0 %v5360
    %5939 = vmatprep.subr.bf16.mxu0 %v5357
    %5940 = vmatpush1.bf16.msra.mxu0 %v5356
    %5941 = vmatprep.subr.bf16.mxu0 %v5353
    %5942 = vmatpush1.bf16.msra.mxu0 %v5352
    %5943 = vmatprep.subr.bf16.mxu0 %v5349
    %5944 = vmatpush1.bf16.msra.mxu0 %v5348
    %5945 = vmatprep.subr.bf16.mxu0 %v5345
    %5946 = vmatpush1.bf16.msra.mxu0 %v5344
    %5947 = vmatprep.subr.bf16.mxu0 %v5341
    %5948 = vmatpush1.bf16.msra.mxu0 %v5340
    %5949 = vmatprep.subr.bf16.mxu0 %v5337
    %5950 = vmatpush1.bf16.msra.mxu0 %v5336
    %5951 = vmatprep.subr.bf16.mxu0 %v5333
    %5952 = vmatpush1.bf16.msra.mxu0 %v5332
    %5953 = vmatprep.subr.bf16.mxu0 %v5393
    %5954 = vmatpush2.bf16.msra.mxu0 %v5392
    %5955 = vmatprep.subr.bf16.mxu0 %v5389
    %5956 = vmatpush2.bf16.msra.mxu0 %v5388
    %5957 = vmatprep.subr.bf16.mxu0 %v5385
    %5958 = vmatpush2.bf16.msra.mxu0 %v5384
    %5959 = vmatprep.subr.bf16.mxu0 %v5381
    %5960 = vmatpush2.bf16.msra.mxu0 %v5380
    %5961 = vmatprep.subr.bf16.mxu0 %v5377
    %5962 = vmatpush2.bf16.msra.mxu0 %v5376
    %5963 = vmatprep.subr.bf16.mxu0 %v5373
    %5964 = vmatpush2.bf16.msra.mxu0 %v5372
    %5965 = vmatprep.subr.bf16.mxu0 %v5369
    %5966 = vmatpush2.bf16.msra.mxu0 %v5368
    %5967 = vmatprep.subr.bf16.mxu0 %v5365
    %5968 = vmatpush2.bf16.msra.mxu0 %v5364
    %5969 = vmatprep.mubr.bf16.mxu0 %v4091
    %5970 = vmatmul.mubr.bf16.gmra.mxu0 %v4090
    %v5971 = vpop.f32.mrf.mxu0
    %v5972 = vadd.f32 %v5931, %v5971
    %v5973 = vpop.f32.mrf.mxu0
    %v5974 = vadd.f32 %v5933, %v5973
    %v5975 = vpop.f32.mrf.mxu0
    %v5976 = vpop.f32.mrf.mxu0
    %5977 = vdwg.mxu0
    %v5978 = vmax.f32 %v5808, 0.0
    %v5979 = vmax.f32 %v5810, 0.0
    %v5980 = vmax.f32 %v5972, 0.0
    %v5981 = vmax.f32 %v5974, 0.0
    %v5982 = vpack.c.bf16 %v5978, %v5978
    %v5983 = vpack.c.bf16 %v5979, %v5979
    %v5984 = vpack.c.bf16 %v5980, %v5980
    %v5985 = vpack.c.bf16 %v5981, %v5981
    %v5986 = vld [vmem:[#allocation13] sm:$0xf]
    %v5987 = vld [vmem:[#allocation13 + $0x4] sm:$0xf]
    %v5988 = vld [vmem:[#allocation13 + $0x8] sm:$0xf]
    %v5989 = vld [vmem:[#allocation13 + $0xc] sm:$0xf]
    %v5990 = vld [vmem:[#allocation13 + $0x10] sm:$0xf]
    %v5991 = vld [vmem:[#allocation13 + $0x14] sm:$0xf]
    %v5992 = vld [vmem:[#allocation13 + $0x18] sm:$0xf]
    %v5993 = vld [vmem:[#allocation13 + $0x1c] sm:$0xf]
    %v5994 = vld [vmem:[#allocation13 + $0x20] sm:$0xf]
    %v5995 = vld [vmem:[#allocation13 + $0x24] sm:$0xf]
    %v5996 = vld [vmem:[#allocation13 + $0x28] sm:$0xf]
    %v5997 = vld [vmem:[#allocation13 + $0x2c] sm:$0xf]
    %v5998 = vld [vmem:[#allocation13 + $0x30] sm:$0xf]
    %v5999 = vld [vmem:[#allocation13 + $0x34] sm:$0xf]
    %v6000 = vld [vmem:[#allocation13 + $0x38] sm:$0xf]
    %v6001 = vld [vmem:[#allocation13 + $0x3c] sm:$0xf]
    %v6002 = vld [vmem:[#allocation13 + $0x40] sm:$0xf]
    %v6003 = vld [vmem:[#allocation13 + $0x44] sm:$0xf]
    %v6004 = vld [vmem:[#allocation13 + $0x48] sm:$0xf]
    %v6005 = vld [vmem:[#allocation13 + $0x4c] sm:$0xf]
    %v6006 = vld [vmem:[#allocation13 + $0x50] sm:$0xf]
    %v6007 = vld [vmem:[#allocation13 + $0x54] sm:$0xf]
    %v6008 = vld [vmem:[#allocation13 + $0x58] sm:$0xf]
    %v6009 = vld [vmem:[#allocation13 + $0x5c] sm:$0xf]
    %v6010 = vld [vmem:[#allocation13 + $0x60] sm:$0xf]
    %v6011 = vld [vmem:[#allocation13 + $0x64] sm:$0xf]
    %v6012 = vld [vmem:[#allocation13 + $0x68] sm:$0xf]
    %v6013 = vld [vmem:[#allocation13 + $0x6c] sm:$0xf]
    %v6014 = vld [vmem:[#allocation13 + $0x70] sm:$0xf]
    %v6015 = vld [vmem:[#allocation13 + $0x74] sm:$0xf]
    %v6016 = vld [vmem:[#allocation13 + $0x78] sm:$0xf]
    %v6017 = vld [vmem:[#allocation13 + $0x7c] sm:$0xf]
    %v6018 = vld [vmem:[#allocation13 + $0x80] sm:$0xf]
    %v6019 = vld [vmem:[#allocation13 + $0x84] sm:$0xf]
    %v6020 = vld [vmem:[#allocation13 + $0x88] sm:$0xf]
    %v6021 = vld [vmem:[#allocation13 + $0x8c] sm:$0xf]
    %v6022 = vld [vmem:[#allocation13 + $0x90] sm:$0xf]
    %v6023 = vld [vmem:[#allocation13 + $0x94] sm:$0xf]
    %v6024 = vld [vmem:[#allocation13 + $0x98] sm:$0xf]
    %v6025 = vld [vmem:[#allocation13 + $0x9c] sm:$0xf]
    %v6026 = vld [vmem:[#allocation13 + $0xa0] sm:$0xf]
    %v6027 = vld [vmem:[#allocation13 + $0xa4] sm:$0xf]
    %v6028 = vld [vmem:[#allocation13 + $0xa8] sm:$0xf]
    %v6029 = vld [vmem:[#allocation13 + $0xac] sm:$0xf]
    %v6030 = vld [vmem:[#allocation13 + $0xb0] sm:$0xf]
    %v6031 = vld [vmem:[#allocation13 + $0xb4] sm:$0xf]
    %v6032 = vld [vmem:[#allocation13 + $0xb8] sm:$0xf]
    %v6033 = vld [vmem:[#allocation13 + $0xbc] sm:$0xf]
    %v6034 = vld [vmem:[#allocation13 + $0xc0] sm:$0xf]
    %v6035 = vld [vmem:[#allocation13 + $0xc4] sm:$0xf]
    %v6036 = vld [vmem:[#allocation13 + $0xc8] sm:$0xf]
    %v6037 = vld [vmem:[#allocation13 + $0xcc] sm:$0xf]
    %v6038 = vld [vmem:[#allocation13 + $0xd0] sm:$0xf]
    %v6039 = vld [vmem:[#allocation13 + $0xd4] sm:$0xf]
    %v6040 = vld [vmem:[#allocation13 + $0xd8] sm:$0xf]
    %v6041 = vld [vmem:[#allocation13 + $0xdc] sm:$0xf]
    %v6042 = vld [vmem:[#allocation13 + $0xe0] sm:$0xf]
    %v6043 = vld [vmem:[#allocation13 + $0xe4] sm:$0xf]
    %v6044 = vld [vmem:[#allocation13 + $0xe8] sm:$0xf]
    %v6045 = vld [vmem:[#allocation13 + $0xec] sm:$0xf]
    %v6046 = vld [vmem:[#allocation13 + $0xf0] sm:$0xf]
    %v6047 = vld [vmem:[#allocation13 + $0xf4] sm:$0xf]
    %v6048 = vld [vmem:[#allocation13 + $0xf8] sm:$0xf]
    %v6049 = vld [vmem:[#allocation13 + $0xfc] sm:$0xf]
    %v6050 = vld [vmem:[#allocation14] sm:$0x1]
    %v6052 = vlaneseq
    %v6053 = vshrl.u32 %v6052, 7
    %v6054 = vsub.s32 0, %v6053
    %v6055 = vrot.slane %v6050, %v6054
    %v6121 = vunpack.c.l.b16 %v5986
    %v6122 = vunpack.c.l.b16 %v5987
    %v6123 = vunpack.c.l.b16 %v5988
    %v6124 = vunpack.c.l.b16 %v5989
    %v6125 = vunpack.c.l.b16 %v5990
    %v6126 = vunpack.c.l.b16 %v5991
    %v6127 = vunpack.c.l.b16 %v5992
    %v6128 = vunpack.c.l.b16 %v5993
    %v6129 = vunpack.c.l.b16 %v5994
    %v6130 = vunpack.c.l.b16 %v5995
    %v6131 = vunpack.c.l.b16 %v5996
    %v6132 = vunpack.c.l.b16 %v5997
    %v6133 = vunpack.c.l.b16 %v5998
    %v6134 = vunpack.c.l.b16 %v5999
    %v6135 = vunpack.c.l.b16 %v6000
    %v6136 = vunpack.c.l.b16 %v6001
    %v6137 = vunpack.c.l.b16 %v6002
    %v6138 = vunpack.c.l.b16 %v6003
    %v6139 = vunpack.c.l.b16 %v6004
    %v6140 = vunpack.c.l.b16 %v6005
    %v6141 = vunpack.c.l.b16 %v6006
    %v6142 = vunpack.c.l.b16 %v6007
    %v6143 = vunpack.c.l.b16 %v6008
    %v6144 = vunpack.c.l.b16 %v6009
    %v6145 = vunpack.c.l.b16 %v6010
    %v6146 = vunpack.c.l.b16 %v6011
    %v6147 = vunpack.c.l.b16 %v6012
    %v6148 = vunpack.c.l.b16 %v6013
    %v6149 = vunpack.c.l.b16 %v6014
    %v6150 = vunpack.c.l.b16 %v6015
    %v6151 = vunpack.c.l.b16 %v6016
    %v6152 = vunpack.c.l.b16 %v6017
    %v6153 = vunpack.c.l.b16 %v6018
    %v6154 = vunpack.c.l.b16 %v6019
    %v6155 = vunpack.c.l.b16 %v6020
    %v6156 = vunpack.c.l.b16 %v6021
    %v6157 = vunpack.c.l.b16 %v6022
    %v6158 = vunpack.c.l.b16 %v6023
    %v6159 = vunpack.c.l.b16 %v6024
    %v6160 = vunpack.c.l.b16 %v6025
    %v6161 = vunpack.c.l.b16 %v6026
    %v6162 = vunpack.c.l.b16 %v6027
    %v6163 = vunpack.c.l.b16 %v6028
    %v6164 = vunpack.c.l.b16 %v6029
    %v6165 = vunpack.c.l.b16 %v6030
    %v6166 = vunpack.c.l.b16 %v6031
    %v6167 = vunpack.c.l.b16 %v6032
    %v6168 = vunpack.c.l.b16 %v6033
    %v6169 = vunpack.c.l.b16 %v6034
    %v6170 = vunpack.c.l.b16 %v6035
    %v6171 = vunpack.c.l.b16 %v6036
    %v6172 = vunpack.c.l.b16 %v6037
    %v6173 = vunpack.c.l.b16 %v6038
    %v6174 = vunpack.c.l.b16 %v6039
    %v6175 = vunpack.c.l.b16 %v6040
    %v6176 = vunpack.c.l.b16 %v6041
    %v6177 = vunpack.c.l.b16 %v6042
    %v6178 = vunpack.c.l.b16 %v6043
    %v6179 = vunpack.c.l.b16 %v6044
    %v6180 = vunpack.c.l.b16 %v6045
    %v6181 = vunpack.c.l.b16 %v6046
    %v6182 = vunpack.c.l.b16 %v6047
    %v6183 = vunpack.c.l.b16 %v6048
    %v6184 = vunpack.c.l.b16 %v6049
    %v6185 = vpack.c.b16 %v6122, %v6121
    %v6186 = vpack.c.b16 %v6124, %v6123
    %v6187 = vpack.c.b16 %v6126, %v6125
    %v6188 = vpack.c.b16 %v6128, %v6127
    %v6189 = vpack.c.b16 %v6130, %v6129
    %v6190 = vpack.c.b16 %v6132, %v6131
    %v6191 = vpack.c.b16 %v6134, %v6133
    %v6192 = vpack.c.b16 %v6136, %v6135
    %v6193 = vpack.c.b16 %v6138, %v6137
    %v6194 = vpack.c.b16 %v6140, %v6139
    %v6195 = vpack.c.b16 %v6142, %v6141
    %v6196 = vpack.c.b16 %v6144, %v6143
    %v6197 = vpack.c.b16 %v6146, %v6145
    %v6198 = vpack.c.b16 %v6148, %v6147
    %v6199 = vpack.c.b16 %v6150, %v6149
    %v6200 = vpack.c.b16 %v6152, %v6151
    %v6201 = vpack.c.b16 %v6154, %v6153
    %v6202 = vpack.c.b16 %v6156, %v6155
    %v6203 = vpack.c.b16 %v6158, %v6157
    %v6204 = vpack.c.b16 %v6160, %v6159
    %v6205 = vpack.c.b16 %v6162, %v6161
    %v6206 = vpack.c.b16 %v6164, %v6163
    %v6207 = vpack.c.b16 %v6166, %v6165
    %v6208 = vpack.c.b16 %v6168, %v6167
    %v6209 = vpack.c.b16 %v6170, %v6169
    %v6210 = vpack.c.b16 %v6172, %v6171
    %v6211 = vpack.c.b16 %v6174, %v6173
    %v6212 = vpack.c.b16 %v6176, %v6175
    %v6213 = vpack.c.b16 %v6178, %v6177
    %v6214 = vpack.c.b16 %v6180, %v6179
    %v6215 = vpack.c.b16 %v6182, %v6181
    %v6216 = vpack.c.b16 %v6184, %v6183
    %6249 = vmatprep.subr.bf16.mxu0 0
    %6250 = vmatpush1.bf16.msra.mxu0 %v6192
    %6251 = vmatprep.subr.bf16.mxu0 0
    %6252 = vmatpush1.bf16.msra.mxu0 %v6191
    %6253 = vmatprep.subr.bf16.mxu0 0
    %6254 = vmatpush1.bf16.msra.mxu0 %v6190
    %6255 = vmatprep.subr.bf16.mxu0 0
    %6256 = vmatpush1.bf16.msra.mxu0 %v6189
    %6257 = vmatprep.subr.bf16.mxu0 0
    %6258 = vmatpush1.bf16.msra.mxu0 %v6188
    %6259 = vmatprep.subr.bf16.mxu0 0
    %6260 = vmatpush1.bf16.msra.mxu0 %v6187
    %6261 = vmatprep.subr.bf16.mxu0 0
    %6262 = vmatpush1.bf16.msra.mxu0 %v6186
    %6263 = vmatprep.subr.bf16.mxu0 0
    %6264 = vmatpush1.bf16.msra.mxu0 %v6185
    %6265 = vmatprep.subr.bf16.mxu0 0
    %6266 = vmatpush2.bf16.msra.mxu0 %v6200
    %6267 = vmatprep.subr.bf16.mxu0 0
    %6268 = vmatpush2.bf16.msra.mxu0 %v6199
    %6269 = vmatprep.subr.bf16.mxu0 0
    %6270 = vmatpush2.bf16.msra.mxu0 %v6198
    %6271 = vmatprep.subr.bf16.mxu0 0
    %6272 = vmatpush2.bf16.msra.mxu0 %v6197
    %6273 = vmatprep.subr.bf16.mxu0 0
    %6274 = vmatpush2.bf16.msra.mxu0 %v6196
    %6275 = vmatprep.subr.bf16.mxu0 0
    %6276 = vmatpush2.bf16.msra.mxu0 %v6195
    %6277 = vmatprep.subr.bf16.mxu0 0
    %6278 = vmatpush2.bf16.msra.mxu0 %v6194
    %6279 = vmatprep.subr.bf16.mxu0 0
    %6280 = vmatpush2.bf16.msra.mxu0 %v6193
    %6281 = vmatprep.mubr.bf16.mxu0 %v5983
    %6282 = vmatmul.mubr.bf16.gmra.mxu0 %v5982
    %v6283 = vpop.f32.mrf.mxu0
    %v6284 = vadd.f32 %v6055, %v6283
    %v6285 = vpop.f32.mrf.mxu0
    %v6286 = vpop.f32.mrf.mxu0
    %v6287 = vpop.f32.mrf.mxu0
    %6288 = vdwg.mxu0
    %6289 = vmatprep.subr.bf16.mxu0 0
    %6290 = vmatpush1.bf16.msra.mxu0 %v6208
    %6291 = vmatprep.subr.bf16.mxu0 0
    %6292 = vmatpush1.bf16.msra.mxu0 %v6207
    %6293 = vmatprep.subr.bf16.mxu0 0
    %6294 = vmatpush1.bf16.msra.mxu0 %v6206
    %6295 = vmatprep.subr.bf16.mxu0 0
    %6296 = vmatpush1.bf16.msra.mxu0 %v6205
    %6297 = vmatprep.subr.bf16.mxu0 0
    %6298 = vmatpush1.bf16.msra.mxu0 %v6204
    %6299 = vmatprep.subr.bf16.mxu0 0
    %6300 = vmatpush1.bf16.msra.mxu0 %v6203
    %6301 = vmatprep.subr.bf16.mxu0 0
    %6302 = vmatpush1.bf16.msra.mxu0 %v6202
    %6303 = vmatprep.subr.bf16.mxu0 0
    %6304 = vmatpush1.bf16.msra.mxu0 %v6201
    %6305 = vmatprep.subr.bf16.mxu0 0
    %6306 = vmatpush2.bf16.msra.mxu0 %v6216
    %6307 = vmatprep.subr.bf16.mxu0 0
    %6308 = vmatpush2.bf16.msra.mxu0 %v6215
    %6309 = vmatprep.subr.bf16.mxu0 0
    %6310 = vmatpush2.bf16.msra.mxu0 %v6214
    %6311 = vmatprep.subr.bf16.mxu0 0
    %6312 = vmatpush2.bf16.msra.mxu0 %v6213
    %6313 = vmatprep.subr.bf16.mxu0 0
    %6314 = vmatpush2.bf16.msra.mxu0 %v6212
    %6315 = vmatprep.subr.bf16.mxu0 0
    %6316 = vmatpush2.bf16.msra.mxu0 %v6211
    %6317 = vmatprep.subr.bf16.mxu0 0
    %6318 = vmatpush2.bf16.msra.mxu0 %v6210
    %6319 = vmatprep.subr.bf16.mxu0 0
    %6320 = vmatpush2.bf16.msra.mxu0 %v6209
    %6321 = vmatprep.mubr.bf16.mxu0 %v5985
    %6322 = vmatmul.mubr.bf16.gmra.mxu0 %v5984
    %v6323 = vpop.f32.mrf.mxu0
    %v6324 = vadd.f32 %v6284, %v6323
    %v6325 = vpop.f32.mrf.mxu0
    %v6326 = vpop.f32.mrf.mxu0
    %v6327 = vpop.f32.mrf.mxu0
    %6328 = vdwg.mxu0
    %6329 = vmax.xlane.f32.xlu0 %v6324
    %v6330 = vpop.xlane.xlu0 %6329
    %v6331 = vsub.f32 %v6324, %v6330
    %v6332 = vmul.f32 %v6331, 1.442695
    %v6333 = vpow.pop %v6332
    %6334 = vadd.xlane.f32.xlu0 %v6333
    %v6335 = vpop.xlane.xlu0 %6334
    %v6336 = vlog2.pop %v6335
    %v6337 = vmul.f32 %v6336, 0.6931472
    %v6338 = vsub.f32 %v6331, %v6337
    %6339 = vst [vmem:[%s9] sm:$0xff] %v6338
    // Predicated region
    $region70: #{net_forward.1} parent=1 // pred_check
      _
    $region71: #{net_forward.1} parent=1 // pred_check_branch
      %6341 = sbr.rel (0) target = $region73
    $region72: #{net_forward.1} parent=1 // pred_region
      _
    $region73: #{net_forward.1} parent=1 // pred_fallthru
      _
    // Predicated region
    $region74: #{net_forward.1} parent=1 // pred_check
      _
    $region75: #{net_forward.1} parent=1 // pred_check_branch
      %6343 = sbr.rel (0) target = $region77
    $region76: #{net_forward.1} parent=1 // pred_region
      _
    $region77: #{net_forward.1} parent=1 // pred_fallthru
      _
    %6344 = vsyncpa [#allocation4], 1
    %6345 = vsyncpa [#allocation6], 1
    %6346 = vsyncpa [#allocation9], 1
    %6347 = vsyncpa [#allocation12], 1
    %6348 = vsyncpa [#allocation15], 1

</llo_original>
